<compile_context>
chip_gen: v7x
topology: tpu7x:2x2x1
jax: 0.10.0
libtpu: 0.0.40
codegen_flags: <defaults>
</compile_context>

<pallas_src>
import functools
import math

import jax
import jax.numpy as jnp
from jax import lax
from jax.experimental import pallas as pl
from jax.experimental.pallas import tpu as pltpu

EPS = 1e-5
N_LAYERS = 12  # hard-coded in the PyTorch module
VMEM_LIMIT = 40 * 1024 * 1024  # raise scoped VMEM (v5e default 16 MiB) for the larger tiles
MXU_DTYPE = jnp.float32        # fp32 = exact PyTorch numerics; bf16 = big v6e/v7x speedup


# ----------------------------- tiling helpers ------------------------------

def _round_up(x, a):
    return (x + a - 1) // a * a


def _pick_tile(dim, target, align):
    """Largest multiple of `align` that divides `dim` and is <= target; else the full dim."""
    if dim % align == 0 and dim >= align:
        t = min(target, dim)
        t -= t % align
        while t >= align:
            if dim % t == 0:
                return t
            t -= align
    return dim


def _pick_tile_2blocks(dim, target, align):
    """Like _pick_tile, but prefer >= 2 grid blocks so both v7x TensorCores get work."""
    return _pick_tile(dim, min(target, max(align, dim // 2)), align)


# ----------------------------- Pallas kernels ------------------------------

def add_layernorm_kernel(a_ref, b_ref, scale_ref, shift_ref, sum_ref, o_ref):
    # fused: s = a + b (residual add); out = LayerNorm(s); also emit s as the new residual.
    s = a_ref[...].astype(jnp.float32) + b_ref[...].astype(jnp.float32)
    sum_ref[...] = s.astype(sum_ref.dtype)
    d = s.shape[-1]
    mean = jnp.mean(s, axis=-1, keepdims=True)
    # torch.Tensor.var default is unbiased (divide by N-1), which the reference LayerNorm uses.
    var = jnp.sum((s - mean) ** 2, axis=-1, keepdims=True) * (1.0 / (d - 1))
    xn = (s - mean) * lax.rsqrt(var + EPS)
    o_ref[...] = (scale_ref[...] * xn + shift_ref[...]).astype(o_ref.dtype)


def _gelu(y):
    c = jnp.float32(math.sqrt(2.0 / math.pi))
    return 0.5 * y * (1.0 + jnp.tanh(c * (y + 0.044715 * (y * y * y))))


def linear_fullk_kernel(x_ref, w_ref, b_ref, o_ref, *, activation):
    # Full-K tile: single dot, no accumulator scratch, no K grid axis.
    y = jnp.dot(x_ref[...].astype(MXU_DTYPE), w_ref[...].astype(MXU_DTYPE),
                preferred_element_type=jnp.float32)
    y = y + b_ref[...].astype(jnp.float32)
    if activation == "gelu":
        y = _gelu(y)
    o_ref[...] = y.astype(o_ref.dtype)


def linear_ktiled_kernel(x_ref, w_ref, b_ref, o_ref, acc_ref, *, activation):
    @pl.when(pl.program_id(2) == 0)
    def _():
        acc_ref[...] = jnp.zeros_like(acc_ref)

    acc_ref[...] += jnp.dot(x_ref[...].astype(MXU_DTYPE), w_ref[...].astype(MXU_DTYPE),
                            preferred_element_type=jnp.float32)

    @pl.when(pl.program_id(2) == pl.num_programs(2) - 1)
    def _():
        y = acc_ref[...] + b_ref[...].astype(jnp.float32)
        if activation == "gelu":
            y = _gelu(y)
        o_ref[...] = y.astype(o_ref.dtype)


def attention_kernel(q_ref, k_ref, v_ref, o_ref, *, num_heads, head_dim, blk, scale):
    # q_ref: (1, blk, D) current q block.  k_ref/v_ref: (1, T, D) full (batch-resident) K/V.
    qi = pl.program_id(1)

    # scale folded into Q once per q block (not per kv step)
    q_all = (q_ref[0].astype(jnp.float32) * scale).astype(MXU_DTYPE)

    # block-local causal mask; only the diagonal kv block ever needs it
    row = lax.broadcasted_iota(jnp.int32, (blk, blk), 0)
    col = lax.broadcasted_iota(jnp.int32, (blk, blk), 1)
    causal = col <= row

    contract_last = (((1,), (1,)), ((), ()))  # QK^T without materializing K^T

    def kv_step(kvi, carry, lo, q_h, masked):
        m_prev, l_prev, acc_prev = carry
        start = pl.multiple_of(kvi * blk, blk)
        k_h = k_ref[0, pl.ds(start, blk), lo:lo + head_dim].astype(MXU_DTYPE)
        v_h = v_ref[0, pl.ds(start, blk), lo:lo + head_dim].astype(MXU_DTYPE)
        s = lax.dot_general(q_h, k_h, contract_last, preferred_element_type=jnp.float32)
        if masked:
            s = jnp.where(causal, s, -jnp.inf)
        m_new = jnp.maximum(m_prev, jnp.max(s, axis=-1, keepdims=True))
        alpha = jnp.exp(m_prev - m_new)
        p = jnp.exp(s - m_new)
        l_new = alpha * l_prev + jnp.sum(p, axis=-1, keepdims=True)
        acc_new = alpha * acc_prev + jnp.dot(p.astype(MXU_DTYPE), v_h,
                                             preferred_element_type=jnp.float32)
        return m_new, l_new, acc_new

    for h in range(num_heads):
        lo = h * head_dim
        q_h = q_all[:, lo:lo + head_dim]
        init = (jnp.full((blk, 1), -jnp.inf, jnp.float32),
                jnp.zeros((blk, 1), jnp.float32),
                jnp.zeros((blk, head_dim), jnp.float32))
        # strictly-below-diagonal kv blocks: unmasked (no per-element compare/select)
        carry = lax.fori_loop(
            0, qi, lambda kvi, c, lo=lo, q_h=q_h: kv_step(kvi, c, lo, q_h, False), init)
        # diagonal kv block: masked
        _, l_f, acc_f = kv_step(qi, carry, lo, q_h, True)
        o_ref[0, :, lo:lo + head_dim] = (
            acc_f * pl.reciprocal(l_f, approx=True)).astype(o_ref.dtype)


# ----------------------------- kernel wrappers ------------------------------

def pallas_add_layernorm(a2d, b2d, scale, shift):
    """Returns (a2d + b2d, LayerNorm(a2d + b2d)) with the add fused into the LN kernel."""
    m, d = a2d.shape
    tm = _pick_tile_2blocks(m, 512, 8)
    row_spec = pl.BlockSpec((tm, d), lambda i: (i, 0))
    par_spec = pl.BlockSpec((1, d), lambda i: (0, 0))
    return pl.pallas_call(
        add_layernorm_kernel,
        grid=(m // tm,),
        in_specs=[row_spec, row_spec, par_spec, par_spec],
        out_specs=(row_spec, row_spec),
        out_shape=(jax.ShapeDtypeStruct((m, d), a2d.dtype),
                   jax.ShapeDtypeStruct((m, d), a2d.dtype)),
        compiler_params=pltpu.CompilerParams(dimension_semantics=("parallel",)),
    )(a2d, b2d, scale.reshape(1, d), shift.reshape(1, d))


def pallas_linear(x2d, w, b, activation=None):
    m, k = x2d.shape
    _, n = w.shape

    # Pad unaligned dims (weights such as the LM head are pre-padded once at init, so this
    # only triggers for odd activation shapes; small dims stay full-extent blocks).
    mp = m if (m % 8 == 0 or m < 8) else _round_up(m, 8)
    kp = k if (k % 128 == 0 or k < 128) else _round_up(k, 128)
    np_ = n if (n % 128 == 0 or n < 128) else _round_up(n, 128)
    xp = x2d if (mp == m and kp == k) else jnp.pad(x2d, ((0, mp - m), (0, kp - k)))
    wp = w if (kp == k and np_ == n) else jnp.pad(w, ((0, kp - k), (0, np_ - n)))
    bp = b if np_ == n else jnp.pad(b, (0, np_ - n))

    tm = _pick_tile_2blocks(mp, 512, 8)
    tn = _pick_tile(np_, 1024, 128)
    # Full-K whenever the weight slab stays modest: removes the K grid axis and the fp32
    # accumulator revisit.  Large K (e.g. 4*emb_dim FFN input) uses <=1536-wide chunks.
    tk = kp if kp <= 2048 else _pick_tile(kp, 1536, 128)

    cost = pl.CostEstimate(
        flops=2 * m * n * k,
        transcendentals=m * n if activation == "gelu" else 0,
        bytes_accessed=4 * (m * k + k * n + m * n + n),
    )

    if tk == kp:
        out = pl.pallas_call(
            functools.partial(linear_fullk_kernel, activation=activation),
            grid=(mp // tm, np_ // tn),
            in_specs=[
                pl.BlockSpec((tm, tk), lambda i, j: (i, 0)),
                pl.BlockSpec((tk, tn), lambda i, j: (0, j)),
                pl.BlockSpec((1, tn), lambda i, j: (0, j)),
            ],
            out_specs=pl.BlockSpec((tm, tn), lambda i, j: (i, j)),
            out_shape=jax.ShapeDtypeStruct((mp, np_), x2d.dtype),
            compiler_params=pltpu.CompilerParams(
                dimension_semantics=("parallel", "parallel"),
                vmem_limit_bytes=VMEM_LIMIT),
            cost_estimate=cost,
        )(xp, wp, bp.reshape(1, np_))
    else:
        out = pl.pallas_call(
            functools.partial(linear_ktiled_kernel, activation=activation),
            grid=(mp // tm, np_ // tn, kp // tk),
            in_specs=[
                pl.BlockSpec((tm, tk), lambda i, j, kk: (i, kk)),
                pl.BlockSpec((tk, tn), lambda i, j, kk: (kk, j)),
                pl.BlockSpec((1, tn), lambda i, j, kk: (0, j)),
            ],
            out_specs=pl.BlockSpec((tm, tn), lambda i, j, kk: (i, j)),
            out_shape=jax.ShapeDtypeStruct((mp, np_), x2d.dtype),
            scratch_shapes=[pltpu.VMEM((tm, tn), jnp.float32)],
            compiler_params=pltpu.CompilerParams(
                dimension_semantics=("parallel", "parallel", "arbitrary"),
                vmem_limit_bytes=VMEM_LIMIT),
            cost_estimate=cost,
        )(xp, wp, bp.reshape(1, np_))

    if mp != m or np_ != n:
        out = out[:m, :n]
    return out


def pallas_attention(qkv, num_heads):
    """qkv: (B, T, 3*D) fused QKV laid out [Q | K | V] along the last dim. Returns (B, T, D)."""
    b, t, d3 = qkv.shape
    d = d3 // 3
    dh = d // num_heads
    blk = _pick_tile(t, 256, 8)
    n_q = t // blk
    scale = 1.0 / math.sqrt(dh)
    kern = functools.partial(attention_kernel, num_heads=num_heads, head_dim=dh,
                             blk=blk, scale=scale)
    o_spec = pl.BlockSpec((1, blk, d), lambda bi, qi: (bi, qi, 0))
    if d % 128 == 0:
        # Read Q/K/V as three windows of the single fused QKV tensor (no XLA slice copies).
        # K/V use a full-T block whose index depends only on the batch, so each batch's K/V is
        # DMA'd once and reused across all q blocks (Pallas elides the repeated fetch); no
        # bandwidth is spent on causally-dead kv blocks.
        in_specs = [
            pl.BlockSpec((1, blk, d), lambda bi, qi: (bi, qi, 0)),
            pl.BlockSpec((1, t, d), lambda bi, qi: (bi, 0, 1)),
            pl.BlockSpec((1, t, d), lambda bi, qi: (bi, 0, 2)),
        ]
        args = (qkv, qkv, qkv)
    else:
        # Unaligned head width (tiny test config): fall back to XLA slices.
        q = lax.slice_in_dim(qkv, 0, d, axis=2)
        k = lax.slice_in_dim(qkv, d, 2 * d, axis=2)
        v = lax.slice_in_dim(qkv, 2 * d, 3 * d, axis=2)
        in_specs = [
            pl.BlockSpec((1, blk, d), lambda bi, qi: (bi, qi, 0)),
            pl.BlockSpec((1, t, d), lambda bi, qi: (bi, 0, 0)),
            pl.BlockSpec((1, t, d), lambda bi, qi: (bi, 0, 0)),
        ]
        args = (q, k, v)
    return pl.pallas_call(
        kern,
        grid=(b, n_q),
        in_specs=in_specs,
        out_specs=o_spec,
        out_shape=jax.ShapeDtypeStruct((b, t, d), qkv.dtype),
        compiler_params=pltpu.CompilerParams(
            dimension_semantics=("parallel", "parallel"),
            vmem_limit_bytes=VMEM_LIMIT),
    )(*args)


# ----------------------------- parameters ------------------------------

def init_params(key, cfg):
    d, v, c = cfg["emb_dim"], cfg["vocab_size"], cfg["context_length"]
    keys = iter(jax.random.split(key, 8 + N_LAYERS * 8))

    def nrm(shape):
        return (0.02 * jax.random.normal(next(keys), shape)).astype(jnp.float32)

    # Pre-pad the LM head to a lane-aligned vocab ONCE here (outside jit) so the forward pass
    # never re-pads the (d, vocab) weight.
    vp = v if (v % 128 == 0 or v < 128) else _round_up(v, 128)
    out_w = nrm((d, v))
    out_b = jnp.zeros((v,), jnp.float32)
    if vp != v:
        out_w = jnp.pad(out_w, ((0, 0), (0, vp - v)))
        out_b = jnp.pad(out_b, (0, vp - v))

    params = {
        "tok_emb": nrm((v, d)),
        "pos_emb": nrm((c, d)),
        "ln_f_scale": jnp.ones((d,), jnp.float32),
        "ln_f_shift": jnp.zeros((d,), jnp.float32),
        "out_w": out_w,
        "out_b": out_b,
        "blocks": [],
    }
    for _ in range(N_LAYERS):
        params["blocks"].append({
            "ln1_scale": jnp.ones((d,), jnp.float32), "ln1_shift": jnp.zeros((d,), jnp.float32),
            # fused QKV projection; qkv_bias=False -> zero bias
            "w_qkv": nrm((d, 3 * d)), "b_qkv": jnp.zeros((3 * d,), jnp.float32),
            "ln2_scale": jnp.ones((d,), jnp.float32), "ln2_shift": jnp.zeros((d,), jnp.float32),
            "w1": nrm((d, 4 * d)), "b1": jnp.zeros((4 * d,), jnp.float32),
            "w2": nrm((4 * d, d)), "b2": jnp.zeros((d,), jnp.float32),
        })
    return params


# ----------------------------- forward pass ------------------------------

def gpt_forward(params, tokens, cfg):
    b, t = tokens.shape
    d, h = cfg["emb_dim"], cfg["n_heads"]
    vocab = cfg["vocab_size"]

    # embedding lookup stays in XLA (gather glue); the tok+pos add is fused into the first LN.
    tok = params["tok_emb"][tokens].reshape(b * t, d)
    pos = jnp.broadcast_to(params["pos_emb"][:t], (b, t, d)).reshape(b * t, d)
    # dropout layers are identity (eval / drop_rate=0.0 semantics)

    # lazy residual: x = res + delta is materialized inside the fused add+LayerNorm kernel
    res, delta = tok, pos
    for blk_p in params["blocks"]:
        # --- attention sub-block ---
        x, hin = pallas_add_layernorm(res, delta, blk_p["ln1_scale"], blk_p["ln1_shift"])
        qkv = pallas_linear(hin, blk_p["w_qkv"], blk_p["b_qkv"])          # (B*T, 3D) fused QKV
        ctx = pallas_attention(qkv.reshape(b, t, 3 * d), h).reshape(b * t, d)

        # --- feed-forward sub-block (residual add fused into LN2) ---
        x, hin = pallas_add_layernorm(x, ctx, blk_p["ln2_scale"], blk_p["ln2_shift"])
        hmid = pallas_linear(hin, blk_p["w1"], blk_p["b1"], activation="gelu")
        ffn = pallas_linear(hmid, blk_p["w2"], blk_p["b2"])
        res, delta = x, ffn                                                # add fused into next LN

    _, xf = pallas_add_layernorm(res, delta, params["ln_f_scale"], params["ln_f_shift"])
    logits = pallas_linear(xf, params["out_w"], params["out_b"])           # LM head
    if logits.shape[1] != vocab:                                           # drop vocab padding
        logits = logits[:, :vocab]
    return logits.reshape(b, t, vocab)


# ----------------------------- main ------------------------------

if __name__ == "__main__":
    cfg = dict(vocab_size=128, context_length=16, emb_dim=32,
               n_heads=4, drop_rate=0.0, qkv_bias=False)

    key = jax.random.PRNGKey(0)
    pkey, xkey = jax.random.split(key)
    params = init_params(pkey, cfg)

    batch, seq = 2, 8
    tokens = jax.random.randint(xkey, (batch, seq), 0, cfg["vocab_size"], dtype=jnp.int32)

    fwd = jax.jit(functools.partial(gpt_forward, cfg=cfg))
    logits = fwd(params, tokens)
    jax.block_until_ready(logits)

    assert logits.shape == (batch, seq, cfg["vocab_size"])
    assert logits.dtype == jnp.float32
    print("KERNEL_OK")
</pallas_src>

<mosaic_0001>
module attributes {stable_mosaic.version = 11 : i64} {
  func.func @linear_fullk_kernel(%arg0: i32, %arg1: i32, %arg2: memref<8x32xf32, #tpu.memory_space<vmem>>, %arg3: memref<32x96xf32, #tpu.memory_space<vmem>>, %arg4: memref<1x96xf32, #tpu.memory_space<vmem>>, %arg5: memref<8x96xf32, #tpu.memory_space<vmem>>) attributes {dimension_semantics = [#tpu.dimension_semantics<parallel>, #tpu.dimension_semantics<parallel>], iteration_bounds = array<i64: 2, 1>, scalar_prefetch = 0 : i64, scratch_operands = 0 : i64, tpu.core_type = #tpu.core_type<tc>, window_params = [{transform_indices = @transform_0, window_bounds = array<i64: 8, 32>}, {transform_indices = @transform_1, window_bounds = array<i64: 32, 96>}, {transform_indices = @transform_2, window_bounds = array<i64: 1, 96>}, {transform_indices = @transform_3, window_bounds = array<i64: 8, 96>}]} {
    %c0 = arith.constant 0 : index
    %c0_0 = arith.constant 0 : index
    %0 = vector.load %arg2[%c0, %c0_0] : memref<8x32xf32, #tpu.memory_space<vmem>>, vector<8x32xf32>
    %c0_1 = arith.constant 0 : index
    %c0_2 = arith.constant 0 : index
    %1 = vector.load %arg3[%c0_1, %c0_2] : memref<32x96xf32, #tpu.memory_space<vmem>>, vector<32x96xf32>
    %cst = arith.constant dense<0.000000e+00> : vector<8x96xf32>
    %2 = tpu.matmul %0, %1, %cst {dimension_numbers = #tpu.dot_dimension_numbers<[1], [0], [0], [1], [0, 0, 1, 1], [], []>} : vector<8x32xf32>, vector<32x96xf32>, vector<8x96xf32> -> vector<8x96xf32>
    %c0_3 = arith.constant 0 : index
    %c0_4 = arith.constant 0 : index
    %3 = vector.load %arg4[%c0_3, %c0_4] : memref<1x96xf32, #tpu.memory_space<vmem>>, vector<1x96xf32>
    %4 = vector.broadcast %3 : vector<1x96xf32> to vector<8x96xf32>
    %5 = arith.addf %2, %4 : vector<8x96xf32>
    %c0_5 = arith.constant 0 : index
    %c0_6 = arith.constant 0 : index
    %6 = vector.load %arg5[%c0_5, %c0_6] : memref<8x96xf32, #tpu.memory_space<vmem>>, vector<8x96xf32>
    tpu.vector_store %arg5[%c0_5, %c0_6], %5 {strides = array<i32>} : memref<8x96xf32, #tpu.memory_space<vmem>>, vector<8x96xf32>,
    return
  }
  func.func @transform_0(%arg0: i32, %arg1: i32) -> (i32, i32) {
    %c0_i32 = arith.constant 0 : i32
    %c0_i32_0 = arith.constant 0 : i32
    return %arg0, %c0_i32 : i32, i32
  }
  func.func @transform_1(%arg0: i32, %arg1: i32) -> (i32, i32) {
    %c0_i32 = arith.constant 0 : i32
    %c0_i32_0 = arith.constant 0 : i32
    return %c0_i32, %arg1 : i32, i32
  }
  func.func @transform_2(%arg0: i32, %arg1: i32) -> (i32, i32) {
    %c0_i32 = arith.constant 0 : i32
    %c0_i32_0 = arith.constant 0 : i32
    return %c0_i32, %arg1 : i32, i32
  }
  func.func @transform_3(%arg0: i32, %arg1: i32) -> (i32, i32) {
    %c0_i32 = arith.constant 0 : i32
    return %arg0, %arg1 : i32, i32
  }
}

module attributes {stable_mosaic.version = 11 : i64} {
  func.func @add_layernorm_kernel(%arg0: i32, %arg1: memref<8x32xf32, #tpu.memory_space<vmem>>, %arg2: memref<8x32xf32, #tpu.memory_space<vmem>>, %arg3: memref<1x32xf32, #tpu.memory_space<vmem>>, %arg4: memref<1x32xf32, #tpu.memory_space<vmem>>, %arg5: memref<8x32xf32, #tpu.memory_space<vmem>>, %arg6: memref<8x32xf32, #tpu.memory_space<vmem>>) attributes {dimension_semantics = [#tpu.dimension_semantics<parallel>], iteration_bounds = array<i64: 2>, scalar_prefetch = 0 : i64, scratch_operands = 0 : i64, tpu.core_type = #tpu.core_type<tc>, window_params = [{transform_indices = @transform_0, window_bounds = array<i64: 8, 32>}, {transform_indices = @transform_1, window_bounds = array<i64: 8, 32>}, {pipeline_mode = #tpu.pipeline_mode<synchronous>, transform_indices = @transform_2, window_bounds = array<i64: 1, 32>}, {pipeline_mode = #tpu.pipeline_mode<synchronous>, transform_indices = @transform_3, window_bounds = array<i64: 1, 32>}, {transform_indices = @transform_4, window_bounds = array<i64: 8, 32>}, {transform_indices = @transform_5, window_bounds = array<i64: 8, 32>}]} {
    %c0 = arith.constant 0 : index
    %c0_0 = arith.constant 0 : index
    %0 = vector.load %arg1[%c0, %c0_0] : memref<8x32xf32, #tpu.memory_space<vmem>>, vector<8x32xf32>
    %c0_1 = arith.constant 0 : index
    %c0_2 = arith.constant 0 : index
    %1 = vector.load %arg2[%c0_1, %c0_2] : memref<8x32xf32, #tpu.memory_space<vmem>>, vector<8x32xf32>
    %2 = arith.addf %0, %1 : vector<8x32xf32>
    %c0_3 = arith.constant 0 : index
    %c0_4 = arith.constant 0 : index
    %3 = vector.load %arg5[%c0_3, %c0_4] : memref<8x32xf32, #tpu.memory_space<vmem>>, vector<8x32xf32>
    tpu.vector_store %arg5[%c0_3, %c0_4], %2 {strides = array<i32>} : memref<8x32xf32, #tpu.memory_space<vmem>>, vector<8x32xf32>,
    %cst = arith.constant dense<0.000000e+00> : vector<8xf32>
    %4 = vector.multi_reduction <add>, %2, %cst [1] : vector<8x32xf32> to vector<8xf32>
    %5 = vector.shape_cast %4 : vector<8xf32> to vector<8x1xf32>
    %cst_5 = arith.constant 3.200000e+01 : f32
    %6 = vector.broadcast %cst_5 : f32 to vector<8x1xf32>
    %7 = arith.divf %5, %6 : vector<8x1xf32>
    %8 = vector.broadcast %7 : vector<8x1xf32> to vector<8x32xf32>
    %9 = arith.subf %2, %8 : vector<8x32xf32>
    %10 = arith.mulf %9, %9 : vector<8x32xf32>
    %cst_6 = arith.constant dense<0.000000e+00> : vector<8xf32>
    %11 = vector.multi_reduction <add>, %10, %cst_6 [1] : vector<8x32xf32> to vector<8xf32>
    %12 = vector.shape_cast %11 : vector<8xf32> to vector<8x1xf32>
    %cst_7 = arith.constant 0.0322580636 : f32
    %13 = vector.broadcast %cst_7 : f32 to vector<8x1xf32>
    %14 = arith.mulf %12, %13 : vector<8x1xf32>
    %15 = vector.broadcast %7 : vector<8x1xf32> to vector<8x32xf32>
    %16 = arith.subf %2, %15 : vector<8x32xf32>
    %cst_8 = arith.constant 9.99999974E-6 : f32
    %17 = vector.broadcast %cst_8 : f32 to vector<8x1xf32>
    %18 = arith.addf %14, %17 : vector<8x1xf32>
    %19 = math.rsqrt %18 : vector<8x1xf32>
    %20 = vector.broadcast %19 : vector<8x1xf32> to vector<8x32xf32>
    %21 = arith.mulf %16, %20 : vector<8x32xf32>
    %c0_9 = arith.constant 0 : index
    %c0_10 = arith.constant 0 : index
    %22 = vector.load %arg3[%c0_9, %c0_10] : memref<1x32xf32, #tpu.memory_space<vmem>>, vector<1x32xf32>
    %23 = vector.broadcast %22 : vector<1x32xf32> to vector<8x32xf32>
    %24 = arith.mulf %23, %21 : vector<8x32xf32>
    %c0_11 = arith.constant 0 : index
    %c0_12 = arith.constant 0 : index
    %25 = vector.load %arg4[%c0_11, %c0_12] : memref<1x32xf32, #tpu.memory_space<vmem>>, vector<1x32xf32>
    %26 = vector.broadcast %25 : vector<1x32xf32> to vector<8x32xf32>
    %27 = arith.addf %24, %26 : vector<8x32xf32>
    %c0_13 = arith.constant 0 : index
    %c0_14 = arith.constant 0 : index
    %28 = vector.load %arg6[%c0_13, %c0_14] : memref<8x32xf32, #tpu.memory_space<vmem>>, vector<8x32xf32>
    tpu.vector_store %arg6[%c0_13, %c0_14], %27 {strides = array<i32>} : memref<8x32xf32, #tpu.memory_space<vmem>>, vector<8x32xf32>,
    return
  }
  func.func @transform_0(%arg0: i32) -> (i32, i32) {
    %c0_i32 = arith.constant 0 : i32
    %c0_i32_0 = arith.constant 0 : i32
    return %arg0, %c0_i32 : i32, i32
  }
  func.func @transform_1(%arg0: i32) -> (i32, i32) {
    %c0_i32 = arith.constant 0 : i32
    %c0_i32_0 = arith.constant 0 : i32
    return %arg0, %c0_i32 : i32, i32
  }
  func.func @transform_2(%arg0: i32) -> (i32, i32) {
    %c0_i32 = arith.constant 0 : i32
    %c0_i32_0 = arith.constant 0 : i32
    %c0_i32_1 = arith.constant 0 : i32
    return %c0_i32, %c0_i32_0 : i32, i32
  }
  func.func @transform_3(%arg0: i32) -> (i32, i32) {
    %c0_i32 = arith.constant 0 : i32
    %c0_i32_0 = arith.constant 0 : i32
    %c0_i32_1 = arith.constant 0 : i32
    return %c0_i32, %c0_i32_0 : i32, i32
  }
  func.func @transform_4(%arg0: i32) -> (i32, i32) {
    %c0_i32 = arith.constant 0 : i32
    %c0_i32_0 = arith.constant 0 : i32
    return %arg0, %c0_i32 : i32, i32
  }
  func.func @transform_5(%arg0: i32) -> (i32, i32) {
    %c0_i32 = arith.constant 0 : i32
    %c0_i32_0 = arith.constant 0 : i32
    return %arg0, %c0_i32 : i32, i32
  }
}

module attributes {stable_mosaic.version = 11 : i64} {
  func.func @attention_kernel(%arg0: i32, %arg1: i32, %arg2: memref<1x8x32xf32, #tpu.memory_space<vmem>>, %arg3: memref<1x8x32xf32, #tpu.memory_space<vmem>>, %arg4: memref<1x8x32xf32, #tpu.memory_space<vmem>>, %arg5: memref<1x8x32xf32, #tpu.memory_space<vmem>>) attributes {dimension_semantics = [#tpu.dimension_semantics<parallel>, #tpu.dimension_semantics<parallel>], iteration_bounds = array<i64: 2, 1>, scalar_prefetch = 0 : i64, scratch_operands = 0 : i64, tpu.core_type = #tpu.core_type<tc>, window_params = [{transform_indices = @transform_0, window_bounds = array<i64: 1, 8, 32>}, {transform_indices = @transform_1, window_bounds = array<i64: 1, 8, 32>}, {transform_indices = @transform_2, window_bounds = array<i64: 1, 8, 32>}, {transform_indices = @transform_3, window_bounds = array<i64: 1, 8, 32>}]} {
    %c0 = arith.constant 0 : index
    %c0_0 = arith.constant 0 : index
    %c0_1 = arith.constant 0 : index
    %0 = vector.load %arg2[%c0, %c0_0, %c0_1] : memref<1x8x32xf32, #tpu.memory_space<vmem>>, vector<1x8x32xf32>
    %1 = vector.shape_cast %0 : vector<1x8x32xf32> to vector<8x32xf32>
    %cst = arith.constant 0.353553385 : f32
    %2 = vector.broadcast %cst : f32 to vector<8x32xf32>
    %3 = arith.mulf %1, %2 : vector<8x32xf32>
    %4 = tpu.iota {dimensions = array<i32: 0>} : vector<8x8xi32>
    %5 = tpu.iota {dimensions = array<i32: 1>} : vector<8x8xi32>
    %6 = arith.cmpi sle, %5, %4 : vector<8x8xi32>
    %7 = vector.extract_strided_slice %3 {offsets = [0, 0], sizes = [8, 8], strides = [1, 1]} : vector<8x32xf32> to vector<8x8xf32>
    %cst_2 = arith.constant 0xFF800000 : f32
    %8 = vector.broadcast %cst_2 : f32 to vector<8x1xf32>
    %cst_3 = arith.constant 0.000000e+00 : f32
    %9 = vector.broadcast %cst_3 : f32 to vector<8x1xf32>
    %cst_4 = arith.constant 0.000000e+00 : f32
    %10 = vector.broadcast %cst_4 : f32 to vector<8x8xf32>
    %c0_i32 = arith.constant 0 : i32
    %11 = arith.subi %arg1, %c0_i32 : i32
    %12 = arith.addi %c0_i32, %11 : i32
    %c1_i32 = arith.constant 1 : i32
    %13:3 = scf.for %arg6 = %c0_i32 to %12 step %c1_i32 iter_args(%arg7 = %8, %arg8 = %9, %arg9 = %10) -> (vector<8x1xf32>, vector<8x1xf32>, vector<8x8xf32>)  : i32 {
      %c8_i32_68 = arith.constant 8 : i32
      %167 = arith.muli %arg6, %c8_i32_68 : i32
      %168 = tpu.assume_multiple %167, 8 : i32
      %c0_69 = arith.constant 0 : index
      %169 = arith.index_cast %168 : i32 to index
      %c0_70 = arith.constant 0 : index
      %170 = vector.load %arg3[%c0_69, %169, %c0_70] : memref<1x8x32xf32, #tpu.memory_space<vmem>>, vector<1x8x8xf32>
      %171 = vector.shape_cast %170 : vector<1x8x8xf32> to vector<8x8xf32>
      %c0_71 = arith.constant 0 : index
      %172 = arith.index_cast %168 : i32 to index
      %c0_72 = arith.constant 0 : index
      %173 = vector.load %arg4[%c0_71, %172, %c0_72] : memref<1x8x32xf32, #tpu.memory_space<vmem>>, vector<1x8x8xf32>
      %174 = vector.shape_cast %173 : vector<1x8x8xf32> to vector<8x8xf32>
      %cst_73 = arith.constant dense<0.000000e+00> : vector<8x8xf32>
      %175 = tpu.matmul %7, %171, %cst_73 {dimension_numbers = #tpu.dot_dimension_numbers<[1], [1], [0], [0], [0, 0, 1, 0], [], []>} : vector<8x8xf32>, vector<8x8xf32>, vector<8x8xf32> -> vector<8x8xf32>
      %cst_74 = arith.constant dense<0xFF800000> : vector<8xf32>
      %176 = vector.multi_reduction <maximumf>, %175, %cst_74 [1] : vector<8x8xf32> to vector<8xf32>
      %177 = vector.shape_cast %176 : vector<8xf32> to vector<8x1xf32>
      %178 = arith.maximumf %arg7, %177 : vector<8x1xf32>
      %179 = arith.subf %arg7, %178 : vector<8x1xf32>
      %180 = math.exp %179 : vector<8x1xf32>
      %181 = vector.broadcast %178 : vector<8x1xf32> to vector<8x8xf32>
      %182 = arith.subf %175, %181 : vector<8x8xf32>
      %183 = math.exp %182 : vector<8x8xf32>
      %184 = arith.mulf %180, %arg8 : vector<8x1xf32>
      %cst_75 = arith.constant dense<0.000000e+00> : vector<8xf32>
      %185 = vector.multi_reduction <add>, %183, %cst_75 [1] : vector<8x8xf32> to vector<8xf32>
      %186 = vector.shape_cast %185 : vector<8xf32> to vector<8x1xf32>
      %187 = arith.addf %184, %186 : vector<8x1xf32>
      %188 = vector.broadcast %180 : vector<8x1xf32> to vector<8x8xf32>
      %189 = arith.mulf %188, %arg9 : vector<8x8xf32>
      %cst_76 = arith.constant dense<0.000000e+00> : vector<8x8xf32>
      %190 = tpu.matmul %183, %174, %cst_76 {dimension_numbers = #tpu.dot_dimension_numbers<[1], [0], [0], [1], [0, 0, 1, 1], [], []>} : vector<8x8xf32>, vector<8x8xf32>, vector<8x8xf32> -> vector<8x8xf32>
      %191 = arith.addf %189, %190 : vector<8x8xf32>
      scf.yield %178, %187, %191 : vector<8x1xf32>, vector<8x1xf32>, vector<8x8xf32>
    }
    %c8_i32 = arith.constant 8 : i32
    %14 = arith.muli %arg1, %c8_i32 : i32
    %15 = tpu.assume_multiple %14, 8 : i32
    %c0_5 = arith.constant 0 : index
    %16 = arith.index_cast %15 : i32 to index
    %c0_6 = arith.constant 0 : index
    %17 = vector.load %arg3[%c0_5, %16, %c0_6] : memref<1x8x32xf32, #tpu.memory_space<vmem>>, vector<1x8x8xf32>
    %18 = vector.shape_cast %17 : vector<1x8x8xf32> to vector<8x8xf32>
    %c0_7 = arith.constant 0 : index
    %19 = arith.index_cast %15 : i32 to index
    %c0_8 = arith.constant 0 : index
    %20 = vector.load %arg4[%c0_7, %19, %c0_8] : memref<1x8x32xf32, #tpu.memory_space<vmem>>, vector<1x8x8xf32>
    %21 = vector.shape_cast %20 : vector<1x8x8xf32> to vector<8x8xf32>
    %cst_9 = arith.constant dense<0.000000e+00> : vector<8x8xf32>
    %22 = tpu.matmul %7, %18, %cst_9 {dimension_numbers = #tpu.dot_dimension_numbers<[1], [1], [0], [0], [0, 0, 1, 0], [], []>} : vector<8x8xf32>, vector<8x8xf32>, vector<8x8xf32> -> vector<8x8xf32>
    %cst_10 = arith.constant 0xFF800000 : f32
    %23 = vector.broadcast %cst_10 : f32 to vector<8x8xf32>
    %24 = arith.select %6, %22, %23 : vector<8x8xi1>, vector<8x8xf32>
    %cst_11 = arith.constant dense<0xFF800000> : vector<8xf32>
    %25 = vector.multi_reduction <maximumf>, %24, %cst_11 [1] : vector<8x8xf32> to vector<8xf32>
    %26 = vector.shape_cast %25 : vector<8xf32> to vector<8x1xf32>
    %27 = arith.maximumf %13#0, %26 : vector<8x1xf32>
    %28 = arith.subf %13#0, %27 : vector<8x1xf32>
    %29 = math.exp %28 : vector<8x1xf32>
    %30 = vector.broadcast %27 : vector<8x1xf32> to vector<8x8xf32>
    %31 = arith.subf %24, %30 : vector<8x8xf32>
    %32 = math.exp %31 : vector<8x8xf32>
    %33 = arith.mulf %29, %13#1 : vector<8x1xf32>
    %cst_12 = arith.constant dense<0.000000e+00> : vector<8xf32>
    %34 = vector.multi_reduction <add>, %32, %cst_12 [1] : vector<8x8xf32> to vector<8xf32>
    %35 = vector.shape_cast %34 : vector<8xf32> to vector<8x1xf32>
    %36 = arith.addf %33, %35 : vector<8x1xf32>
    %37 = vector.broadcast %29 : vector<8x1xf32> to vector<8x8xf32>
    %38 = arith.mulf %37, %13#2 : vector<8x8xf32>
    %cst_13 = arith.constant dense<0.000000e+00> : vector<8x8xf32>
    %39 = tpu.matmul %32, %21, %cst_13 {dimension_numbers = #tpu.dot_dimension_numbers<[1], [0], [0], [1], [0, 0, 1, 1], [], []>} : vector<8x8xf32>, vector<8x8xf32>, vector<8x8xf32> -> vector<8x8xf32>
    %40 = arith.addf %38, %39 : vector<8x8xf32>
    %41 = tpu.reciprocal %36 {approx = true} : vector<8x1xf32> -> vector<8x1xf32>
    %42 = vector.broadcast %41 : vector<8x1xf32> to vector<8x8xf32>
    %43 = arith.mulf %40, %42 : vector<8x8xf32>
    %c0_14 = arith.constant 0 : index
    %c0_15 = arith.constant 0 : index
    %c0_16 = arith.constant 0 : index
    %44 = vector.load %arg5[%c0_14, %c0_15, %c0_16] : memref<1x8x32xf32, #tpu.memory_space<vmem>>, vector<1x8x8xf32>
    %45 = vector.shape_cast %44 : vector<1x8x8xf32> to vector<8x8xf32>
    %46 = vector.shape_cast %43 : vector<8x8xf32> to vector<1x8x8xf32>
    tpu.vector_store %arg5[%c0_14, %c0_15, %c0_16], %46 {strides = array<i32>} : memref<1x8x32xf32, #tpu.memory_space<vmem>>, vector<1x8x8xf32>,
    %47 = vector.extract_strided_slice %3 {offsets = [0, 8], sizes = [8, 8], strides = [1, 1]} : vector<8x32xf32> to vector<8x8xf32>
    %cst_17 = arith.constant 0xFF800000 : f32
    %48 = vector.broadcast %cst_17 : f32 to vector<8x1xf32>
    %cst_18 = arith.constant 0.000000e+00 : f32
    %49 = vector.broadcast %cst_18 : f32 to vector<8x1xf32>
    %cst_19 = arith.constant 0.000000e+00 : f32
    %50 = vector.broadcast %cst_19 : f32 to vector<8x8xf32>
    %c0_i32_20 = arith.constant 0 : i32
    %51 = arith.subi %arg1, %c0_i32_20 : i32
    %52 = arith.addi %c0_i32_20, %51 : i32
    %c1_i32_21 = arith.constant 1 : i32
    %53:3 = scf.for %arg6 = %c0_i32_20 to %52 step %c1_i32_21 iter_args(%arg7 = %48, %arg8 = %49, %arg9 = %50) -> (vector<8x1xf32>, vector<8x1xf32>, vector<8x8xf32>)  : i32 {
      %c8_i32_68 = arith.constant 8 : i32
      %167 = arith.muli %arg6, %c8_i32_68 : i32
      %168 = tpu.assume_multiple %167, 8 : i32
      %c0_69 = arith.constant 0 : index
      %169 = arith.index_cast %168 : i32 to index
      %c8_70 = arith.constant 8 : index
      %170 = vector.load %arg3[%c0_69, %169, %c8_70] : memref<1x8x32xf32, #tpu.memory_space<vmem>>, vector<1x8x8xf32>
      %171 = vector.shape_cast %170 : vector<1x8x8xf32> to vector<8x8xf32>
      %c0_71 = arith.constant 0 : index
      %172 = arith.index_cast %168 : i32 to index
      %c8_72 = arith.constant 8 : index
      %173 = vector.load %arg4[%c0_71, %172, %c8_72] : memref<1x8x32xf32, #tpu.memory_space<vmem>>, vector<1x8x8xf32>
      %174 = vector.shape_cast %173 : vector<1x8x8xf32> to vector<8x8xf32>
      %cst_73 = arith.constant dense<0.000000e+00> : vector<8x8xf32>
      %175 = tpu.matmul %47, %171, %cst_73 {dimension_numbers = #tpu.dot_dimension_numbers<[1], [1], [0], [0], [0, 0, 1, 0], [], []>} : vector<8x8xf32>, vector<8x8xf32>, vector<8x8xf32> -> vector<8x8xf32>
      %cst_74 = arith.constant dense<0xFF800000> : vector<8xf32>
      %176 = vector.multi_reduction <maximumf>, %175, %cst_74 [1] : vector<8x8xf32> to vector<8xf32>
      %177 = vector.shape_cast %176 : vector<8xf32> to vector<8x1xf32>
      %178 = arith.maximumf %arg7, %177 : vector<8x1xf32>
      %179 = arith.subf %arg7, %178 : vector<8x1xf32>
      %180 = math.exp %179 : vector<8x1xf32>
      %181 = vector.broadcast %178 : vector<8x1xf32> to vector<8x8xf32>
      %182 = arith.subf %175, %181 : vector<8x8xf32>
      %183 = math.exp %182 : vector<8x8xf32>
      %184 = arith.mulf %180, %arg8 : vector<8x1xf32>
      %cst_75 = arith.constant dense<0.000000e+00> : vector<8xf32>
      %185 = vector.multi_reduction <add>, %183, %cst_75 [1] : vector<8x8xf32> to vector<8xf32>
      %186 = vector.shape_cast %185 : vector<8xf32> to vector<8x1xf32>
      %187 = arith.addf %184, %186 : vector<8x1xf32>
      %188 = vector.broadcast %180 : vector<8x1xf32> to vector<8x8xf32>
      %189 = arith.mulf %188, %arg9 : vector<8x8xf32>
      %cst_76 = arith.constant dense<0.000000e+00> : vector<8x8xf32>
      %190 = tpu.matmul %183, %174, %cst_76 {dimension_numbers = #tpu.dot_dimension_numbers<[1], [0], [0], [1], [0, 0, 1, 1], [], []>} : vector<8x8xf32>, vector<8x8xf32>, vector<8x8xf32> -> vector<8x8xf32>
      %191 = arith.addf %189, %190 : vector<8x8xf32>
      scf.yield %178, %187, %191 : vector<8x1xf32>, vector<8x1xf32>, vector<8x8xf32>
    }
    %c8_i32_22 = arith.constant 8 : i32
    %54 = arith.muli %arg1, %c8_i32_22 : i32
    %55 = tpu.assume_multiple %54, 8 : i32
    %c0_23 = arith.constant 0 : index
    %56 = arith.index_cast %55 : i32 to index
    %c8 = arith.constant 8 : index
    %57 = vector.load %arg3[%c0_23, %56, %c8] : memref<1x8x32xf32, #tpu.memory_space<vmem>>, vector<1x8x8xf32>
    %58 = vector.shape_cast %57 : vector<1x8x8xf32> to vector<8x8xf32>
    %c0_24 = arith.constant 0 : index
    %59 = arith.index_cast %55 : i32 to index
    %c8_25 = arith.constant 8 : index
    %60 = vector.load %arg4[%c0_24, %59, %c8_25] : memref<1x8x32xf32, #tpu.memory_space<vmem>>, vector<1x8x8xf32>
    %61 = vector.shape_cast %60 : vector<1x8x8xf32> to vector<8x8xf32>
    %cst_26 = arith.constant dense<0.000000e+00> : vector<8x8xf32>
    %62 = tpu.matmul %47, %58, %cst_26 {dimension_numbers = #tpu.dot_dimension_numbers<[1], [1], [0], [0], [0, 0, 1, 0], [], []>} : vector<8x8xf32>, vector<8x8xf32>, vector<8x8xf32> -> vector<8x8xf32>
    %cst_27 = arith.constant 0xFF800000 : f32
    %63 = vector.broadcast %cst_27 : f32 to vector<8x8xf32>
    %64 = arith.select %6, %62, %63 : vector<8x8xi1>, vector<8x8xf32>
    %cst_28 = arith.constant dense<0xFF800000> : vector<8xf32>
    %65 = vector.multi_reduction <maximumf>, %64, %cst_28 [1] : vector<8x8xf32> to vector<8xf32>
    %66 = vector.shape_cast %65 : vector<8xf32> to vector<8x1xf32>
    %67 = arith.maximumf %53#0, %66 : vector<8x1xf32>
    %68 = arith.subf %53#0, %67 : vector<8x1xf32>
    %69 = math.exp %68 : vector<8x1xf32>
    %70 = vector.broadcast %67 : vector<8x1xf32> to vector<8x8xf32>
    %71 = arith.subf %64, %70 : vector<8x8xf32>
    %72 = math.exp %71 : vector<8x8xf32>
    %73 = arith.mulf %69, %53#1 : vector<8x1xf32>
    %cst_29 = arith.constant dense<0.000000e+00> : vector<8xf32>
    %74 = vector.multi_reduction <add>, %72, %cst_29 [1] : vector<8x8xf32> to vector<8xf32>
    %75 = vector.shape_cast %74 : vector<8xf32> to vector<8x1xf32>
    %76 = arith.addf %73, %75 : vector<8x1xf32>
    %77 = vector.broadcast %69 : vector<8x1xf32> to vector<8x8xf32>
    %78 = arith.mulf %77, %53#2 : vector<8x8xf32>
    %cst_30 = arith.constant dense<0.000000e+00> : vector<8x8xf32>
    %79 = tpu.matmul %72, %61, %cst_30 {dimension_numbers = #tpu.dot_dimension_numbers<[1], [0], [0], [1], [0, 0, 1, 1], [], []>} : vector<8x8xf32>, vector<8x8xf32>, vector<8x8xf32> -> vector<8x8xf32>
    %80 = arith.addf %78, %79 : vector<8x8xf32>
    %81 = tpu.reciprocal %76 {approx = true} : vector<8x1xf32> -> vector<8x1xf32>
    %82 = vector.broadcast %81 : vector<8x1xf32> to vector<8x8xf32>
    %83 = arith.mulf %80, %82 : vector<8x8xf32>
    %c0_31 = arith.constant 0 : index
    %c0_32 = arith.constant 0 : index
    %c8_33 = arith.constant 8 : index
    %84 = vector.load %arg5[%c0_31, %c0_32, %c8_33] : memref<1x8x32xf32, #tpu.memory_space<vmem>>, vector<1x8x8xf32>
    %85 = vector.shape_cast %84 : vector<1x8x8xf32> to vector<8x8xf32>
    %86 = vector.shape_cast %83 : vector<8x8xf32> to vector<1x8x8xf32>
    tpu.vector_store %arg5[%c0_31, %c0_32, %c8_33], %86 {strides = array<i32>} : memref<1x8x32xf32, #tpu.memory_space<vmem>>, vector<1x8x8xf32>,
    %87 = vector.extract_strided_slice %3 {offsets = [0, 16], sizes = [8, 8], strides = [1, 1]} : vector<8x32xf32> to vector<8x8xf32>
    %cst_34 = arith.constant 0xFF800000 : f32
    %88 = vector.broadcast %cst_34 : f32 to vector<8x1xf32>
    %cst_35 = arith.constant 0.000000e+00 : f32
    %89 = vector.broadcast %cst_35 : f32 to vector<8x1xf32>
    %cst_36 = arith.constant 0.000000e+00 : f32
    %90 = vector.broadcast %cst_36 : f32 to vector<8x8xf32>
    %c0_i32_37 = arith.constant 0 : i32
    %91 = arith.subi %arg1, %c0_i32_37 : i32
    %92 = arith.addi %c0_i32_37, %91 : i32
    %c1_i32_38 = arith.constant 1 : i32
    %93:3 = scf.for %arg6 = %c0_i32_37 to %92 step %c1_i32_38 iter_args(%arg7 = %88, %arg8 = %89, %arg9 = %90) -> (vector<8x1xf32>, vector<8x1xf32>, vector<8x8xf32>)  : i32 {
      %c8_i32_68 = arith.constant 8 : i32
      %167 = arith.muli %arg6, %c8_i32_68 : i32
      %168 = tpu.assume_multiple %167, 8 : i32
      %c0_69 = arith.constant 0 : index
      %169 = arith.index_cast %168 : i32 to index
      %c16_70 = arith.constant 16 : index
      %170 = vector.load %arg3[%c0_69, %169, %c16_70] : memref<1x8x32xf32, #tpu.memory_space<vmem>>, vector<1x8x8xf32>
      %171 = vector.shape_cast %170 : vector<1x8x8xf32> to vector<8x8xf32>
      %c0_71 = arith.constant 0 : index
      %172 = arith.index_cast %168 : i32 to index
      %c16_72 = arith.constant 16 : index
      %173 = vector.load %arg4[%c0_71, %172, %c16_72] : memref<1x8x32xf32, #tpu.memory_space<vmem>>, vector<1x8x8xf32>
      %174 = vector.shape_cast %173 : vector<1x8x8xf32> to vector<8x8xf32>
      %cst_73 = arith.constant dense<0.000000e+00> : vector<8x8xf32>
      %175 = tpu.matmul %87, %171, %cst_73 {dimension_numbers = #tpu.dot_dimension_numbers<[1], [1], [0], [0], [0, 0, 1, 0], [], []>} : vector<8x8xf32>, vector<8x8xf32>, vector<8x8xf32> -> vector<8x8xf32>
      %cst_74 = arith.constant dense<0xFF800000> : vector<8xf32>
      %176 = vector.multi_reduction <maximumf>, %175, %cst_74 [1] : vector<8x8xf32> to vector<8xf32>
      %177 = vector.shape_cast %176 : vector<8xf32> to vector<8x1xf32>
      %178 = arith.maximumf %arg7, %177 : vector<8x1xf32>
      %179 = arith.subf %arg7, %178 : vector<8x1xf32>
      %180 = math.exp %179 : vector<8x1xf32>
      %181 = vector.broadcast %178 : vector<8x1xf32> to vector<8x8xf32>
      %182 = arith.subf %175, %181 : vector<8x8xf32>
      %183 = math.exp %182 : vector<8x8xf32>
      %184 = arith.mulf %180, %arg8 : vector<8x1xf32>
      %cst_75 = arith.constant dense<0.000000e+00> : vector<8xf32>
      %185 = vector.multi_reduction <add>, %183, %cst_75 [1] : vector<8x8xf32> to vector<8xf32>
      %186 = vector.shape_cast %185 : vector<8xf32> to vector<8x1xf32>
      %187 = arith.addf %184, %186 : vector<8x1xf32>
      %188 = vector.broadcast %180 : vector<8x1xf32> to vector<8x8xf32>
      %189 = arith.mulf %188, %arg9 : vector<8x8xf32>
      %cst_76 = arith.constant dense<0.000000e+00> : vector<8x8xf32>
      %190 = tpu.matmul %183, %174, %cst_76 {dimension_numbers = #tpu.dot_dimension_numbers<[1], [0], [0], [1], [0, 0, 1, 1], [], []>} : vector<8x8xf32>, vector<8x8xf32>, vector<8x8xf32> -> vector<8x8xf32>
      %191 = arith.addf %189, %190 : vector<8x8xf32>
      scf.yield %178, %187, %191 : vector<8x1xf32>, vector<8x1xf32>, vector<8x8xf32>
    }
    %c8_i32_39 = arith.constant 8 : i32
    %94 = arith.muli %arg1, %c8_i32_39 : i32
    %95 = tpu.assume_multiple %94, 8 : i32
    %c0_40 = arith.constant 0 : index
    %96 = arith.index_cast %95 : i32 to index
    %c16 = arith.constant 16 : index
    %97 = vector.load %arg3[%c0_40, %96, %c16] : memref<1x8x32xf32, #tpu.memory_space<vmem>>, vector<1x8x8xf32>
    %98 = vector.shape_cast %97 : vector<1x8x8xf32> to vector<8x8xf32>
    %c0_41 = arith.constant 0 : index
    %99 = arith.index_cast %95 : i32 to index
    %c16_42 = arith.constant 16 : index
    %100 = vector.load %arg4[%c0_41, %99, %c16_42] : memref<1x8x32xf32, #tpu.memory_space<vmem>>, vector<1x8x8xf32>
    %101 = vector.shape_cast %100 : vector<1x8x8xf32> to vector<8x8xf32>
    %cst_43 = arith.constant dense<0.000000e+00> : vector<8x8xf32>
    %102 = tpu.matmul %87, %98, %cst_43 {dimension_numbers = #tpu.dot_dimension_numbers<[1], [1], [0], [0], [0, 0, 1, 0], [], []>} : vector<8x8xf32>, vector<8x8xf32>, vector<8x8xf32> -> vector<8x8xf32>
    %cst_44 = arith.constant 0xFF800000 : f32
    %103 = vector.broadcast %cst_44 : f32 to vector<8x8xf32>
    %104 = arith.select %6, %102, %103 : vector<8x8xi1>, vector<8x8xf32>
    %cst_45 = arith.constant dense<0xFF800000> : vector<8xf32>
    %105 = vector.multi_reduction <maximumf>, %104, %cst_45 [1] : vector<8x8xf32> to vector<8xf32>
    %106 = vector.shape_cast %105 : vector<8xf32> to vector<8x1xf32>
    %107 = arith.maximumf %93#0, %106 : vector<8x1xf32>
    %108 = arith.subf %93#0, %107 : vector<8x1xf32>
    %109 = math.exp %108 : vector<8x1xf32>
    %110 = vector.broadcast %107 : vector<8x1xf32> to vector<8x8xf32>
    %111 = arith.subf %104, %110 : vector<8x8xf32>
    %112 = math.exp %111 : vector<8x8xf32>
    %113 = arith.mulf %109, %93#1 : vector<8x1xf32>
    %cst_46 = arith.constant dense<0.000000e+00> : vector<8xf32>
    %114 = vector.multi_reduction <add>, %112, %cst_46 [1] : vector<8x8xf32> to vector<8xf32>
    %115 = vector.shape_cast %114 : vector<8xf32> to vector<8x1xf32>
    %116 = arith.addf %113, %115 : vector<8x1xf32>
    %117 = vector.broadcast %109 : vector<8x1xf32> to vector<8x8xf32>
    %118 = arith.mulf %117, %93#2 : vector<8x8xf32>
    %cst_47 = arith.constant dense<0.000000e+00> : vector<8x8xf32>
    %119 = tpu.matmul %112, %101, %cst_47 {dimension_numbers = #tpu.dot_dimension_numbers<[1], [0], [0], [1], [0, 0, 1, 1], [], []>} : vector<8x8xf32>, vector<8x8xf32>, vector<8x8xf32> -> vector<8x8xf32>
    %120 = arith.addf %118, %119 : vector<8x8xf32>
    %121 = tpu.reciprocal %116 {approx = true} : vector<8x1xf32> -> vector<8x1xf32>
    %122 = vector.broadcast %121 : vector<8x1xf32> to vector<8x8xf32>
    %123 = arith.mulf %120, %122 : vector<8x8xf32>
    %c0_48 = arith.constant 0 : index
    %c0_49 = arith.constant 0 : index
    %c16_50 = arith.constant 16 : index
    %124 = vector.load %arg5[%c0_48, %c0_49, %c16_50] : memref<1x8x32xf32, #tpu.memory_space<vmem>>, vector<1x8x8xf32>
    %125 = vector.shape_cast %124 : vector<1x8x8xf32> to vector<8x8xf32>
    %126 = vector.shape_cast %123 : vector<8x8xf32> to vector<1x8x8xf32>
    tpu.vector_store %arg5[%c0_48, %c0_49, %c16_50], %126 {strides = array<i32>} : memref<1x8x32xf32, #tpu.memory_space<vmem>>, vector<1x8x8xf32>,
    %127 = vector.extract_strided_slice %3 {offsets = [0, 24], sizes = [8, 8], strides = [1, 1]} : vector<8x32xf32> to vector<8x8xf32>
    %cst_51 = arith.constant 0xFF800000 : f32
    %128 = vector.broadcast %cst_51 : f32 to vector<8x1xf32>
    %cst_52 = arith.constant 0.000000e+00 : f32
    %129 = vector.broadcast %cst_52 : f32 to vector<8x1xf32>
    %cst_53 = arith.constant 0.000000e+00 : f32
    %130 = vector.broadcast %cst_53 : f32 to vector<8x8xf32>
    %c0_i32_54 = arith.constant 0 : i32
    %131 = arith.subi %arg1, %c0_i32_54 : i32
    %132 = arith.addi %c0_i32_54, %131 : i32
    %c1_i32_55 = arith.constant 1 : i32
    %133:3 = scf.for %arg6 = %c0_i32_54 to %132 step %c1_i32_55 iter_args(%arg7 = %128, %arg8 = %129, %arg9 = %130) -> (vector<8x1xf32>, vector<8x1xf32>, vector<8x8xf32>)  : i32 {
      %c8_i32_68 = arith.constant 8 : i32
      %167 = arith.muli %arg6, %c8_i32_68 : i32
      %168 = tpu.assume_multiple %167, 8 : i32
      %c0_69 = arith.constant 0 : index
      %169 = arith.index_cast %168 : i32 to index
      %c24_70 = arith.constant 24 : index
      %170 = vector.load %arg3[%c0_69, %169, %c24_70] : memref<1x8x32xf32, #tpu.memory_space<vmem>>, vector<1x8x8xf32>
      %171 = vector.shape_cast %170 : vector<1x8x8xf32> to vector<8x8xf32>
      %c0_71 = arith.constant 0 : index
      %172 = arith.index_cast %168 : i32 to index
      %c24_72 = arith.constant 24 : index
      %173 = vector.load %arg4[%c0_71, %172, %c24_72] : memref<1x8x32xf32, #tpu.memory_space<vmem>>, vector<1x8x8xf32>
      %174 = vector.shape_cast %173 : vector<1x8x8xf32> to vector<8x8xf32>
      %cst_73 = arith.constant dense<0.000000e+00> : vector<8x8xf32>
      %175 = tpu.matmul %127, %171, %cst_73 {dimension_numbers = #tpu.dot_dimension_numbers<[1], [1], [0], [0], [0, 0, 1, 0], [], []>} : vector<8x8xf32>, vector<8x8xf32>, vector<8x8xf32> -> vector<8x8xf32>
      %cst_74 = arith.constant dense<0xFF800000> : vector<8xf32>
      %176 = vector.multi_reduction <maximumf>, %175, %cst_74 [1] : vector<8x8xf32> to vector<8xf32>
      %177 = vector.shape_cast %176 : vector<8xf32> to vector<8x1xf32>
      %178 = arith.maximumf %arg7, %177 : vector<8x1xf32>
      %179 = arith.subf %arg7, %178 : vector<8x1xf32>
      %180 = math.exp %179 : vector<8x1xf32>
      %181 = vector.broadcast %178 : vector<8x1xf32> to vector<8x8xf32>
      %182 = arith.subf %175, %181 : vector<8x8xf32>
      %183 = math.exp %182 : vector<8x8xf32>
      %184 = arith.mulf %180, %arg8 : vector<8x1xf32>
      %cst_75 = arith.constant dense<0.000000e+00> : vector<8xf32>
      %185 = vector.multi_reduction <add>, %183, %cst_75 [1] : vector<8x8xf32> to vector<8xf32>
      %186 = vector.shape_cast %185 : vector<8xf32> to vector<8x1xf32>
      %187 = arith.addf %184, %186 : vector<8x1xf32>
      %188 = vector.broadcast %180 : vector<8x1xf32> to vector<8x8xf32>
      %189 = arith.mulf %188, %arg9 : vector<8x8xf32>
      %cst_76 = arith.constant dense<0.000000e+00> : vector<8x8xf32>
      %190 = tpu.matmul %183, %174, %cst_76 {dimension_numbers = #tpu.dot_dimension_numbers<[1], [0], [0], [1], [0, 0, 1, 1], [], []>} : vector<8x8xf32>, vector<8x8xf32>, vector<8x8xf32> -> vector<8x8xf32>
      %191 = arith.addf %189, %190 : vector<8x8xf32>
      scf.yield %178, %187, %191 : vector<8x1xf32>, vector<8x1xf32>, vector<8x8xf32>
    }
    %c8_i32_56 = arith.constant 8 : i32
    %134 = arith.muli %arg1, %c8_i32_56 : i32
    %135 = tpu.assume_multiple %134, 8 : i32
    %c0_57 = arith.constant 0 : index
    %136 = arith.index_cast %135 : i32 to index
    %c24 = arith.constant 24 : index
    %137 = vector.load %arg3[%c0_57, %136, %c24] : memref<1x8x32xf32, #tpu.memory_space<vmem>>, vector<1x8x8xf32>
    %138 = vector.shape_cast %137 : vector<1x8x8xf32> to vector<8x8xf32>
    %c0_58 = arith.constant 0 : index
    %139 = arith.index_cast %135 : i32 to index
    %c24_59 = arith.constant 24 : index
    %140 = vector.load %arg4[%c0_58, %139, %c24_59] : memref<1x8x32xf32, #tpu.memory_space<vmem>>, vector<1x8x8xf32>
    %141 = vector.shape_cast %140 : vector<1x8x8xf32> to vector<8x8xf32>
    %cst_60 = arith.constant dense<0.000000e+00> : vector<8x8xf32>
    %142 = tpu.matmul %127, %138, %cst_60 {dimension_numbers = #tpu.dot_dimension_numbers<[1], [1], [0], [0], [0, 0, 1, 0], [], []>} : vector<8x8xf32>, vector<8x8xf32>, vector<8x8xf32> -> vector<8x8xf32>
    %cst_61 = arith.constant 0xFF800000 : f32
    %143 = vector.broadcast %cst_61 : f32 to vector<8x8xf32>
    %144 = arith.select %6, %142, %143 : vector<8x8xi1>, vector<8x8xf32>
    %cst_62 = arith.constant dense<0xFF800000> : vector<8xf32>
    %145 = vector.multi_reduction <maximumf>, %144, %cst_62 [1] : vector<8x8xf32> to vector<8xf32>
    %146 = vector.shape_cast %145 : vector<8xf32> to vector<8x1xf32>
    %147 = arith.maximumf %133#0, %146 : vector<8x1xf32>
    %148 = arith.subf %133#0, %147 : vector<8x1xf32>
    %149 = math.exp %148 : vector<8x1xf32>
    %150 = vector.broadcast %147 : vector<8x1xf32> to vector<8x8xf32>
    %151 = arith.subf %144, %150 : vector<8x8xf32>
    %152 = math.exp %151 : vector<8x8xf32>
    %153 = arith.mulf %149, %133#1 : vector<8x1xf32>
    %cst_63 = arith.constant dense<0.000000e+00> : vector<8xf32>
    %154 = vector.multi_reduction <add>, %152, %cst_63 [1] : vector<8x8xf32> to vector<8xf32>
    %155 = vector.shape_cast %154 : vector<8xf32> to vector<8x1xf32>
    %156 = arith.addf %153, %155 : vector<8x1xf32>
    %157 = vector.broadcast %149 : vector<8x1xf32> to vector<8x8xf32>
    %158 = arith.mulf %157, %133#2 : vector<8x8xf32>
    %cst_64 = arith.constant dense<0.000000e+00> : vector<8x8xf32>
    %159 = tpu.matmul %152, %141, %cst_64 {dimension_numbers = #tpu.dot_dimension_numbers<[1], [0], [0], [1], [0, 0, 1, 1], [], []>} : vector<8x8xf32>, vector<8x8xf32>, vector<8x8xf32> -> vector<8x8xf32>
    %160 = arith.addf %158, %159 : vector<8x8xf32>
    %161 = tpu.reciprocal %156 {approx = true} : vector<8x1xf32> -> vector<8x1xf32>
    %162 = vector.broadcast %161 : vector<8x1xf32> to vector<8x8xf32>
    %163 = arith.mulf %160, %162 : vector<8x8xf32>
    %c0_65 = arith.constant 0 : index
    %c0_66 = arith.constant 0 : index
    %c24_67 = arith.constant 24 : index
    %164 = vector.load %arg5[%c0_65, %c0_66, %c24_67] : memref<1x8x32xf32, #tpu.memory_space<vmem>>, vector<1x8x8xf32>
    %165 = vector.shape_cast %164 : vector<1x8x8xf32> to vector<8x8xf32>
    %166 = vector.shape_cast %163 : vector<8x8xf32> to vector<1x8x8xf32>
    tpu.vector_store %arg5[%c0_65, %c0_66, %c24_67], %166 {strides = array<i32>} : memref<1x8x32xf32, #tpu.memory_space<vmem>>, vector<1x8x8xf32>,
    return
  }
  func.func @transform_0(%arg0: i32, %arg1: i32) -> (i32, i32, i32) {
    %c0_i32 = arith.constant 0 : i32
    %c0_i32_0 = arith.constant 0 : i32
    return %arg0, %arg1, %c0_i32 : i32, i32, i32
  }
  func.func @transform_1(%arg0: i32, %arg1: i32) -> (i32, i32, i32) {
    %c0_i32 = arith.constant 0 : i32
    %c0_i32_0 = arith.constant 0 : i32
    %c0_i32_1 = arith.constant 0 : i32
    return %arg0, %c0_i32, %c0_i32_0 : i32, i32, i32
  }
  func.func @transform_2(%arg0: i32, %arg1: i32) -> (i32, i32, i32) {
    %c0_i32 = arith.constant 0 : i32
    %c0_i32_0 = arith.constant 0 : i32
    %c0_i32_1 = arith.constant 0 : i32
    return %arg0, %c0_i32, %c0_i32_0 : i32, i32, i32
  }
  func.func @transform_3(%arg0: i32, %arg1: i32) -> (i32, i32, i32) {
    %c0_i32 = arith.constant 0 : i32
    %c0_i32_0 = arith.constant 0 : i32
    return %arg0, %arg1, %c0_i32 : i32, i32, i32
  }
}

module attributes {stable_mosaic.version = 11 : i64} {
  func.func @linear_fullk_kernel(%arg0: i32, %arg1: i32, %arg2: memref<8x32xf32, #tpu.memory_space<vmem>>, %arg3: memref<32x128xf32, #tpu.memory_space<vmem>>, %arg4: memref<1x128xf32, #tpu.memory_space<vmem>>, %arg5: memref<8x128xf32, #tpu.memory_space<vmem>>) attributes {dimension_semantics = [#tpu.dimension_semantics<parallel>, #tpu.dimension_semantics<parallel>], iteration_bounds = array<i64: 2, 1>, scalar_prefetch = 0 : i64, scratch_operands = 0 : i64, tpu.core_type = #tpu.core_type<tc>, window_params = [{transform_indices = @transform_0, window_bounds = array<i64: 8, 32>}, {transform_indices = @transform_1, window_bounds = array<i64: 32, 128>}, {transform_indices = @transform_2, window_bounds = array<i64: 1, 128>}, {transform_indices = @transform_3, window_bounds = array<i64: 8, 128>}]} {
    %c0 = arith.constant 0 : index
    %c0_0 = arith.constant 0 : index
    %0 = vector.load %arg2[%c0, %c0_0] : memref<8x32xf32, #tpu.memory_space<vmem>>, vector<8x32xf32>
    %c0_1 = arith.constant 0 : index
    %c0_2 = arith.constant 0 : index
    %1 = vector.load %arg3[%c0_1, %c0_2] : memref<32x128xf32, #tpu.memory_space<vmem>>, vector<32x128xf32>
    %cst = arith.constant dense<0.000000e+00> : vector<8x128xf32>
    %2 = tpu.matmul %0, %1, %cst {dimension_numbers = #tpu.dot_dimension_numbers<[1], [0], [0], [1], [0, 0, 1, 1], [], []>} : vector<8x32xf32>, vector<32x128xf32>, vector<8x128xf32> -> vector<8x128xf32>
    %c0_3 = arith.constant 0 : index
    %c0_4 = arith.constant 0 : index
    %3 = vector.load %arg4[%c0_3, %c0_4] : memref<1x128xf32, #tpu.memory_space<vmem>>, vector<1x128xf32>
    %4 = vector.broadcast %3 : vector<1x128xf32> to vector<8x128xf32>
    %5 = arith.addf %2, %4 : vector<8x128xf32>
    %cst_5 = arith.constant 5.000000e-01 : f32
    %6 = vector.broadcast %cst_5 : f32 to vector<8x128xf32>
    %7 = arith.mulf %6, %5 : vector<8x128xf32>
    %8 = arith.mulf %5, %5 : vector<8x128xf32>
    %9 = arith.mulf %8, %5 : vector<8x128xf32>
    %cst_6 = arith.constant 4.471500e-02 : f32
    %10 = vector.broadcast %cst_6 : f32 to vector<8x128xf32>
    %11 = arith.mulf %10, %9 : vector<8x128xf32>
    %12 = arith.addf %5, %11 : vector<8x128xf32>
    %cst_7 = arith.constant 0.797884583 : f32
    %13 = vector.broadcast %cst_7 : f32 to vector<8x128xf32>
    %14 = arith.mulf %13, %12 : vector<8x128xf32>
    %15 = math.tanh %14 : vector<8x128xf32>
    %cst_8 = arith.constant 1.000000e+00 : f32
    %16 = vector.broadcast %cst_8 : f32 to vector<8x128xf32>
    %17 = arith.addf %16, %15 : vector<8x128xf32>
    %18 = arith.mulf %7, %17 : vector<8x128xf32>
    %c0_9 = arith.constant 0 : index
    %c0_10 = arith.constant 0 : index
    %19 = vector.load %arg5[%c0_9, %c0_10] : memref<8x128xf32, #tpu.memory_space<vmem>>, vector<8x128xf32>
    tpu.vector_store %arg5[%c0_9, %c0_10], %18 {strides = array<i32>} : memref<8x128xf32, #tpu.memory_space<vmem>>, vector<8x128xf32>,
    return
  }
  func.func @transform_0(%arg0: i32, %arg1: i32) -> (i32, i32) {
    %c0_i32 = arith.constant 0 : i32
    %c0_i32_0 = arith.constant 0 : i32
    return %arg0, %c0_i32 : i32, i32
  }
  func.func @transform_1(%arg0: i32, %arg1: i32) -> (i32, i32) {
    %c0_i32 = arith.constant 0 : i32
    %c0_i32_0 = arith.constant 0 : i32
    return %c0_i32, %arg1 : i32, i32
  }
  func.func @transform_2(%arg0: i32, %arg1: i32) -> (i32, i32) {
    %c0_i32 = arith.constant 0 : i32
    %c0_i32_0 = arith.constant 0 : i32
    return %c0_i32, %arg1 : i32, i32
  }
  func.func @transform_3(%arg0: i32, %arg1: i32) -> (i32, i32) {
    %c0_i32 = arith.constant 0 : i32
    return %arg0, %arg1 : i32, i32
  }
}

module attributes {stable_mosaic.version = 11 : i64} {
  func.func @add_layernorm_kernel(%arg0: i32, %arg1: memref<8x32xf32, #tpu.memory_space<vmem>>, %arg2: memref<8x32xf32, #tpu.memory_space<vmem>>, %arg3: memref<1x32xf32, #tpu.memory_space<vmem>>, %arg4: memref<1x32xf32, #tpu.memory_space<vmem>>, %arg5: memref<8x32xf32, #tpu.memory_space<vmem>>, %arg6: memref<8x32xf32, #tpu.memory_space<vmem>>) attributes {dimension_semantics = [#tpu.dimension_semantics<parallel>], iteration_bounds = array<i64: 2>, scalar_prefetch = 0 : i64, scratch_operands = 0 : i64, tpu.core_type = #tpu.core_type<tc>, window_params = [{transform_indices = @transform_0, window_bounds = array<i64: 8, 32>}, {transform_indices = @transform_1, window_bounds = array<i64: 8, 32>}, {pipeline_mode = #tpu.pipeline_mode<synchronous>, transform_indices = @transform_2, window_bounds = array<i64: 1, 32>}, {pipeline_mode = #tpu.pipeline_mode<synchronous>, transform_indices = @transform_3, window_bounds = array<i64: 1, 32>}, {transform_indices = @transform_4, window_bounds = array<i64: 8, 32>}, {transform_indices = @transform_5, window_bounds = array<i64: 8, 32>}]} {
    %c0 = arith.constant 0 : index
    %c0_0 = arith.constant 0 : index
    %0 = vector.load %arg1[%c0, %c0_0] : memref<8x32xf32, #tpu.memory_space<vmem>>, vector<8x32xf32>
    %c0_1 = arith.constant 0 : index
    %c0_2 = arith.constant 0 : index
    %1 = vector.load %arg2[%c0_1, %c0_2] : memref<8x32xf32, #tpu.memory_space<vmem>>, vector<8x32xf32>
    %2 = arith.addf %0, %1 : vector<8x32xf32>
    %c0_3 = arith.constant 0 : index
    %c0_4 = arith.constant 0 : index
    %3 = vector.load %arg5[%c0_3, %c0_4] : memref<8x32xf32, #tpu.memory_space<vmem>>, vector<8x32xf32>
    tpu.vector_store %arg5[%c0_3, %c0_4], %2 {strides = array<i32>} : memref<8x32xf32, #tpu.memory_space<vmem>>, vector<8x32xf32>,
    %cst = arith.constant dense<0.000000e+00> : vector<8xf32>
    %4 = vector.multi_reduction <add>, %2, %cst [1] : vector<8x32xf32> to vector<8xf32>
    %5 = vector.shape_cast %4 : vector<8xf32> to vector<8x1xf32>
    %cst_5 = arith.constant 3.200000e+01 : f32
    %6 = vector.broadcast %cst_5 : f32 to vector<8x1xf32>
    %7 = arith.divf %5, %6 : vector<8x1xf32>
    %8 = vector.broadcast %7 : vector<8x1xf32> to vector<8x32xf32>
    %9 = arith.subf %2, %8 : vector<8x32xf32>
    %10 = arith.mulf %9, %9 : vector<8x32xf32>
    %cst_6 = arith.constant dense<0.000000e+00> : vector<8xf32>
    %11 = vector.multi_reduction <add>, %10, %cst_6 [1] : vector<8x32xf32> to vector<8xf32>
    %12 = vector.shape_cast %11 : vector<8xf32> to vector<8x1xf32>
    %cst_7 = arith.constant 0.0322580636 : f32
    %13 = vector.broadcast %cst_7 : f32 to vector<8x1xf32>
    %14 = arith.mulf %12, %13 : vector<8x1xf32>
    %15 = vector.broadcast %7 : vector<8x1xf32> to vector<8x32xf32>
    %16 = arith.subf %2, %15 : vector<8x32xf32>
    %cst_8 = arith.constant 9.99999974E-6 : f32
    %17 = vector.broadcast %cst_8 : f32 to vector<8x1xf32>
    %18 = arith.addf %14, %17 : vector<8x1xf32>
    %19 = math.rsqrt %18 : vector<8x1xf32>
    %20 = vector.broadcast %19 : vector<8x1xf32> to vector<8x32xf32>
    %21 = arith.mulf %16, %20 : vector<8x32xf32>
    %c0_9 = arith.constant 0 : index
    %c0_10 = arith.constant 0 : index
    %22 = vector.load %arg3[%c0_9, %c0_10] : memref<1x32xf32, #tpu.memory_space<vmem>>, vector<1x32xf32>
    %23 = vector.broadcast %22 : vector<1x32xf32> to vector<8x32xf32>
    %24 = arith.mulf %23, %21 : vector<8x32xf32>
    %c0_11 = arith.constant 0 : index
    %c0_12 = arith.constant 0 : index
    %25 = vector.load %arg4[%c0_11, %c0_12] : memref<1x32xf32, #tpu.memory_space<vmem>>, vector<1x32xf32>
    %26 = vector.broadcast %25 : vector<1x32xf32> to vector<8x32xf32>
    %27 = arith.addf %24, %26 : vector<8x32xf32>
    %c0_13 = arith.constant 0 : index
    %c0_14 = arith.constant 0 : index
    %28 = vector.load %arg6[%c0_13, %c0_14] : memref<8x32xf32, #tpu.memory_space<vmem>>, vector<8x32xf32>
    tpu.vector_store %arg6[%c0_13, %c0_14], %27 {strides = array<i32>} : memref<8x32xf32, #tpu.memory_space<vmem>>, vector<8x32xf32>,
    return
  }
  func.func @transform_0(%arg0: i32) -> (i32, i32) {
    %c0_i32 = arith.constant 0 : i32
    %c0_i32_0 = arith.constant 0 : i32
    return %arg0, %c0_i32 : i32, i32
  }
  func.func @transform_1(%arg0: i32) -> (i32, i32) {
    %c0_i32 = arith.constant 0 : i32
    %c0_i32_0 = arith.constant 0 : i32
    return %arg0, %c0_i32 : i32, i32
  }
  func.func @transform_2(%arg0: i32) -> (i32, i32) {
    %c0_i32 = arith.constant 0 : i32
    %c0_i32_0 = arith.constant 0 : i32
    %c0_i32_1 = arith.constant 0 : i32
    return %c0_i32, %c0_i32_0 : i32, i32
  }
  func.func @transform_3(%arg0: i32) -> (i32, i32) {
    %c0_i32 = arith.constant 0 : i32
    %c0_i32_0 = arith.constant 0 : i32
    %c0_i32_1 = arith.constant 0 : i32
    return %c0_i32, %c0_i32_0 : i32, i32
  }
  func.func @transform_4(%arg0: i32) -> (i32, i32) {
    %c0_i32 = arith.constant 0 : i32
    %c0_i32_0 = arith.constant 0 : i32
    return %arg0, %c0_i32 : i32, i32
  }
  func.func @transform_5(%arg0: i32) -> (i32, i32) {
    %c0_i32 = arith.constant 0 : i32
    %c0_i32_0 = arith.constant 0 : i32
    return %arg0, %c0_i32 : i32, i32
  }
}

module attributes {stable_mosaic.version = 11 : i64} {
  func.func @linear_fullk_kernel(%arg0: i32, %arg1: i32, %arg2: memref<8x32xf32, #tpu.memory_space<vmem>>, %arg3: memref<32x128xf32, #tpu.memory_space<vmem>>, %arg4: memref<1x128xf32, #tpu.memory_space<vmem>>, %arg5: memref<8x128xf32, #tpu.memory_space<vmem>>) attributes {dimension_semantics = [#tpu.dimension_semantics<parallel>, #tpu.dimension_semantics<parallel>], iteration_bounds = array<i64: 2, 1>, scalar_prefetch = 0 : i64, scratch_operands = 0 : i64, tpu.core_type = #tpu.core_type<tc>, window_params = [{transform_indices = @transform_0, window_bounds = array<i64: 8, 32>}, {transform_indices = @transform_1, window_bounds = array<i64: 32, 128>}, {transform_indices = @transform_2, window_bounds = array<i64: 1, 128>}, {transform_indices = @transform_3, window_bounds = array<i64: 8, 128>}]} {
    %c0 = arith.constant 0 : index
    %c0_0 = arith.constant 0 : index
    %0 = vector.load %arg2[%c0, %c0_0] : memref<8x32xf32, #tpu.memory_space<vmem>>, vector<8x32xf32>
    %c0_1 = arith.constant 0 : index
    %c0_2 = arith.constant 0 : index
    %1 = vector.load %arg3[%c0_1, %c0_2] : memref<32x128xf32, #tpu.memory_space<vmem>>, vector<32x128xf32>
    %cst = arith.constant dense<0.000000e+00> : vector<8x128xf32>
    %2 = tpu.matmul %0, %1, %cst {dimension_numbers = #tpu.dot_dimension_numbers<[1], [0], [0], [1], [0, 0, 1, 1], [], []>} : vector<8x32xf32>, vector<32x128xf32>, vector<8x128xf32> -> vector<8x128xf32>
    %c0_3 = arith.constant 0 : index
    %c0_4 = arith.constant 0 : index
    %3 = vector.load %arg4[%c0_3, %c0_4] : memref<1x128xf32, #tpu.memory_space<vmem>>, vector<1x128xf32>
    %4 = vector.broadcast %3 : vector<1x128xf32> to vector<8x128xf32>
    %5 = arith.addf %2, %4 : vector<8x128xf32>
    %c0_5 = arith.constant 0 : index
    %c0_6 = arith.constant 0 : index
    %6 = vector.load %arg5[%c0_5, %c0_6] : memref<8x128xf32, #tpu.memory_space<vmem>>, vector<8x128xf32>
    tpu.vector_store %arg5[%c0_5, %c0_6], %5 {strides = array<i32>} : memref<8x128xf32, #tpu.memory_space<vmem>>, vector<8x128xf32>,
    return
  }
  func.func @transform_0(%arg0: i32, %arg1: i32) -> (i32, i32) {
    %c0_i32 = arith.constant 0 : i32
    %c0_i32_0 = arith.constant 0 : i32
    return %arg0, %c0_i32 : i32, i32
  }
  func.func @transform_1(%arg0: i32, %arg1: i32) -> (i32, i32) {
    %c0_i32 = arith.constant 0 : i32
    %c0_i32_0 = arith.constant 0 : i32
    return %c0_i32, %arg1 : i32, i32
  }
  func.func @transform_2(%arg0: i32, %arg1: i32) -> (i32, i32) {
    %c0_i32 = arith.constant 0 : i32
    %c0_i32_0 = arith.constant 0 : i32
    return %c0_i32, %arg1 : i32, i32
  }
  func.func @transform_3(%arg0: i32, %arg1: i32) -> (i32, i32) {
    %c0_i32 = arith.constant 0 : i32
    return %arg0, %arg1 : i32, i32
  }
}

module attributes {stable_mosaic.version = 11 : i64} {
  func.func @linear_fullk_kernel(%arg0: i32, %arg1: i32, %arg2: memref<8x128xf32, #tpu.memory_space<vmem>>, %arg3: memref<128x32xf32, #tpu.memory_space<vmem>>, %arg4: memref<1x32xf32, #tpu.memory_space<vmem>>, %arg5: memref<8x32xf32, #tpu.memory_space<vmem>>) attributes {dimension_semantics = [#tpu.dimension_semantics<parallel>, #tpu.dimension_semantics<parallel>], iteration_bounds = array<i64: 2, 1>, scalar_prefetch = 0 : i64, scratch_operands = 0 : i64, tpu.core_type = #tpu.core_type<tc>, window_params = [{transform_indices = @transform_0, window_bounds = array<i64: 8, 128>}, {transform_indices = @transform_1, window_bounds = array<i64: 128, 32>}, {transform_indices = @transform_2, window_bounds = array<i64: 1, 32>}, {transform_indices = @transform_3, window_bounds = array<i64: 8, 32>}]} {
    %c0 = arith.constant 0 : index
    %c0_0 = arith.constant 0 : index
    %0 = vector.load %arg2[%c0, %c0_0] : memref<8x128xf32, #tpu.memory_space<vmem>>, vector<8x128xf32>
    %c0_1 = arith.constant 0 : index
    %c0_2 = arith.constant 0 : index
    %1 = vector.load %arg3[%c0_1, %c0_2] : memref<128x32xf32, #tpu.memory_space<vmem>>, vector<128x32xf32>
    %cst = arith.constant dense<0.000000e+00> : vector<8x32xf32>
    %2 = tpu.matmul %0, %1, %cst {dimension_numbers = #tpu.dot_dimension_numbers<[1], [0], [0], [1], [0, 0, 1, 1], [], []>} : vector<8x128xf32>, vector<128x32xf32>, vector<8x32xf32> -> vector<8x32xf32>
    %c0_3 = arith.constant 0 : index
    %c0_4 = arith.constant 0 : index
    %3 = vector.load %arg4[%c0_3, %c0_4] : memref<1x32xf32, #tpu.memory_space<vmem>>, vector<1x32xf32>
    %4 = vector.broadcast %3 : vector<1x32xf32> to vector<8x32xf32>
    %5 = arith.addf %2, %4 : vector<8x32xf32>
    %c0_5 = arith.constant 0 : index
    %c0_6 = arith.constant 0 : index
    %6 = vector.load %arg5[%c0_5, %c0_6] : memref<8x32xf32, #tpu.memory_space<vmem>>, vector<8x32xf32>
    tpu.vector_store %arg5[%c0_5, %c0_6], %5 {strides = array<i32>} : memref<8x32xf32, #tpu.memory_space<vmem>>, vector<8x32xf32>,
    return
  }
  func.func @transform_0(%arg0: i32, %arg1: i32) -> (i32, i32) {
    %c0_i32 = arith.constant 0 : i32
    %c0_i32_0 = arith.constant 0 : i32
    return %arg0, %c0_i32 : i32, i32
  }
  func.func @transform_1(%arg0: i32, %arg1: i32) -> (i32, i32) {
    %c0_i32 = arith.constant 0 : i32
    %c0_i32_0 = arith.constant 0 : i32
    return %c0_i32, %arg1 : i32, i32
  }
  func.func @transform_2(%arg0: i32, %arg1: i32) -> (i32, i32) {
    %c0_i32 = arith.constant 0 : i32
    %c0_i32_0 = arith.constant 0 : i32
    return %c0_i32, %arg1 : i32, i32
  }
  func.func @transform_3(%arg0: i32, %arg1: i32) -> (i32, i32) {
    %c0_i32 = arith.constant 0 : i32
    return %arg0, %arg1 : i32, i32
  }
}

</mosaic_0001>

<llo_original>
// kernel: gpt_forward.75
$region0: #{gpt_forward.75}
  #allocation0 [shape = 'u32[]', space=smem, size = 0x4, offset = 0x4, fixed_abs, tag = 'smem constant byte address 0x4 - core index']
  #allocation1 [shape = 'u32[144,128]{1,0:T(1,128)}', space=vmem, size = 0x12000, scoped, tag = 'internal scratch']
  %s0 = inlined_call_operand.vmem [shape: f32[16,32], index: 0, kind: input, shape index: {}]
  %s1 = inlined_call_operand.vmem [shape: f32[32,96], index: 1, kind: input, shape index: {}]
  %s2 = inlined_call_operand.vmem [shape: f32[1,96], index: 2, kind: input, shape index: {}]
  %s3 = inlined_call_operand.vmem [shape: f32[16,96], index: 3, kind: output, shape index: {}]
  %s4 = sld [smem:[#allocation0]]
  $region45: #{gpt_forward.75} parent=0
    _
  %s6 = ssub.s32 1, %s4
  %s7 = scalar_select 0, %s6, %s4
  loop: start=0, step=1, limit=4
  $region2: #{gpt_forward.75} parent=0 // loop_pre_header
    _
  $region3: #{gpt_forward.75} parent=0 // loop_header
    %s9 = sphi 0, %s13
    %p10 = scmp.ge.s32.totalorder %s9, 4
    %s16 = sphi 0, %s28
    %s17 = sphi 0, %s24
    %s18 = sphi 0, %s16
    %s19 = sphi 0, %s17
    %s20 = sphi 0, %s18
    %s21 = sphi 0, %s19
    %s31 = sphi 0, %s33
    %s34 = sphi 0, %s31
    %s35 = sphi 0, %s34
    %s51 = sphi 0, %s35
    %s57 = sphi 0, %s59
    %s60 = sphi 0, %s57
    %s61 = sphi 0, %s60
    %s77 = sphi 0, %s61
    %s83 = sphi 0, %s85
    %s86 = sphi 0, %s83
    %s87 = sphi 0, %s86
    %s103 = sphi 0, %s87
    %s111 = sphi 0, %s113
    %s114 = sphi 0, %s111
    %s115 = sphi 0, %s114
    %s131 = sphi 0, %s115
  $region4: #{gpt_forward.75} parent=0 // loop_header_branch
    %12 = sbr.rel (%p10) target = $region8
  $region5: #{gpt_forward.75} parent=0 // loop_body
    %s14 = ssub.s32 %s9, 1
    %s15 = ssub.s32 %s9, 2
    %s22 = sadd.s32 1, %s17
    %p23 = scmp.ge.s32.totalorder %s22, 1
    %s24 = scalar_select %p23, 0, %s22
    %s25 = sadd.s32 1, %s16
    %s26 = scalar_select %p23, %s25, %s16
    %p27 = scmp.ge.s32.totalorder %s26, 2
    %s28 = scalar_select %p27, 0, %s26
    %s29 = ssub.s32 %s16, %s28
    %p30 = scmp.eq.s32.totalorder %s29, 0
    %s32 = sadd.s32 %s31, 1
    %s33 = scalar_select %p30, %s31, %s32
    %p36 = pneg %p30
    %p37 = scmp.eq.s32.totalorder %s9, 1
    %p38 = por %p36, %p37
    %p39 = scmp.ne.s32.totalorder %s31, %s34
    %p40 = scmp.eq.s32.totalorder %s9, 0
    %p41 = por %p39, %p40
    %p42 = scmp.ne.s32.totalorder %s31, %s34
    %p43 = scmp.eq.s32.totalorder %s14, 1
    %p44 = por %p42, %p43
    %p45 = scmp.ne.s32.totalorder %s34, %s35
    %p46 = scmp.eq.s32.totalorder %s14, 0
    %p47 = por %p45, %p46
    %p48 = scmp.ne.s32.totalorder %s34, %s35
    %p49 = scmp.eq.s32.totalorder %s15, 1
    %p50 = por %p48, %p49
    %p52 = scmp.ne.s32.totalorder %s35, %s51
    %p53 = scmp.eq.s32.totalorder %s15, 0
    %p54 = por %p52, %p53
    %s55 = ssub.s32 %s17, %s24
    %p56 = scmp.eq.s32.totalorder %s55, 0
    %s58 = sadd.s32 %s57, 1
    %s59 = scalar_select %p56, %s57, %s58
    %p62 = pneg %p56
    %p63 = scmp.eq.s32.totalorder %s9, 1
    %p64 = por %p62, %p63
    %p65 = scmp.ne.s32.totalorder %s57, %s60
    %p66 = scmp.eq.s32.totalorder %s9, 0
    %p67 = por %p65, %p66
    %p68 = scmp.ne.s32.totalorder %s57, %s60
    %p69 = scmp.eq.s32.totalorder %s14, 1
    %p70 = por %p68, %p69
    %p71 = scmp.ne.s32.totalorder %s60, %s61
    %p72 = scmp.eq.s32.totalorder %s14, 0
    %p73 = por %p71, %p72
    %p74 = scmp.ne.s32.totalorder %s60, %s61
    %p75 = scmp.eq.s32.totalorder %s15, 1
    %p76 = por %p74, %p75
    %p78 = scmp.ne.s32.totalorder %s61, %s77
    %p79 = scmp.eq.s32.totalorder %s15, 0
    %p80 = por %p78, %p79
    %s81 = ssub.s32 %s17, %s24
    %p82 = scmp.eq.s32.totalorder %s81, 0
    %s84 = sadd.s32 %s83, 1
    %s85 = scalar_select %p82, %s83, %s84
    %p88 = pneg %p82
    %p89 = scmp.eq.s32.totalorder %s9, 1
    %p90 = por %p88, %p89
    %p91 = scmp.ne.s32.totalorder %s83, %s86
    %p92 = scmp.eq.s32.totalorder %s9, 0
    %p93 = por %p91, %p92
    %p94 = scmp.ne.s32.totalorder %s83, %s86
    %p95 = scmp.eq.s32.totalorder %s14, 1
    %p96 = por %p94, %p95
    %p97 = scmp.ne.s32.totalorder %s86, %s87
    %p98 = scmp.eq.s32.totalorder %s14, 0
    %p99 = por %p97, %p98
    %p100 = scmp.ne.s32.totalorder %s86, %s87
    %p101 = scmp.eq.s32.totalorder %s15, 1
    %p102 = por %p100, %p101
    %p104 = scmp.ne.s32.totalorder %s87, %s103
    %p105 = scmp.eq.s32.totalorder %s15, 0
    %p106 = por %p104, %p105
    %s107 = ssub.s32 %s16, %s28
    %s108 = ssub.s32 %s17, %s24
    %s109 = sor.u32 %s107, %s108
    %p110 = scmp.eq.s32.totalorder %s109, 0
    %s112 = sadd.s32 %s111, 1
    %s113 = scalar_select %p110, %s111, %s112
    %p116 = pneg %p110
    %p117 = scmp.eq.s32.totalorder %s9, 1
    %p118 = por %p116, %p117
    %p119 = scmp.ne.s32.totalorder %s111, %s114
    %p120 = scmp.eq.s32.totalorder %s9, 0
    %p121 = por %p119, %p120
    %p122 = scmp.ne.s32.totalorder %s111, %s114
    %p123 = scmp.eq.s32.totalorder %s14, 1
    %p124 = por %p122, %p123
    %p125 = scmp.ne.s32.totalorder %s114, %s115
    %p126 = scmp.eq.s32.totalorder %s14, 0
    %p127 = por %p125, %p126
    %p128 = scmp.ne.s32.totalorder %s114, %s115
    %p129 = scmp.eq.s32.totalorder %s15, 1
    %p130 = por %p128, %p129
    %p132 = scmp.ne.s32.totalorder %s115, %s131
    %p133 = scmp.eq.s32.totalorder %s15, 0
    %p134 = por %p132, %p133
    %p135 = scmp.le.s32.totalorder 1, %s9
    %p136 = scmp.lt.s32.totalorder %s9, 3
    %p137 = pnand %p135, %p136
    %p138 = pneg %p137
    // Predicated region
    $region9: #{gpt_forward.75} parent=5 // pred_check
      _
    $region10: #{gpt_forward.75} parent=5 // pred_check_branch
      %140 = sbr.rel (%p137) target = $region12
    $region11: #{gpt_forward.75} parent=5 // pred_region
      %s141 = ssub.s32 %s9, 1
      // Predicated region
      $region13: #{gpt_forward.75} parent=11 // pred_check
        %p142 = pneg %p73
      $region14: #{gpt_forward.75} parent=11 // pred_check_branch
        %144 = sbr.rel (%p142) target = $region16
      $region15: #{gpt_forward.75} parent=11 // pred_region
        %p145 = scmp.lt.s32.totalorder %s19, 0
        %s146 = scalar_select %p145, %s19, 0
        %s147 = smul.addr %s146, 8
        %s148 = scalar_lea.vmem %s1, %s147
      $region16: #{gpt_forward.75} parent=11 // pred_fallthru
        _
      // Predicated region
      $region17: #{gpt_forward.75} parent=11 // pred_check
        %p149 = pneg %p99
      $region18: #{gpt_forward.75} parent=11 // pred_check_branch
        %151 = sbr.rel (%p149) target = $region20
      $region19: #{gpt_forward.75} parent=11 // pred_region
        %p152 = scmp.lt.s32.totalorder %s19, 0
        %s153 = scalar_select %p152, %s19, 0
        %s154 = scalar_lea.vmem %s2, %s153
      $region20: #{gpt_forward.75} parent=11 // pred_fallthru
        _
    $region12: #{gpt_forward.75} parent=5 // pred_fallthru
      _
    %p155 = scmp.lt.s32.totalorder %s9, 2
    // Predicated region
    $region21: #{gpt_forward.75} parent=5 // pred_check
      %p156 = pneg %p155
    $region22: #{gpt_forward.75} parent=5 // pred_check_branch
      %158 = sbr.rel (%p156) target = $region24
    $region23: #{gpt_forward.75} parent=5 // pred_region
      // Predicated region
      $region25: #{gpt_forward.75} parent=23 // pred_check
        %p159 = pneg %p41
      $region26: #{gpt_forward.75} parent=23 // pred_check_branch
        %161 = sbr.rel (%p159) target = $region28
      $region27: #{gpt_forward.75} parent=23 // pred_region
        %p162 = scmp.lt.s32.totalorder %s16, 1
        %s163 = scalar_select %p162, %s16, 1
        %s164 = smul.addr %s163, 8
        %s165 = scalar_lea.vmem %s0, %s164
      $region28: #{gpt_forward.75} parent=23 // pred_fallthru
        _
    $region24: #{gpt_forward.75} parent=5 // pred_fallthru
      _
    %p166 = scmp.le.s32.totalorder 1, %s9
    %p167 = scmp.lt.s32.totalorder %s9, 3
    %p168 = pnand %p166, %p167
    %p169 = pneg %p168
    // Predicated region
    $region29: #{gpt_forward.75} parent=5 // pred_check
      _
    $region30: #{gpt_forward.75} parent=5 // pred_check_branch
      %171 = sbr.rel (%p168) target = $region32
    $region31: #{gpt_forward.75} parent=5 // pred_region
      %s172 = ssub.s32 %s9, 1
      %p173 = scmp.lt.s32.totalorder %s18, 1
      %s174 = scalar_select %p173, %s18, 1
      %s175 = smul.addr %s174, 8
      %s176 = scalar_lea.vmem %s0, %s175
      %p177 = pneg %p47
      %p178 = pneg %p44
      %p179 = scmp.lt.s32.totalorder %s19, 0
      %s180 = scalar_select %p179, %s19, 0
      %s181 = smul.addr %s180, 8
      %s182 = scalar_lea.vmem %s1, %s181
      %p183 = pneg %p73
      %p184 = pneg %p70
      %p185 = scmp.lt.s32.totalorder %s19, 0
      %s186 = scalar_select %p185, %s19, 0
      %s187 = scalar_lea.vmem %s2, %s186
      %p188 = pneg %p99
      %p189 = pneg %p96
      %p190 = pneg %p127
      %p191 = pneg %p124
      %p192 = scmp.lt.s32.totalorder %s18, 1
      %s193 = scalar_select %p192, %s18, 1
      %p194 = scmp.lt.s32.totalorder %s19, 0
      %s195 = scalar_select %p194, %s19, 0
      %s196 = sadd.s32 %s195, %s193
      %s197 = smul.addr %s196, 8
      %s198 = scalar_lea.vmem %s3, %s197
      %p199 = scmp.lt.s32.totalorder %s18, 1
      %s200 = scalar_select %p199, %s18, 1
      %s201 = smul.addr %s200, 8
      %s202 = scalar_lea.vmem %s0, %s201
      %p203 = scmp.lt.s32.totalorder %s19, 0
      %s204 = scalar_select %p203, %s19, 0
      %s205 = smul.addr %s204, 8
      %s206 = scalar_lea.vmem %s1, %s205
      %p207 = scmp.lt.s32.totalorder %s19, 0
      %s208 = scalar_select %p207, %s19, 0
      %s209 = scalar_lea.vmem %s2, %s208
      %p210 = scmp.lt.s32.totalorder %s18, 1
      %s211 = scalar_select %p210, %s18, 1
      %p212 = scmp.lt.s32.totalorder %s19, 0
      %s213 = scalar_select %p212, %s19, 0
      %s214 = sadd.s32 %s213, %s211
      %s215 = smul.addr %s214, 8
      %s216 = scalar_lea.vmem %s3, %s215
      %v217 = vld [vmem:[%s202] sm:$0xff]
      %v218 = vld [vmem:[%s206] sm:$0xff]
      %v219 = vld [vmem:[%s206 + $0x8] sm:$0xff]
      %v220 = vld [vmem:[%s206 + $0x10] sm:$0xff]
      %v221 = vld [vmem:[%s206 + $0x18] sm:$0xff]
      %v222 = vld [vmem:[%s209] sm:$0x1]
      %v224 = vlaneseq
      %v225 = vshrl.u32 %v224, 7
      %v226 = vsub.s32 0, %v225
      %v227 = vrot.slane %v222, %v226
      %vm229 = vcmask 261120
      %v231 = vsel %vm229, %v217, 0
      %233 = vmatprep.subr.mxu0 0.0
      %234 = vmatpush1.msra.mxu0 %v218
      %235 = vmatprep.subr.mxu0 0.0
      %236 = vmatpush1.msra.mxu0 %v219
      %237 = vmatprep.subr.mxu0 0.0
      %238 = vmatpush1.msra.mxu0 %v220
      %239 = vmatprep.subr.mxu0 0.0
      %240 = vmatpush1.msra.mxu0 %v221
      %241 = vmatprep.subr.mxu0 0.0
      %242 = vmatpush1.msra.mxu0 0.0
      %243 = vmatprep.subr.mxu0 0.0
      %244 = vmatpush1.msra.mxu0 0.0
      %245 = vmatprep.subr.mxu0 0.0
      %246 = vmatpush1.msra.mxu0 0.0
      %247 = vmatprep.subr.mxu0 0.0
      %248 = vmatpush1.msra.mxu0 0.0
      %249 = vmatprep.subr.mxu0 0.0
      %250 = vmatpush1.msra.mxu0 0.0
      %251 = vmatprep.subr.mxu0 0.0
      %252 = vmatpush1.msra.mxu0 0.0
      %253 = vmatprep.subr.mxu0 0.0
      %254 = vmatpush1.msra.mxu0 0.0
      %255 = vmatprep.subr.mxu0 0.0
      %256 = vmatpush1.msra.mxu0 0.0
      %257 = vmatprep.subr.mxu0 0.0
      %258 = vmatpush1.msra.mxu0 0.0
      %259 = vmatprep.subr.mxu0 0.0
      %260 = vmatpush1.msra.mxu0 0.0
      %261 = vmatprep.subr.mxu0 0.0
      %262 = vmatpush1.msra.mxu0 0.0
      %263 = vmatprep.subr.mxu0 0.0
      %264 = vmatpush1.msra.mxu0 0.0
      %265 = vmatprep.subr.mxu0 0.0
      %266 = vmatpush1.msra.mxu0 0.0
      %267 = vmatprep.subr.mxu0 0.0
      %268 = vmatpush1.msra.mxu0 0.0
      %269 = vmatprep.subr.mxu0 0.0
      %270 = vmatpush1.msra.mxu0 0.0
      %271 = vmatprep.subr.mxu0 0.0
      %272 = vmatpush1.msra.mxu0 0.0
      %273 = vmatprep.subr.mxu0 0.0
      %274 = vmatpush1.msra.mxu0 0.0
      %275 = vmatprep.subr.mxu0 0.0
      %276 = vmatpush1.msra.mxu0 0.0
      %277 = vmatprep.subr.mxu0 0.0
      %278 = vmatpush1.msra.mxu0 0.0
      %279 = vmatprep.subr.mxu0 0.0
      %280 = vmatpush1.msra.mxu0 0.0
      %281 = vmatprep.subr.mxu0 0.0
      %282 = vmatpush1.msra.mxu0 0.0
      %283 = vmatprep.subr.mxu0 0.0
      %284 = vmatpush1.msra.mxu0 0.0
      %285 = vmatprep.subr.mxu0 0.0
      %286 = vmatpush1.msra.mxu0 0.0
      %287 = vmatprep.subr.mxu0 0.0
      %288 = vmatpush1.msra.mxu0 0.0
      %289 = vmatprep.subr.mxu0 0.0
      %290 = vmatpush1.msra.mxu0 0.0
      %291 = vmatprep.subr.mxu0 0.0
      %292 = vmatpush1.msra.mxu0 0.0
      %293 = vmatprep.subr.mxu0 0.0
      %294 = vmatpush1.msra.mxu0 0.0
      %295 = vmatprep.subr.mxu0 0.0
      %296 = vmatpush1.msra.mxu0 0.0
      %297 = vmatprep.mubr.f32.mxu0 0.0
      %298 = vmatmul.mubr.f32.gmra.mrb[0].mxu0 %v231
      %v299 = vpop.f32.mrb[0].mxu0
      %v300 = vadd.f32 %v227, %v299
      %v301 = vpop.f32.mrb[0].mxu0
      %302 = vdwg.mxu0
      %vm303 = vcmask 785408
      %304 = vst.msk [vmem:[%s216] sm:$0xff] %vm303, %v300
      %p305 = scmp.lt.s32.totalorder %s18, 1
      %s306 = scalar_select %p305, %s18, 1
      %p307 = scmp.lt.s32.totalorder %s19, 0
      %s308 = scalar_select %p307, %s19, 0
      %s309 = sadd.s32 %s308, %s306
      %s310 = smul.addr %s309, 8
      %s311 = scalar_lea.vmem %s3, %s310
      // Predicated region
      $region33: #{gpt_forward.75} parent=31 // pred_check
        %p312 = pneg %p124
      $region34: #{gpt_forward.75} parent=31 // pred_check_branch
        %314 = sbr.rel (%p312) target = $region36
      $region35: #{gpt_forward.75} parent=31 // pred_region
        _
      $region36: #{gpt_forward.75} parent=31 // pred_fallthru
        _
    $region32: #{gpt_forward.75} parent=5 // pred_fallthru
      _
    %p315 = scmp.le.s32.totalorder 2, %s9
    // Predicated region
    $region37: #{gpt_forward.75} parent=5 // pred_check
      %p316 = pneg %p315
    $region38: #{gpt_forward.75} parent=5 // pred_check_branch
      %318 = sbr.rel (%p316) target = $region40
    $region39: #{gpt_forward.75} parent=5 // pred_region
      %s319 = ssub.s32 %s9, 2
      // Predicated region
      $region41: #{gpt_forward.75} parent=39 // pred_check
        %p320 = pneg %p130
      $region42: #{gpt_forward.75} parent=39 // pred_check_branch
        %322 = sbr.rel (%p320) target = $region44
      $region43: #{gpt_forward.75} parent=39 // pred_region
        %p323 = scmp.lt.s32.totalorder %s20, 1
        %s324 = scalar_select %p323, %s20, 1
        %p325 = scmp.lt.s32.totalorder %s21, 0
        %s326 = scalar_select %p325, %s21, 0
        %s327 = sadd.s32 %s326, %s324
        %s328 = smul.addr %s327, 8
        %s329 = scalar_lea.vmem %s3, %s328
      $region44: #{gpt_forward.75} parent=39 // pred_fallthru
        _
    $region40: #{gpt_forward.75} parent=5 // pred_fallthru
      _
  $region6: #{gpt_forward.75} parent=0 // loop_footer
    %s13 = sadd.s32 1, %s9
  $region7: #{gpt_forward.75} parent=0 // loop_footer_branch
    %8 = sbr.rel target = $region3
  $region8: #{gpt_forward.75} parent=0 // loop_exit
    _

// kernel: gpt_forward.74
$region0: #{gpt_forward.74}
  #allocation0 [shape = 'u32[]', space=smem, size = 0x4, offset = 0x4, fixed_abs, tag = 'smem constant byte address 0x4 - core index']
  #allocation1 [shape = 'u32[144,128]{1,0:T(1,128)}', space=vmem, size = 0x12000, scoped, tag = 'internal scratch']
  %s0 = inlined_call_operand.vmem [shape: f32[16,32], index: 0, kind: input, shape index: {}]
  %s1 = inlined_call_operand.vmem [shape: f32[16,32], index: 1, kind: input, shape index: {}]
  %s2 = inlined_call_operand.vmem [shape: f32[1,32], index: 2, kind: input, shape index: {}]
  %s3 = inlined_call_operand.vmem [shape: f32[1,32], index: 3, kind: input, shape index: {}]
  %s4 = inlined_call_operand.vmem [shape: f32[16,32], index: 4, kind: output, shape index: {0}]
  %s5 = inlined_call_operand.vmem [shape: f32[16,32], index: 5, kind: output, shape index: {1}]
  %6 = xla_tuple %s4, %s5
  %s7 = sld [smem:[#allocation0]]
  $region57: #{gpt_forward.74} parent=0
    _
  %s9 = ssub.s32 1, %s7
  %s10 = scalar_select 0, %s9, %s7
  loop: start=0, step=1, limit=4
  $region2: #{gpt_forward.74} parent=0 // loop_pre_header
    _
  $region3: #{gpt_forward.74} parent=0 // loop_header
    %s12 = sphi 0, %s16
    %p13 = scmp.ge.s32.totalorder %s12, 4
    %s22 = sphi 0, %s24
    %s25 = sphi 0, %s22
    %s26 = sphi 0, %s25
    %s42 = sphi 0, %s26
    %s48 = sphi 0, %s50
    %s51 = sphi 0, %s48
    %s52 = sphi 0, %s51
    %s68 = sphi 0, %s52
    %s72 = sphi 0, %s72
    %s74 = sphi 0, %s72
    %s75 = sphi 0, %s74
    %s89 = sphi 0, %s75
    %s93 = sphi 0, %s93
    %s95 = sphi 0, %s93
    %s96 = sphi 0, %s95
    %s110 = sphi 0, %s96
    %s116 = sphi 0, %s118
    %s119 = sphi 0, %s116
    %s120 = sphi 0, %s119
    %s136 = sphi 0, %s120
    %s142 = sphi 0, %s144
    %s145 = sphi 0, %s142
    %s146 = sphi 0, %s145
    %s162 = sphi 0, %s146
  $region4: #{gpt_forward.74} parent=0 // loop_header_branch
    %15 = sbr.rel (%p13) target = $region8
  $region5: #{gpt_forward.74} parent=0 // loop_body
    %s17 = ssub.s32 %s12, 1
    %s18 = ssub.s32 %s12, 2
    %s19 = sadd.s32 %s12, 1
    %s20 = ssub.s32 %s12, %s19
    %p21 = scmp.eq.s32.totalorder %s20, 0
    %s23 = sadd.s32 %s22, 1
    %s24 = scalar_select %p21, %s22, %s23
    %p27 = pneg %p21
    %p28 = scmp.eq.s32.totalorder %s12, 1
    %p29 = por %p27, %p28
    %p30 = scmp.ne.s32.totalorder %s22, %s25
    %p31 = scmp.eq.s32.totalorder %s12, 0
    %p32 = por %p30, %p31
    %p33 = scmp.ne.s32.totalorder %s22, %s25
    %p34 = scmp.eq.s32.totalorder %s17, 1
    %p35 = por %p33, %p34
    %p36 = scmp.ne.s32.totalorder %s25, %s26
    %p37 = scmp.eq.s32.totalorder %s17, 0
    %p38 = por %p36, %p37
    %p39 = scmp.ne.s32.totalorder %s25, %s26
    %p40 = scmp.eq.s32.totalorder %s18, 1
    %p41 = por %p39, %p40
    %p43 = scmp.ne.s32.totalorder %s26, %s42
    %p44 = scmp.eq.s32.totalorder %s18, 0
    %p45 = por %p43, %p44
    %s46 = ssub.s32 %s12, %s19
    %p47 = scmp.eq.s32.totalorder %s46, 0
    %s49 = sadd.s32 %s48, 1
    %s50 = scalar_select %p47, %s48, %s49
    %p53 = pneg %p47
    %p54 = scmp.eq.s32.totalorder %s12, 1
    %p55 = por %p53, %p54
    %p56 = scmp.ne.s32.totalorder %s48, %s51
    %p57 = scmp.eq.s32.totalorder %s12, 0
    %p58 = por %p56, %p57
    %p59 = scmp.ne.s32.totalorder %s48, %s51
    %p60 = scmp.eq.s32.totalorder %s17, 1
    %p61 = por %p59, %p60
    %p62 = scmp.ne.s32.totalorder %s51, %s52
    %p63 = scmp.eq.s32.totalorder %s17, 0
    %p64 = por %p62, %p63
    %p65 = scmp.ne.s32.totalorder %s51, %s52
    %p66 = scmp.eq.s32.totalorder %s18, 1
    %p67 = por %p65, %p66
    %p69 = scmp.ne.s32.totalorder %s52, %s68
    %p70 = scmp.eq.s32.totalorder %s18, 0
    %p71 = por %p69, %p70
    %s73 = sadd.s32 %s72, 1
    %p76 = scmp.eq.s32.totalorder %s12, 1
    %p77 = scmp.ne.s32.totalorder %s72, %s74
    %p78 = scmp.eq.s32.totalorder %s12, 0
    %p79 = por %p77, %p78
    %p80 = scmp.ne.s32.totalorder %s72, %s74
    %p81 = scmp.eq.s32.totalorder %s17, 1
    %p82 = por %p80, %p81
    %p83 = scmp.ne.s32.totalorder %s74, %s75
    %p84 = scmp.eq.s32.totalorder %s17, 0
    %p85 = por %p83, %p84
    %p86 = scmp.ne.s32.totalorder %s74, %s75
    %p87 = scmp.eq.s32.totalorder %s18, 1
    %p88 = por %p86, %p87
    %p90 = scmp.ne.s32.totalorder %s75, %s89
    %p91 = scmp.eq.s32.totalorder %s18, 0
    %p92 = por %p90, %p91
    %s94 = sadd.s32 %s93, 1
    %p97 = scmp.eq.s32.totalorder %s12, 1
    %p98 = scmp.ne.s32.totalorder %s93, %s95
    %p99 = scmp.eq.s32.totalorder %s12, 0
    %p100 = por %p98, %p99
    %p101 = scmp.ne.s32.totalorder %s93, %s95
    %p102 = scmp.eq.s32.totalorder %s17, 1
    %p103 = por %p101, %p102
    %p104 = scmp.ne.s32.totalorder %s95, %s96
    %p105 = scmp.eq.s32.totalorder %s17, 0
    %p106 = por %p104, %p105
    %p107 = scmp.ne.s32.totalorder %s95, %s96
    %p108 = scmp.eq.s32.totalorder %s18, 1
    %p109 = por %p107, %p108
    %p111 = scmp.ne.s32.totalorder %s96, %s110
    %p112 = scmp.eq.s32.totalorder %s18, 0
    %p113 = por %p111, %p112
    %s114 = ssub.s32 %s12, %s19
    %p115 = scmp.eq.s32.totalorder %s114, 0
    %s117 = sadd.s32 %s116, 1
    %s118 = scalar_select %p115, %s116, %s117
    %p121 = pneg %p115
    %p122 = scmp.eq.s32.totalorder %s12, 1
    %p123 = por %p121, %p122
    %p124 = scmp.ne.s32.totalorder %s116, %s119
    %p125 = scmp.eq.s32.totalorder %s12, 0
    %p126 = por %p124, %p125
    %p127 = scmp.ne.s32.totalorder %s116, %s119
    %p128 = scmp.eq.s32.totalorder %s17, 1
    %p129 = por %p127, %p128
    %p130 = scmp.ne.s32.totalorder %s119, %s120
    %p131 = scmp.eq.s32.totalorder %s17, 0
    %p132 = por %p130, %p131
    %p133 = scmp.ne.s32.totalorder %s119, %s120
    %p134 = scmp.eq.s32.totalorder %s18, 1
    %p135 = por %p133, %p134
    %p137 = scmp.ne.s32.totalorder %s120, %s136
    %p138 = scmp.eq.s32.totalorder %s18, 0
    %p139 = por %p137, %p138
    %s140 = ssub.s32 %s12, %s19
    %p141 = scmp.eq.s32.totalorder %s140, 0
    %s143 = sadd.s32 %s142, 1
    %s144 = scalar_select %p141, %s142, %s143
    %p147 = pneg %p141
    %p148 = scmp.eq.s32.totalorder %s12, 1
    %p149 = por %p147, %p148
    %p150 = scmp.ne.s32.totalorder %s142, %s145
    %p151 = scmp.eq.s32.totalorder %s12, 0
    %p152 = por %p150, %p151
    %p153 = scmp.ne.s32.totalorder %s142, %s145
    %p154 = scmp.eq.s32.totalorder %s17, 1
    %p155 = por %p153, %p154
    %p156 = scmp.ne.s32.totalorder %s145, %s146
    %p157 = scmp.eq.s32.totalorder %s17, 0
    %p158 = por %p156, %p157
    %p159 = scmp.ne.s32.totalorder %s145, %s146
    %p160 = scmp.eq.s32.totalorder %s18, 1
    %p161 = por %p159, %p160
    %p163 = scmp.ne.s32.totalorder %s146, %s162
    %p164 = scmp.eq.s32.totalorder %s18, 0
    %p165 = por %p163, %p164
    %p166 = scmp.le.s32.totalorder 1, %s12
    %p167 = scmp.lt.s32.totalorder %s12, 3
    %p168 = pnand %p166, %p167
    %p169 = pneg %p168
    // Predicated region
    $region9: #{gpt_forward.74} parent=5 // pred_check
      _
    $region10: #{gpt_forward.74} parent=5 // pred_check_branch
      %171 = sbr.rel (%p168) target = $region12
    $region11: #{gpt_forward.74} parent=5 // pred_region
      %s172 = ssub.s32 %s12, 1
      // Predicated region
      $region13: #{gpt_forward.74} parent=11 // pred_check
        %p173 = pneg %p85
      $region14: #{gpt_forward.74} parent=11 // pred_check_branch
        %175 = sbr.rel (%p173) target = $region16
      $region15: #{gpt_forward.74} parent=11 // pred_region
        _
      $region16: #{gpt_forward.74} parent=11 // pred_fallthru
        _
      // Predicated region
      $region17: #{gpt_forward.74} parent=11 // pred_check
        %p176 = pneg %p106
      $region18: #{gpt_forward.74} parent=11 // pred_check_branch
        %178 = sbr.rel (%p176) target = $region20
      $region19: #{gpt_forward.74} parent=11 // pred_region
        _
      $region20: #{gpt_forward.74} parent=11 // pred_fallthru
        _
    $region12: #{gpt_forward.74} parent=5 // pred_fallthru
      _
    %p179 = scmp.lt.s32.totalorder %s12, 2
    // Predicated region
    $region21: #{gpt_forward.74} parent=5 // pred_check
      %p180 = pneg %p179
    $region22: #{gpt_forward.74} parent=5 // pred_check_branch
      %182 = sbr.rel (%p180) target = $region24
    $region23: #{gpt_forward.74} parent=5 // pred_region
      // Predicated region
      $region25: #{gpt_forward.74} parent=23 // pred_check
        %p183 = pneg %p32
      $region26: #{gpt_forward.74} parent=23 // pred_check_branch
        %185 = sbr.rel (%p183) target = $region28
      $region27: #{gpt_forward.74} parent=23 // pred_region
        %p186 = scmp.lt.s32.totalorder %s12, 1
        %s187 = scalar_select %p186, %s12, 1
        %s188 = smul.addr %s187, 8
        %s189 = scalar_lea.vmem %s0, %s188
      $region28: #{gpt_forward.74} parent=23 // pred_fallthru
        _
      // Predicated region
      $region29: #{gpt_forward.74} parent=23 // pred_check
        %p190 = pneg %p58
      $region30: #{gpt_forward.74} parent=23 // pred_check_branch
        %192 = sbr.rel (%p190) target = $region32
      $region31: #{gpt_forward.74} parent=23 // pred_region
        %p193 = scmp.lt.s32.totalorder %s12, 1
        %s194 = scalar_select %p193, %s12, 1
        %s195 = smul.addr %s194, 8
        %s196 = scalar_lea.vmem %s1, %s195
      $region32: #{gpt_forward.74} parent=23 // pred_fallthru
        _
    $region24: #{gpt_forward.74} parent=5 // pred_fallthru
      _
    %p197 = scmp.le.s32.totalorder 1, %s12
    %p198 = scmp.lt.s32.totalorder %s12, 3
    %p199 = pnand %p197, %p198
    %p200 = pneg %p199
    // Predicated region
    $region33: #{gpt_forward.74} parent=5 // pred_check
      _
    $region34: #{gpt_forward.74} parent=5 // pred_check_branch
      %202 = sbr.rel (%p199) target = $region36
    $region35: #{gpt_forward.74} parent=5 // pred_region
      %s203 = ssub.s32 %s12, 1
      %p204 = scmp.lt.s32.totalorder %s17, 1
      %s205 = scalar_select %p204, %s17, 1
      %s206 = smul.addr %s205, 8
      %s207 = scalar_lea.vmem %s0, %s206
      %p208 = pneg %p38
      %p209 = pneg %p35
      %p210 = scmp.lt.s32.totalorder %s17, 1
      %s211 = scalar_select %p210, %s17, 1
      %s212 = smul.addr %s211, 8
      %s213 = scalar_lea.vmem %s1, %s212
      %p214 = pneg %p64
      %p215 = pneg %p61
      %p216 = pneg %p85
      %p217 = pneg %p82
      %p218 = pneg %p106
      %p219 = pneg %p103
      %p220 = pneg %p132
      %p221 = pneg %p129
      %p222 = scmp.lt.s32.totalorder %s17, 1
      %s223 = scalar_select %p222, %s17, 1
      %s224 = smul.addr %s223, 8
      %s225 = scalar_lea.vmem %s4, %s224
      %p226 = pneg %p158
      %p227 = pneg %p155
      %p228 = scmp.lt.s32.totalorder %s17, 1
      %s229 = scalar_select %p228, %s17, 1
      %s230 = smul.addr %s229, 8
      %s231 = scalar_lea.vmem %s5, %s230
      %p232 = scmp.lt.s32.totalorder %s17, 1
      %s233 = scalar_select %p232, %s17, 1
      %s234 = smul.addr %s233, 8
      %s235 = scalar_lea.vmem %s0, %s234
      %p236 = scmp.lt.s32.totalorder %s17, 1
      %s237 = scalar_select %p236, %s17, 1
      %s238 = smul.addr %s237, 8
      %s239 = scalar_lea.vmem %s1, %s238
      %p240 = scmp.lt.s32.totalorder %s17, 1
      %s241 = scalar_select %p240, %s17, 1
      %s242 = smul.addr %s241, 8
      %s243 = scalar_lea.vmem %s4, %s242
      %p244 = scmp.lt.s32.totalorder %s17, 1
      %s245 = scalar_select %p244, %s17, 1
      %s246 = smul.addr %s245, 8
      %s247 = scalar_lea.vmem %s5, %s246
      %v248 = vld [vmem:[%s235] sm:$0xff]
      %v249 = vld [vmem:[%s239] sm:$0xff]
      %v250 = vadd.f32 %v248, %v249
      %vm251 = vcmask 261120
      %252 = vst.msk [vmem:[%s243] sm:$0xff] %vm251, %v250
      %v253 = vsel %vm251, %v250, 0.0
      %254 = vadd.xlane.f32.xlu0 %v253
      %v255 = vpop.xlane.xlu0 %254
      %v256 = vrcp.pop 32.0
      %v257 = vmul.f32 %v255, %v256
      %v258 = vsub.f32 %v250, %v257
      %v259 = vmul.f32 %v258, %v258
      %v260 = vsel %vm251, %v259, 0.0
      %261 = vadd.xlane.f32.xlu0 %v260
      %v262 = vpop.xlane.xlu0 %261
      %v263 = vmul.f32 %v262, 0.032258064
      %v264 = vadd.f32 %v263, 1e-05
      %v265 = vrsqrt.pop %v264
      %v266 = vmul.f32 %v258, %v265
      %v267 = vld [vmem:[%s2] sm:$0x1]
      %v269 = vlaneseq
      %v270 = vshrl.u32 %v269, 7
      %v271 = vsub.s32 0, %v270
      %v272 = vrot.slane %v267, %v271
      %v274 = vmul.f32 %v272, %v266
      %v275 = vld [vmem:[%s3] sm:$0x1]
      %v277 = vlaneseq
      %v278 = vshrl.u32 %v277, 7
      %v279 = vsub.s32 0, %v278
      %v280 = vrot.slane %v275, %v279
      %v282 = vadd.f32 %v274, %v280
      %283 = vst.msk [vmem:[%s247] sm:$0xff] %vm251, %v282
      %p284 = scmp.lt.s32.totalorder %s17, 1
      %s285 = scalar_select %p284, %s17, 1
      %s286 = smul.addr %s285, 8
      %s287 = scalar_lea.vmem %s4, %s286
      %p288 = scmp.lt.s32.totalorder %s17, 1
      %s289 = scalar_select %p288, %s17, 1
      %s290 = smul.addr %s289, 8
      %s291 = scalar_lea.vmem %s5, %s290
      // Predicated region
      $region37: #{gpt_forward.74} parent=35 // pred_check
        %p292 = pneg %p129
      $region38: #{gpt_forward.74} parent=35 // pred_check_branch
        %294 = sbr.rel (%p292) target = $region40
      $region39: #{gpt_forward.74} parent=35 // pred_region
        _
      $region40: #{gpt_forward.74} parent=35 // pred_fallthru
        _
      // Predicated region
      $region41: #{gpt_forward.74} parent=35 // pred_check
        %p295 = pneg %p155
      $region42: #{gpt_forward.74} parent=35 // pred_check_branch
        %297 = sbr.rel (%p295) target = $region44
      $region43: #{gpt_forward.74} parent=35 // pred_region
        _
      $region44: #{gpt_forward.74} parent=35 // pred_fallthru
        _
    $region36: #{gpt_forward.74} parent=5 // pred_fallthru
      _
    %p298 = scmp.le.s32.totalorder 2, %s12
    // Predicated region
    $region45: #{gpt_forward.74} parent=5 // pred_check
      %p299 = pneg %p298
    $region46: #{gpt_forward.74} parent=5 // pred_check_branch
      %301 = sbr.rel (%p299) target = $region48
    $region47: #{gpt_forward.74} parent=5 // pred_region
      %s302 = ssub.s32 %s12, 2
      // Predicated region
      $region49: #{gpt_forward.74} parent=47 // pred_check
        %p303 = pneg %p135
      $region50: #{gpt_forward.74} parent=47 // pred_check_branch
        %305 = sbr.rel (%p303) target = $region52
      $region51: #{gpt_forward.74} parent=47 // pred_region
        %p306 = scmp.lt.s32.totalorder %s18, 1
        %s307 = scalar_select %p306, %s18, 1
        %s308 = smul.addr %s307, 8
        %s309 = scalar_lea.vmem %s4, %s308
      $region52: #{gpt_forward.74} parent=47 // pred_fallthru
        _
      // Predicated region
      $region53: #{gpt_forward.74} parent=47 // pred_check
        %p310 = pneg %p161
      $region54: #{gpt_forward.74} parent=47 // pred_check_branch
        %312 = sbr.rel (%p310) target = $region56
      $region55: #{gpt_forward.74} parent=47 // pred_region
        %p313 = scmp.lt.s32.totalorder %s18, 1
        %s314 = scalar_select %p313, %s18, 1
        %s315 = smul.addr %s314, 8
        %s316 = scalar_lea.vmem %s5, %s315
      $region56: #{gpt_forward.74} parent=47 // pred_fallthru
        _
    $region48: #{gpt_forward.74} parent=5 // pred_fallthru
      _
  $region6: #{gpt_forward.74} parent=0 // loop_footer
    %s16 = sadd.s32 1, %s12
  $region7: #{gpt_forward.74} parent=0 // loop_footer_branch
    %11 = sbr.rel target = $region3
  $region8: #{gpt_forward.74} parent=0 // loop_exit
    _

// kernel: gpt_forward.78
$region0: #{gpt_forward.78}
  #allocation0 [shape = 'u32[]', space=smem, size = 0x4, offset = 0x4, fixed_abs, tag = 'smem constant byte address 0x4 - core index']
  #allocation1 [shape = 'u32[144,128]{1,0:T(1,128)}', space=vmem, size = 0x12000, scoped, tag = 'internal scratch']
  %s0 = inlined_call_operand.vmem [shape: f32[16,32], index: 0, kind: input, shape index: {}]
  %s1 = inlined_call_operand.vmem [shape: f32[32,128], index: 1, kind: input, shape index: {}]
  %s2 = inlined_call_operand.vmem [shape: f32[1,128], index: 2, kind: input, shape index: {}]
  %s3 = inlined_call_operand.vmem [shape: f32[16,128], index: 3, kind: output, shape index: {}]
  %s4 = sld [smem:[#allocation0]]
  $region45: #{gpt_forward.78} parent=0
    _
  %s6 = ssub.s32 1, %s4
  %s7 = scalar_select 0, %s6, %s4
  loop: start=0, step=1, limit=4
  $region2: #{gpt_forward.78} parent=0 // loop_pre_header
    _
  $region3: #{gpt_forward.78} parent=0 // loop_header
    %s9 = sphi 0, %s13
    %p10 = scmp.ge.s32.totalorder %s9, 4
    %s16 = sphi 0, %s28
    %s17 = sphi 0, %s24
    %s18 = sphi 0, %s16
    %s19 = sphi 0, %s17
    %s20 = sphi 0, %s18
    %s21 = sphi 0, %s19
    %s31 = sphi 0, %s33
    %s34 = sphi 0, %s31
    %s35 = sphi 0, %s34
    %s51 = sphi 0, %s35
    %s57 = sphi 0, %s59
    %s60 = sphi 0, %s57
    %s61 = sphi 0, %s60
    %s77 = sphi 0, %s61
    %s83 = sphi 0, %s85
    %s86 = sphi 0, %s83
    %s87 = sphi 0, %s86
    %s103 = sphi 0, %s87
    %s111 = sphi 0, %s113
    %s114 = sphi 0, %s111
    %s115 = sphi 0, %s114
    %s131 = sphi 0, %s115
  $region4: #{gpt_forward.78} parent=0 // loop_header_branch
    %12 = sbr.rel (%p10) target = $region8
  $region5: #{gpt_forward.78} parent=0 // loop_body
    %s14 = ssub.s32 %s9, 1
    %s15 = ssub.s32 %s9, 2
    %s22 = sadd.s32 1, %s17
    %p23 = scmp.ge.s32.totalorder %s22, 1
    %s24 = scalar_select %p23, 0, %s22
    %s25 = sadd.s32 1, %s16
    %s26 = scalar_select %p23, %s25, %s16
    %p27 = scmp.ge.s32.totalorder %s26, 2
    %s28 = scalar_select %p27, 0, %s26
    %s29 = ssub.s32 %s16, %s28
    %p30 = scmp.eq.s32.totalorder %s29, 0
    %s32 = sadd.s32 %s31, 1
    %s33 = scalar_select %p30, %s31, %s32
    %p36 = pneg %p30
    %p37 = scmp.eq.s32.totalorder %s9, 1
    %p38 = por %p36, %p37
    %p39 = scmp.ne.s32.totalorder %s31, %s34
    %p40 = scmp.eq.s32.totalorder %s9, 0
    %p41 = por %p39, %p40
    %p42 = scmp.ne.s32.totalorder %s31, %s34
    %p43 = scmp.eq.s32.totalorder %s14, 1
    %p44 = por %p42, %p43
    %p45 = scmp.ne.s32.totalorder %s34, %s35
    %p46 = scmp.eq.s32.totalorder %s14, 0
    %p47 = por %p45, %p46
    %p48 = scmp.ne.s32.totalorder %s34, %s35
    %p49 = scmp.eq.s32.totalorder %s15, 1
    %p50 = por %p48, %p49
    %p52 = scmp.ne.s32.totalorder %s35, %s51
    %p53 = scmp.eq.s32.totalorder %s15, 0
    %p54 = por %p52, %p53
    %s55 = ssub.s32 %s17, %s24
    %p56 = scmp.eq.s32.totalorder %s55, 0
    %s58 = sadd.s32 %s57, 1
    %s59 = scalar_select %p56, %s57, %s58
    %p62 = pneg %p56
    %p63 = scmp.eq.s32.totalorder %s9, 1
    %p64 = por %p62, %p63
    %p65 = scmp.ne.s32.totalorder %s57, %s60
    %p66 = scmp.eq.s32.totalorder %s9, 0
    %p67 = por %p65, %p66
    %p68 = scmp.ne.s32.totalorder %s57, %s60
    %p69 = scmp.eq.s32.totalorder %s14, 1
    %p70 = por %p68, %p69
    %p71 = scmp.ne.s32.totalorder %s60, %s61
    %p72 = scmp.eq.s32.totalorder %s14, 0
    %p73 = por %p71, %p72
    %p74 = scmp.ne.s32.totalorder %s60, %s61
    %p75 = scmp.eq.s32.totalorder %s15, 1
    %p76 = por %p74, %p75
    %p78 = scmp.ne.s32.totalorder %s61, %s77
    %p79 = scmp.eq.s32.totalorder %s15, 0
    %p80 = por %p78, %p79
    %s81 = ssub.s32 %s17, %s24
    %p82 = scmp.eq.s32.totalorder %s81, 0
    %s84 = sadd.s32 %s83, 1
    %s85 = scalar_select %p82, %s83, %s84
    %p88 = pneg %p82
    %p89 = scmp.eq.s32.totalorder %s9, 1
    %p90 = por %p88, %p89
    %p91 = scmp.ne.s32.totalorder %s83, %s86
    %p92 = scmp.eq.s32.totalorder %s9, 0
    %p93 = por %p91, %p92
    %p94 = scmp.ne.s32.totalorder %s83, %s86
    %p95 = scmp.eq.s32.totalorder %s14, 1
    %p96 = por %p94, %p95
    %p97 = scmp.ne.s32.totalorder %s86, %s87
    %p98 = scmp.eq.s32.totalorder %s14, 0
    %p99 = por %p97, %p98
    %p100 = scmp.ne.s32.totalorder %s86, %s87
    %p101 = scmp.eq.s32.totalorder %s15, 1
    %p102 = por %p100, %p101
    %p104 = scmp.ne.s32.totalorder %s87, %s103
    %p105 = scmp.eq.s32.totalorder %s15, 0
    %p106 = por %p104, %p105
    %s107 = ssub.s32 %s16, %s28
    %s108 = ssub.s32 %s17, %s24
    %s109 = sor.u32 %s107, %s108
    %p110 = scmp.eq.s32.totalorder %s109, 0
    %s112 = sadd.s32 %s111, 1
    %s113 = scalar_select %p110, %s111, %s112
    %p116 = pneg %p110
    %p117 = scmp.eq.s32.totalorder %s9, 1
    %p118 = por %p116, %p117
    %p119 = scmp.ne.s32.totalorder %s111, %s114
    %p120 = scmp.eq.s32.totalorder %s9, 0
    %p121 = por %p119, %p120
    %p122 = scmp.ne.s32.totalorder %s111, %s114
    %p123 = scmp.eq.s32.totalorder %s14, 1
    %p124 = por %p122, %p123
    %p125 = scmp.ne.s32.totalorder %s114, %s115
    %p126 = scmp.eq.s32.totalorder %s14, 0
    %p127 = por %p125, %p126
    %p128 = scmp.ne.s32.totalorder %s114, %s115
    %p129 = scmp.eq.s32.totalorder %s15, 1
    %p130 = por %p128, %p129
    %p132 = scmp.ne.s32.totalorder %s115, %s131
    %p133 = scmp.eq.s32.totalorder %s15, 0
    %p134 = por %p132, %p133
    %p135 = scmp.le.s32.totalorder 1, %s9
    %p136 = scmp.lt.s32.totalorder %s9, 3
    %p137 = pnand %p135, %p136
    %p138 = pneg %p137
    // Predicated region
    $region9: #{gpt_forward.78} parent=5 // pred_check
      _
    $region10: #{gpt_forward.78} parent=5 // pred_check_branch
      %140 = sbr.rel (%p137) target = $region12
    $region11: #{gpt_forward.78} parent=5 // pred_region
      %s141 = ssub.s32 %s9, 1
      // Predicated region
      $region13: #{gpt_forward.78} parent=11 // pred_check
        %p142 = pneg %p73
      $region14: #{gpt_forward.78} parent=11 // pred_check_branch
        %144 = sbr.rel (%p142) target = $region16
      $region15: #{gpt_forward.78} parent=11 // pred_region
        %p145 = scmp.lt.s32.totalorder %s19, 0
        %s146 = scalar_select %p145, %s19, 0
        %s147 = smul.addr %s146, 8
        %s148 = scalar_lea.vmem %s1, %s147
      $region16: #{gpt_forward.78} parent=11 // pred_fallthru
        _
      // Predicated region
      $region17: #{gpt_forward.78} parent=11 // pred_check
        %p149 = pneg %p99
      $region18: #{gpt_forward.78} parent=11 // pred_check_branch
        %151 = sbr.rel (%p149) target = $region20
      $region19: #{gpt_forward.78} parent=11 // pred_region
        %p152 = scmp.lt.s32.totalorder %s19, 0
        %s153 = scalar_select %p152, %s19, 0
        %s154 = scalar_lea.vmem %s2, %s153
      $region20: #{gpt_forward.78} parent=11 // pred_fallthru
        _
    $region12: #{gpt_forward.78} parent=5 // pred_fallthru
      _
    %p155 = scmp.lt.s32.totalorder %s9, 2
    // Predicated region
    $region21: #{gpt_forward.78} parent=5 // pred_check
      %p156 = pneg %p155
    $region22: #{gpt_forward.78} parent=5 // pred_check_branch
      %158 = sbr.rel (%p156) target = $region24
    $region23: #{gpt_forward.78} parent=5 // pred_region
      // Predicated region
      $region25: #{gpt_forward.78} parent=23 // pred_check
        %p159 = pneg %p41
      $region26: #{gpt_forward.78} parent=23 // pred_check_branch
        %161 = sbr.rel (%p159) target = $region28
      $region27: #{gpt_forward.78} parent=23 // pred_region
        %p162 = scmp.lt.s32.totalorder %s16, 1
        %s163 = scalar_select %p162, %s16, 1
        %s164 = smul.addr %s163, 8
        %s165 = scalar_lea.vmem %s0, %s164
      $region28: #{gpt_forward.78} parent=23 // pred_fallthru
        _
    $region24: #{gpt_forward.78} parent=5 // pred_fallthru
      _
    %p166 = scmp.le.s32.totalorder 1, %s9
    %p167 = scmp.lt.s32.totalorder %s9, 3
    %p168 = pnand %p166, %p167
    %p169 = pneg %p168
    // Predicated region
    $region29: #{gpt_forward.78} parent=5 // pred_check
      _
    $region30: #{gpt_forward.78} parent=5 // pred_check_branch
      %171 = sbr.rel (%p168) target = $region32
    $region31: #{gpt_forward.78} parent=5 // pred_region
      %s172 = ssub.s32 %s9, 1
      %p173 = scmp.lt.s32.totalorder %s18, 1
      %s174 = scalar_select %p173, %s18, 1
      %s175 = smul.addr %s174, 8
      %s176 = scalar_lea.vmem %s0, %s175
      %p177 = pneg %p47
      %p178 = pneg %p44
      %p179 = scmp.lt.s32.totalorder %s19, 0
      %s180 = scalar_select %p179, %s19, 0
      %s181 = smul.addr %s180, 8
      %s182 = scalar_lea.vmem %s1, %s181
      %p183 = pneg %p73
      %p184 = pneg %p70
      %p185 = scmp.lt.s32.totalorder %s19, 0
      %s186 = scalar_select %p185, %s19, 0
      %s187 = scalar_lea.vmem %s2, %s186
      %p188 = pneg %p99
      %p189 = pneg %p96
      %p190 = pneg %p127
      %p191 = pneg %p124
      %p192 = scmp.lt.s32.totalorder %s18, 1
      %s193 = scalar_select %p192, %s18, 1
      %p194 = scmp.lt.s32.totalorder %s19, 0
      %s195 = scalar_select %p194, %s19, 0
      %s196 = sadd.s32 %s195, %s193
      %s197 = smul.addr %s196, 8
      %s198 = scalar_lea.vmem %s3, %s197
      %p199 = scmp.lt.s32.totalorder %s18, 1
      %s200 = scalar_select %p199, %s18, 1
      %s201 = smul.addr %s200, 8
      %s202 = scalar_lea.vmem %s0, %s201
      %p203 = scmp.lt.s32.totalorder %s19, 0
      %s204 = scalar_select %p203, %s19, 0
      %s205 = smul.addr %s204, 8
      %s206 = scalar_lea.vmem %s1, %s205
      %p207 = scmp.lt.s32.totalorder %s19, 0
      %s208 = scalar_select %p207, %s19, 0
      %s209 = scalar_lea.vmem %s2, %s208
      %p210 = scmp.lt.s32.totalorder %s18, 1
      %s211 = scalar_select %p210, %s18, 1
      %p212 = scmp.lt.s32.totalorder %s19, 0
      %s213 = scalar_select %p212, %s19, 0
      %s214 = sadd.s32 %s213, %s211
      %s215 = smul.addr %s214, 8
      %s216 = scalar_lea.vmem %s3, %s215
      %v217 = vld [vmem:[%s202] sm:$0xff]
      %v218 = vld [vmem:[%s206] sm:$0xff]
      %v219 = vld [vmem:[%s206 + $0x8] sm:$0xff]
      %v220 = vld [vmem:[%s206 + $0x10] sm:$0xff]
      %v221 = vld [vmem:[%s206 + $0x18] sm:$0xff]
      %v222 = vld [vmem:[%s209] sm:$0x1]
      %v224 = vlaneseq
      %v225 = vshrl.u32 %v224, 7
      %v226 = vsub.s32 0, %v225
      %v227 = vrot.slane %v222, %v226
      %vm229 = vcmask 261120
      %v231 = vsel %vm229, %v217, 0
      %233 = vmatprep.subr.mxu0 0.0
      %234 = vmatpush1.msra.mxu0 %v218
      %235 = vmatprep.subr.mxu0 0.0
      %236 = vmatpush1.msra.mxu0 %v219
      %237 = vmatprep.subr.mxu0 0.0
      %238 = vmatpush1.msra.mxu0 %v220
      %239 = vmatprep.subr.mxu0 0.0
      %240 = vmatpush1.msra.mxu0 %v221
      %241 = vmatprep.subr.mxu0 0.0
      %242 = vmatpush1.msra.mxu0 0.0
      %243 = vmatprep.subr.mxu0 0.0
      %244 = vmatpush1.msra.mxu0 0.0
      %245 = vmatprep.subr.mxu0 0.0
      %246 = vmatpush1.msra.mxu0 0.0
      %247 = vmatprep.subr.mxu0 0.0
      %248 = vmatpush1.msra.mxu0 0.0
      %249 = vmatprep.subr.mxu0 0.0
      %250 = vmatpush1.msra.mxu0 0.0
      %251 = vmatprep.subr.mxu0 0.0
      %252 = vmatpush1.msra.mxu0 0.0
      %253 = vmatprep.subr.mxu0 0.0
      %254 = vmatpush1.msra.mxu0 0.0
      %255 = vmatprep.subr.mxu0 0.0
      %256 = vmatpush1.msra.mxu0 0.0
      %257 = vmatprep.subr.mxu0 0.0
      %258 = vmatpush1.msra.mxu0 0.0
      %259 = vmatprep.subr.mxu0 0.0
      %260 = vmatpush1.msra.mxu0 0.0
      %261 = vmatprep.subr.mxu0 0.0
      %262 = vmatpush1.msra.mxu0 0.0
      %263 = vmatprep.subr.mxu0 0.0
      %264 = vmatpush1.msra.mxu0 0.0
      %265 = vmatprep.subr.mxu0 0.0
      %266 = vmatpush1.msra.mxu0 0.0
      %267 = vmatprep.subr.mxu0 0.0
      %268 = vmatpush1.msra.mxu0 0.0
      %269 = vmatprep.subr.mxu0 0.0
      %270 = vmatpush1.msra.mxu0 0.0
      %271 = vmatprep.subr.mxu0 0.0
      %272 = vmatpush1.msra.mxu0 0.0
      %273 = vmatprep.subr.mxu0 0.0
      %274 = vmatpush1.msra.mxu0 0.0
      %275 = vmatprep.subr.mxu0 0.0
      %276 = vmatpush1.msra.mxu0 0.0
      %277 = vmatprep.subr.mxu0 0.0
      %278 = vmatpush1.msra.mxu0 0.0
      %279 = vmatprep.subr.mxu0 0.0
      %280 = vmatpush1.msra.mxu0 0.0
      %281 = vmatprep.subr.mxu0 0.0
      %282 = vmatpush1.msra.mxu0 0.0
      %283 = vmatprep.subr.mxu0 0.0
      %284 = vmatpush1.msra.mxu0 0.0
      %285 = vmatprep.subr.mxu0 0.0
      %286 = vmatpush1.msra.mxu0 0.0
      %287 = vmatprep.subr.mxu0 0.0
      %288 = vmatpush1.msra.mxu0 0.0
      %289 = vmatprep.subr.mxu0 0.0
      %290 = vmatpush1.msra.mxu0 0.0
      %291 = vmatprep.subr.mxu0 0.0
      %292 = vmatpush1.msra.mxu0 0.0
      %293 = vmatprep.subr.mxu0 0.0
      %294 = vmatpush1.msra.mxu0 0.0
      %295 = vmatprep.subr.mxu0 0.0
      %296 = vmatpush1.msra.mxu0 0.0
      %297 = vmatprep.mubr.f32.mxu0 0.0
      %298 = vmatmul.mubr.f32.gmra.mrb[0].mxu0 %v231
      %v299 = vpop.f32.mrb[0].mxu0
      %v300 = vadd.f32 %v227, %v299
      %v301 = vpop.f32.mrb[0].mxu0
      %302 = vdwg.mxu0
      %v303 = vmul.f32 %v300, 0.5
      %v304 = vmul.f32 %v300, %v300
      %v305 = vmul.f32 %v304, %v300
      %v306 = vmul.f32 %v305, 0.044715
      %v307 = vadd.f32 %v300, %v306
      %v308 = vmul.f32 %v307, 0.7978846
      %v309 = vtanh.pop %v308
      %v310 = vadd.f32 %v309, 1.0
      %v311 = vmul.f32 %v303, %v310
      %312 = vst [vmem:[%s216] sm:$0xff] %v311
      %p313 = scmp.lt.s32.totalorder %s18, 1
      %s314 = scalar_select %p313, %s18, 1
      %p315 = scmp.lt.s32.totalorder %s19, 0
      %s316 = scalar_select %p315, %s19, 0
      %s317 = sadd.s32 %s316, %s314
      %s318 = smul.addr %s317, 8
      %s319 = scalar_lea.vmem %s3, %s318
      // Predicated region
      $region33: #{gpt_forward.78} parent=31 // pred_check
        %p320 = pneg %p124
      $region34: #{gpt_forward.78} parent=31 // pred_check_branch
        %322 = sbr.rel (%p320) target = $region36
      $region35: #{gpt_forward.78} parent=31 // pred_region
        _
      $region36: #{gpt_forward.78} parent=31 // pred_fallthru
        _
    $region32: #{gpt_forward.78} parent=5 // pred_fallthru
      _
    %p323 = scmp.le.s32.totalorder 2, %s9
    // Predicated region
    $region37: #{gpt_forward.78} parent=5 // pred_check
      %p324 = pneg %p323
    $region38: #{gpt_forward.78} parent=5 // pred_check_branch
      %326 = sbr.rel (%p324) target = $region40
    $region39: #{gpt_forward.78} parent=5 // pred_region
      %s327 = ssub.s32 %s9, 2
      // Predicated region
      $region41: #{gpt_forward.78} parent=39 // pred_check
        %p328 = pneg %p130
      $region42: #{gpt_forward.78} parent=39 // pred_check_branch
        %330 = sbr.rel (%p328) target = $region44
      $region43: #{gpt_forward.78} parent=39 // pred_region
        %p331 = scmp.lt.s32.totalorder %s20, 1
        %s332 = scalar_select %p331, %s20, 1
        %p333 = scmp.lt.s32.totalorder %s21, 0
        %s334 = scalar_select %p333, %s21, 0
        %s335 = sadd.s32 %s334, %s332
        %s336 = smul.addr %s335, 8
        %s337 = scalar_lea.vmem %s3, %s336
      $region44: #{gpt_forward.78} parent=39 // pred_fallthru
        _
    $region40: #{gpt_forward.78} parent=5 // pred_fallthru
      _
  $region6: #{gpt_forward.78} parent=0 // loop_footer
    %s13 = sadd.s32 1, %s9
  $region7: #{gpt_forward.78} parent=0 // loop_footer_branch
    %8 = sbr.rel target = $region3
  $region8: #{gpt_forward.78} parent=0 // loop_exit
    _

// kernel: gpt_forward.76
$region0: #{gpt_forward.76}
  #allocation0 [shape = 'u32[]', space=smem, size = 0x4, offset = 0x4, fixed_abs, tag = 'smem constant byte address 0x4 - core index']
  #allocation1 [shape = 'u32[144,128]{1,0:T(1,128)}', space=vmem, size = 0x12000, scoped, tag = 'internal scratch']
  %s0 = inlined_call_operand.vmem [shape: f32[2,8,32], index: 0, kind: input, shape index: {}]
  %s1 = inlined_call_operand.vmem [shape: f32[2,8,32], index: 1, kind: input, shape index: {}]
  %s2 = inlined_call_operand.vmem [shape: f32[2,8,32], index: 2, kind: input, shape index: {}]
  %s3 = inlined_call_operand.vmem [shape: f32[2,8,32], index: 3, kind: output, shape index: {}]
  %s4 = sld [smem:[#allocation0]]
  $region73: #{gpt_forward.76} parent=0
    _
  %s6 = ssub.s32 1, %s4
  %s7 = scalar_select 0, %s6, %s4
  loop: start=0, step=1, limit=4
  $region2: #{gpt_forward.76} parent=0 // loop_pre_header
    _
  $region3: #{gpt_forward.76} parent=0 // loop_header
    %s9 = sphi 0, %s13
    %p10 = scmp.ge.s32.totalorder %s9, 4
    %s16 = sphi 0, %s28
    %s17 = sphi 0, %s24
    %s18 = sphi 0, %s16
    %s19 = sphi 0, %s17
    %s20 = sphi 0, %s18
    %s21 = sphi 0, %s19
    %s33 = sphi 0, %s35
    %s36 = sphi 0, %s33
    %s37 = sphi 0, %s36
    %s53 = sphi 0, %s37
    %s59 = sphi 0, %s61
    %s62 = sphi 0, %s59
    %s63 = sphi 0, %s62
    %s79 = sphi 0, %s63
    %s85 = sphi 0, %s87
    %s88 = sphi 0, %s85
    %s89 = sphi 0, %s88
    %s105 = sphi 0, %s89
    %s113 = sphi 0, %s115
    %s116 = sphi 0, %s113
    %s117 = sphi 0, %s116
    %s133 = sphi 0, %s117
  $region4: #{gpt_forward.76} parent=0 // loop_header_branch
    %12 = sbr.rel (%p10) target = $region8
  $region5: #{gpt_forward.76} parent=0 // loop_body
    %s14 = ssub.s32 %s9, 1
    %s15 = ssub.s32 %s9, 2
    %s22 = sadd.s32 1, %s17
    %p23 = scmp.ge.s32.totalorder %s22, 1
    %s24 = scalar_select %p23, 0, %s22
    %s25 = sadd.s32 1, %s16
    %s26 = scalar_select %p23, %s25, %s16
    %p27 = scmp.ge.s32.totalorder %s26, 2
    %s28 = scalar_select %p27, 0, %s26
    %s29 = ssub.s32 %s16, %s28
    %s30 = ssub.s32 %s17, %s24
    %s31 = sor.u32 %s29, %s30
    %p32 = scmp.eq.s32.totalorder %s31, 0
    %s34 = sadd.s32 %s33, 1
    %s35 = scalar_select %p32, %s33, %s34
    %p38 = pneg %p32
    %p39 = scmp.eq.s32.totalorder %s9, 1
    %p40 = por %p38, %p39
    %p41 = scmp.ne.s32.totalorder %s33, %s36
    %p42 = scmp.eq.s32.totalorder %s9, 0
    %p43 = por %p41, %p42
    %p44 = scmp.ne.s32.totalorder %s33, %s36
    %p45 = scmp.eq.s32.totalorder %s14, 1
    %p46 = por %p44, %p45
    %p47 = scmp.ne.s32.totalorder %s36, %s37
    %p48 = scmp.eq.s32.totalorder %s14, 0
    %p49 = por %p47, %p48
    %p50 = scmp.ne.s32.totalorder %s36, %s37
    %p51 = scmp.eq.s32.totalorder %s15, 1
    %p52 = por %p50, %p51
    %p54 = scmp.ne.s32.totalorder %s37, %s53
    %p55 = scmp.eq.s32.totalorder %s15, 0
    %p56 = por %p54, %p55
    %s57 = ssub.s32 %s16, %s28
    %p58 = scmp.eq.s32.totalorder %s57, 0
    %s60 = sadd.s32 %s59, 1
    %s61 = scalar_select %p58, %s59, %s60
    %p64 = pneg %p58
    %p65 = scmp.eq.s32.totalorder %s9, 1
    %p66 = por %p64, %p65
    %p67 = scmp.ne.s32.totalorder %s59, %s62
    %p68 = scmp.eq.s32.totalorder %s9, 0
    %p69 = por %p67, %p68
    %p70 = scmp.ne.s32.totalorder %s59, %s62
    %p71 = scmp.eq.s32.totalorder %s14, 1
    %p72 = por %p70, %p71
    %p73 = scmp.ne.s32.totalorder %s62, %s63
    %p74 = scmp.eq.s32.totalorder %s14, 0
    %p75 = por %p73, %p74
    %p76 = scmp.ne.s32.totalorder %s62, %s63
    %p77 = scmp.eq.s32.totalorder %s15, 1
    %p78 = por %p76, %p77
    %p80 = scmp.ne.s32.totalorder %s63, %s79
    %p81 = scmp.eq.s32.totalorder %s15, 0
    %p82 = por %p80, %p81
    %s83 = ssub.s32 %s16, %s28
    %p84 = scmp.eq.s32.totalorder %s83, 0
    %s86 = sadd.s32 %s85, 1
    %s87 = scalar_select %p84, %s85, %s86
    %p90 = pneg %p84
    %p91 = scmp.eq.s32.totalorder %s9, 1
    %p92 = por %p90, %p91
    %p93 = scmp.ne.s32.totalorder %s85, %s88
    %p94 = scmp.eq.s32.totalorder %s9, 0
    %p95 = por %p93, %p94
    %p96 = scmp.ne.s32.totalorder %s85, %s88
    %p97 = scmp.eq.s32.totalorder %s14, 1
    %p98 = por %p96, %p97
    %p99 = scmp.ne.s32.totalorder %s88, %s89
    %p100 = scmp.eq.s32.totalorder %s14, 0
    %p101 = por %p99, %p100
    %p102 = scmp.ne.s32.totalorder %s88, %s89
    %p103 = scmp.eq.s32.totalorder %s15, 1
    %p104 = por %p102, %p103
    %p106 = scmp.ne.s32.totalorder %s89, %s105
    %p107 = scmp.eq.s32.totalorder %s15, 0
    %p108 = por %p106, %p107
    %s109 = ssub.s32 %s16, %s28
    %s110 = ssub.s32 %s17, %s24
    %s111 = sor.u32 %s109, %s110
    %p112 = scmp.eq.s32.totalorder %s111, 0
    %s114 = sadd.s32 %s113, 1
    %s115 = scalar_select %p112, %s113, %s114
    %p118 = pneg %p112
    %p119 = scmp.eq.s32.totalorder %s9, 1
    %p120 = por %p118, %p119
    %p121 = scmp.ne.s32.totalorder %s113, %s116
    %p122 = scmp.eq.s32.totalorder %s9, 0
    %p123 = por %p121, %p122
    %p124 = scmp.ne.s32.totalorder %s113, %s116
    %p125 = scmp.eq.s32.totalorder %s14, 1
    %p126 = por %p124, %p125
    %p127 = scmp.ne.s32.totalorder %s116, %s117
    %p128 = scmp.eq.s32.totalorder %s14, 0
    %p129 = por %p127, %p128
    %p130 = scmp.ne.s32.totalorder %s116, %s117
    %p131 = scmp.eq.s32.totalorder %s15, 1
    %p132 = por %p130, %p131
    %p134 = scmp.ne.s32.totalorder %s117, %s133
    %p135 = scmp.eq.s32.totalorder %s15, 0
    %p136 = por %p134, %p135
    %p137 = scmp.le.s32.totalorder 1, %s9
    %p138 = scmp.lt.s32.totalorder %s9, 3
    %p139 = pnand %p137, %p138
    %p140 = pneg %p139
    // Predicated region
    $region9: #{gpt_forward.76} parent=5 // pred_check
      _
    $region10: #{gpt_forward.76} parent=5 // pred_check_branch
      %142 = sbr.rel (%p139) target = $region12
    $region11: #{gpt_forward.76} parent=5 // pred_region
      %s143 = ssub.s32 %s9, 1
    $region12: #{gpt_forward.76} parent=5 // pred_fallthru
      _
    %p144 = scmp.lt.s32.totalorder %s9, 2
    // Predicated region
    $region13: #{gpt_forward.76} parent=5 // pred_check
      %p145 = pneg %p144
    $region14: #{gpt_forward.76} parent=5 // pred_check_branch
      %147 = sbr.rel (%p145) target = $region16
    $region15: #{gpt_forward.76} parent=5 // pred_region
      // Predicated region
      $region17: #{gpt_forward.76} parent=15 // pred_check
        %p148 = pneg %p43
      $region18: #{gpt_forward.76} parent=15 // pred_check_branch
        %150 = sbr.rel (%p148) target = $region20
      $region19: #{gpt_forward.76} parent=15 // pred_region
        %p151 = scmp.lt.s32.totalorder %s16, 1
        %s152 = scalar_select %p151, %s16, 1
        %p153 = scmp.lt.s32.totalorder %s17, 0
        %s154 = scalar_select %p153, %s17, 0
        %s155 = sadd.s32 %s154, %s152
        %s156 = smul.addr %s155, 8
        %s157 = scalar_lea.vmem %s0, %s156
      $region20: #{gpt_forward.76} parent=15 // pred_fallthru
        _
      // Predicated region
      $region21: #{gpt_forward.76} parent=15 // pred_check
        %p158 = pneg %p69
      $region22: #{gpt_forward.76} parent=15 // pred_check_branch
        %160 = sbr.rel (%p158) target = $region24
      $region23: #{gpt_forward.76} parent=15 // pred_region
        %p161 = scmp.lt.s32.totalorder %s16, 1
        %s162 = scalar_select %p161, %s16, 1
        %s163 = smul.addr %s162, 8
        %s164 = scalar_lea.vmem %s1, %s163
      $region24: #{gpt_forward.76} parent=15 // pred_fallthru
        _
      // Predicated region
      $region25: #{gpt_forward.76} parent=15 // pred_check
        %p165 = pneg %p95
      $region26: #{gpt_forward.76} parent=15 // pred_check_branch
        %167 = sbr.rel (%p165) target = $region28
      $region27: #{gpt_forward.76} parent=15 // pred_region
        %p168 = scmp.lt.s32.totalorder %s16, 1
        %s169 = scalar_select %p168, %s16, 1
        %s170 = smul.addr %s169, 8
        %s171 = scalar_lea.vmem %s2, %s170
      $region28: #{gpt_forward.76} parent=15 // pred_fallthru
        _
    $region16: #{gpt_forward.76} parent=5 // pred_fallthru
      _
    %p172 = scmp.le.s32.totalorder 1, %s9
    %p173 = scmp.lt.s32.totalorder %s9, 3
    %p174 = pnand %p172, %p173
    %p175 = pneg %p174
    // Predicated region
    $region29: #{gpt_forward.76} parent=5 // pred_check
      _
    $region30: #{gpt_forward.76} parent=5 // pred_check_branch
      %177 = sbr.rel (%p174) target = $region32
    $region31: #{gpt_forward.76} parent=5 // pred_region
      %s178 = ssub.s32 %s9, 1
      %p179 = scmp.lt.s32.totalorder %s18, 1
      %s180 = scalar_select %p179, %s18, 1
      %p181 = scmp.lt.s32.totalorder %s19, 0
      %s182 = scalar_select %p181, %s19, 0
      %s183 = sadd.s32 %s182, %s180
      %s184 = smul.addr %s183, 8
      %s185 = scalar_lea.vmem %s0, %s184
      %p186 = pneg %p49
      %p187 = pneg %p46
      %p188 = scmp.lt.s32.totalorder %s18, 1
      %s189 = scalar_select %p188, %s18, 1
      %s190 = smul.addr %s189, 8
      %s191 = scalar_lea.vmem %s1, %s190
      %p192 = pneg %p75
      %p193 = pneg %p72
      %p194 = scmp.lt.s32.totalorder %s18, 1
      %s195 = scalar_select %p194, %s18, 1
      %s196 = smul.addr %s195, 8
      %s197 = scalar_lea.vmem %s2, %s196
      %p198 = pneg %p101
      %p199 = pneg %p98
      %p200 = pneg %p129
      %p201 = pneg %p126
      %p202 = scmp.lt.s32.totalorder %s18, 1
      %s203 = scalar_select %p202, %s18, 1
      %p204 = scmp.lt.s32.totalorder %s19, 0
      %s205 = scalar_select %p204, %s19, 0
      %s206 = sadd.s32 %s205, %s203
      %s207 = smul.addr %s206, 8
      %s208 = scalar_lea.vmem %s3, %s207
      %p209 = scmp.lt.s32.totalorder %s18, 1
      %s210 = scalar_select %p209, %s18, 1
      %p211 = scmp.lt.s32.totalorder %s19, 0
      %s212 = scalar_select %p211, %s19, 0
      %s213 = sadd.s32 %s212, %s210
      %s214 = smul.addr %s213, 8
      %s215 = scalar_lea.vmem %s0, %s214
      %p216 = scmp.lt.s32.totalorder %s18, 1
      %s217 = scalar_select %p216, %s18, 1
      %s218 = smul.addr %s217, 8
      %s219 = scalar_lea.vmem %s1, %s218
      %p220 = scmp.lt.s32.totalorder %s18, 1
      %s221 = scalar_select %p220, %s18, 1
      %s222 = smul.addr %s221, 8
      %s223 = scalar_lea.vmem %s2, %s222
      %p224 = scmp.lt.s32.totalorder %s18, 1
      %s225 = scalar_select %p224, %s18, 1
      %p226 = scmp.lt.s32.totalorder %s19, 0
      %s227 = scalar_select %p226, %s19, 0
      %s228 = sadd.s32 %s227, %s225
      %s229 = smul.addr %s228, 8
      %s230 = scalar_lea.vmem %s3, %s229
      %v231 = vld [vmem:[%s215] sm:$0xff]
      %v232 = vmul.f32 %v231, 0.35355338
      %v233 = vlaneseq
      %v234 = vshrl.u32 %v233, 7
      %v235 = vlaneseq
      %v236 = vand.u32 %v235, 127
      %vm237 = vcmp.le.s32.totalorder %v236, %v234
      // While loop
      $region33: #{gpt_forward.76} parent=31 // loop_pre_header
        _
      $region34: #{gpt_forward.76} parent=31 // loop_header
        %s239 = sphi 0, %s241
        %p240 = scmp.ge.s32.totalorder %s239, %s19
        %v244 = vphi -inf, %v332
        %v245 = vphi 0.0, %v343
        %v246 = vphi 0.0, %v418
      $region35: #{gpt_forward.76} parent=31 // loop_header_branch
        %243 = sbr.rel (%p240) target = $region39
      $region36: #{gpt_forward.76} parent=31 // loop_body
        %s247 = smul.u32 %s239, 8
        %s248 = scalar_lea.vmem %s219, %s247
        %v249 = vld [vmem:[%s248] sm:$0xff]
        %s250 = scalar_lea.vmem %s223, %s247
        %v251 = vld [vmem:[%s250] sm:$0xff]
        %vm252 = vcmask 64512
        %v254 = vsel %vm252, %v232, 0
        %v257 = vsel %vm252, %v249, 0
        %259 = vmatprep.subr.mxu0 0.0
        %260 = vmatpush1.xpose.msra.mxu0 %v257
        %261 = vmatprep.subr.mxu0 0.0
        %262 = vmatpush1.xpose.msra.mxu0 0.0
        %263 = vmatprep.subr.mxu0 0.0
        %264 = vmatpush1.xpose.msra.mxu0 0.0
        %265 = vmatprep.subr.mxu0 0.0
        %266 = vmatpush1.xpose.msra.mxu0 0.0
        %267 = vmatprep.subr.mxu0 0.0
        %268 = vmatpush1.xpose.msra.mxu0 0.0
        %269 = vmatprep.subr.mxu0 0.0
        %270 = vmatpush1.xpose.msra.mxu0 0.0
        %271 = vmatprep.subr.mxu0 0.0
        %272 = vmatpush1.xpose.msra.mxu0 0.0
        %273 = vmatprep.subr.mxu0 0.0
        %274 = vmatpush1.xpose.msra.mxu0 0.0
        %275 = vmatprep.subr.mxu0 0.0
        %276 = vmatpush1.xpose.msra.mxu0 0.0
        %277 = vmatprep.subr.mxu0 0.0
        %278 = vmatpush1.xpose.msra.mxu0 0.0
        %279 = vmatprep.subr.mxu0 0.0
        %280 = vmatpush1.xpose.msra.mxu0 0.0
        %281 = vmatprep.subr.mxu0 0.0
        %282 = vmatpush1.xpose.msra.mxu0 0.0
        %283 = vmatprep.subr.mxu0 0.0
        %284 = vmatpush1.xpose.msra.mxu0 0.0
        %285 = vmatprep.subr.mxu0 0.0
        %286 = vmatpush1.xpose.msra.mxu0 0.0
        %287 = vmatprep.subr.mxu0 0.0
        %288 = vmatpush1.xpose.msra.mxu0 0.0
        %289 = vmatprep.subr.mxu0 0.0
        %290 = vmatpush1.xpose.msra.mxu0 0.0
        %291 = vmatprep.subr.mxu0 0.0
        %292 = vmatpush1.xpose.msra.mxu0 0.0
        %293 = vmatprep.subr.mxu0 0.0
        %294 = vmatpush1.xpose.msra.mxu0 0.0
        %295 = vmatprep.subr.mxu0 0.0
        %296 = vmatpush1.xpose.msra.mxu0 0.0
        %297 = vmatprep.subr.mxu0 0.0
        %298 = vmatpush1.xpose.msra.mxu0 0.0
        %299 = vmatprep.subr.mxu0 0.0
        %300 = vmatpush1.xpose.msra.mxu0 0.0
        %301 = vmatprep.subr.mxu0 0.0
        %302 = vmatpush1.xpose.msra.mxu0 0.0
        %303 = vmatprep.subr.mxu0 0.0
        %304 = vmatpush1.xpose.msra.mxu0 0.0
        %305 = vmatprep.subr.mxu0 0.0
        %306 = vmatpush1.xpose.msra.mxu0 0.0
        %307 = vmatprep.subr.mxu0 0.0
        %308 = vmatpush1.xpose.msra.mxu0 0.0
        %309 = vmatprep.subr.mxu0 0.0
        %310 = vmatpush1.xpose.msra.mxu0 0.0
        %311 = vmatprep.subr.mxu0 0.0
        %312 = vmatpush1.xpose.msra.mxu0 0.0
        %313 = vmatprep.subr.mxu0 0.0
        %314 = vmatpush1.xpose.msra.mxu0 0.0
        %315 = vmatprep.subr.mxu0 0.0
        %316 = vmatpush1.xpose.msra.mxu0 0.0
        %317 = vmatprep.subr.mxu0 0.0
        %318 = vmatpush1.xpose.msra.mxu0 0.0
        %319 = vmatprep.subr.mxu0 0.0
        %320 = vmatpush1.xpose.msra.mxu0 0.0
        %321 = vmatprep.subr.mxu0 0.0
        %322 = vmatpush1.xpose.msra.mxu0 0.0
        %323 = vmatprep.mubr.f32.mxu0 0.0
        %324 = vmatmul.mubr.f32.gmra.mrb[0].mxu0 %v254
        %v325 = vpop.f32.mrb[0].mxu0
        %v326 = vadd.f32 0.0, %v325
        %v327 = vpop.f32.mrb[0].mxu0
        %328 = vdwg.mxu0
        %v329 = vsel %vm252, %v326, -inf
        %330 = vmax.xlane.f32.xlu0 %v329
        %v331 = vpop.xlane.xlu0 %330
        %v332 = vmax.f32 %v244, %v331
        %v333 = vsub.f32 %v244, %v332
        %v334 = vmul.f32 %v333, 1.442695
        %v335 = vpow.pop %v334
        %v336 = vsub.f32 %v326, %v332
        %v337 = vmul.f32 %v336, 1.442695
        %v338 = vpow.pop %v337
        %v339 = vmul.f32 %v335, %v245
        %v340 = vsel %vm252, %v338, 0.0
        %341 = vadd.xlane.f32.xlu0 %v340
        %v342 = vpop.xlane.xlu0 %341
        %v343 = vadd.f32 %v339, %v342
        %v344 = vmul.f32 %v335, %v246
        %v346 = vsel %vm252, %v338, 0
        %348 = vmatprep.subr.mxu0 0.0
        %349 = vmatpush1.msra.mxu0 %v251
        %350 = vmatprep.subr.mxu0 0.0
        %351 = vmatpush1.msra.mxu0 0.0
        %352 = vmatprep.subr.mxu0 0.0
        %353 = vmatpush1.msra.mxu0 0.0
        %354 = vmatprep.subr.mxu0 0.0
        %355 = vmatpush1.msra.mxu0 0.0
        %356 = vmatprep.subr.mxu0 0.0
        %357 = vmatpush1.msra.mxu0 0.0
        %358 = vmatprep.subr.mxu0 0.0
        %359 = vmatpush1.msra.mxu0 0.0
        %360 = vmatprep.subr.mxu0 0.0
        %361 = vmatpush1.msra.mxu0 0.0
        %362 = vmatprep.subr.mxu0 0.0
        %363 = vmatpush1.msra.mxu0 0.0
        %364 = vmatprep.subr.mxu0 0.0
        %365 = vmatpush1.msra.mxu0 0.0
        %366 = vmatprep.subr.mxu0 0.0
        %367 = vmatpush1.msra.mxu0 0.0
        %368 = vmatprep.subr.mxu0 0.0
        %369 = vmatpush1.msra.mxu0 0.0
        %370 = vmatprep.subr.mxu0 0.0
        %371 = vmatpush1.msra.mxu0 0.0
        %372 = vmatprep.subr.mxu0 0.0
        %373 = vmatpush1.msra.mxu0 0.0
        %374 = vmatprep.subr.mxu0 0.0
        %375 = vmatpush1.msra.mxu0 0.0
        %376 = vmatprep.subr.mxu0 0.0
        %377 = vmatpush1.msra.mxu0 0.0
        %378 = vmatprep.subr.mxu0 0.0
        %379 = vmatpush1.msra.mxu0 0.0
        %380 = vmatprep.subr.mxu0 0.0
        %381 = vmatpush1.msra.mxu0 0.0
        %382 = vmatprep.subr.mxu0 0.0
        %383 = vmatpush1.msra.mxu0 0.0
        %384 = vmatprep.subr.mxu0 0.0
        %385 = vmatpush1.msra.mxu0 0.0
        %386 = vmatprep.subr.mxu0 0.0
        %387 = vmatpush1.msra.mxu0 0.0
        %388 = vmatprep.subr.mxu0 0.0
        %389 = vmatpush1.msra.mxu0 0.0
        %390 = vmatprep.subr.mxu0 0.0
        %391 = vmatpush1.msra.mxu0 0.0
        %392 = vmatprep.subr.mxu0 0.0
        %393 = vmatpush1.msra.mxu0 0.0
        %394 = vmatprep.subr.mxu0 0.0
        %395 = vmatpush1.msra.mxu0 0.0
        %396 = vmatprep.subr.mxu0 0.0
        %397 = vmatpush1.msra.mxu0 0.0
        %398 = vmatprep.subr.mxu0 0.0
        %399 = vmatpush1.msra.mxu0 0.0
        %400 = vmatprep.subr.mxu0 0.0
        %401 = vmatpush1.msra.mxu0 0.0
        %402 = vmatprep.subr.mxu0 0.0
        %403 = vmatpush1.msra.mxu0 0.0
        %404 = vmatprep.subr.mxu0 0.0
        %405 = vmatpush1.msra.mxu0 0.0
        %406 = vmatprep.subr.mxu0 0.0
        %407 = vmatpush1.msra.mxu0 0.0
        %408 = vmatprep.subr.mxu0 0.0
        %409 = vmatpush1.msra.mxu0 0.0
        %410 = vmatprep.subr.mxu0 0.0
        %411 = vmatpush1.msra.mxu0 0.0
        %412 = vmatprep.mubr.f32.mxu0 0.0
        %413 = vmatmul.mubr.f32.gmra.mrb[0].mxu0 %v346
        %v414 = vpop.f32.mrb[0].mxu0
        %v415 = vadd.f32 0.0, %v414
        %v416 = vpop.f32.mrb[0].mxu0
        %417 = vdwg.mxu0
        %v418 = vadd.f32 %v344, %v415
      $region37: #{gpt_forward.76} parent=31 // loop_footer
        %s241 = sadd.s32 %s239, 1
      $region38: #{gpt_forward.76} parent=31 // loop_footer_branch
        %238 = sbr.rel target = $region34
      $region39: #{gpt_forward.76} parent=31 // loop_exit
        _
      %s419 = smul.u32 %s19, 8
      %s420 = scalar_lea.vmem %s219, %s419
      %v421 = vld [vmem:[%s420] sm:$0xff]
      %s422 = scalar_lea.vmem %s223, %s419
      %v423 = vld [vmem:[%s422] sm:$0xff]
      %vm424 = vcmask 64512
      %v426 = vsel %vm424, %v232, 0
      %v429 = vsel %vm424, %v421, 0
      %431 = vmatprep.subr.mxu0 0.0
      %432 = vmatpush1.xpose.msra.mxu0 %v429
      %433 = vmatprep.subr.mxu0 0.0
      %434 = vmatpush1.xpose.msra.mxu0 0.0
      %435 = vmatprep.subr.mxu0 0.0
      %436 = vmatpush1.xpose.msra.mxu0 0.0
      %437 = vmatprep.subr.mxu0 0.0
      %438 = vmatpush1.xpose.msra.mxu0 0.0
      %439 = vmatprep.subr.mxu0 0.0
      %440 = vmatpush1.xpose.msra.mxu0 0.0
      %441 = vmatprep.subr.mxu0 0.0
      %442 = vmatpush1.xpose.msra.mxu0 0.0
      %443 = vmatprep.subr.mxu0 0.0
      %444 = vmatpush1.xpose.msra.mxu0 0.0
      %445 = vmatprep.subr.mxu0 0.0
      %446 = vmatpush1.xpose.msra.mxu0 0.0
      %447 = vmatprep.subr.mxu0 0.0
      %448 = vmatpush1.xpose.msra.mxu0 0.0
      %449 = vmatprep.subr.mxu0 0.0
      %450 = vmatpush1.xpose.msra.mxu0 0.0
      %451 = vmatprep.subr.mxu0 0.0
      %452 = vmatpush1.xpose.msra.mxu0 0.0
      %453 = vmatprep.subr.mxu0 0.0
      %454 = vmatpush1.xpose.msra.mxu0 0.0
      %455 = vmatprep.subr.mxu0 0.0
      %456 = vmatpush1.xpose.msra.mxu0 0.0
      %457 = vmatprep.subr.mxu0 0.0
      %458 = vmatpush1.xpose.msra.mxu0 0.0
      %459 = vmatprep.subr.mxu0 0.0
      %460 = vmatpush1.xpose.msra.mxu0 0.0
      %461 = vmatprep.subr.mxu0 0.0
      %462 = vmatpush1.xpose.msra.mxu0 0.0
      %463 = vmatprep.subr.mxu0 0.0
      %464 = vmatpush1.xpose.msra.mxu0 0.0
      %465 = vmatprep.subr.mxu0 0.0
      %466 = vmatpush1.xpose.msra.mxu0 0.0
      %467 = vmatprep.subr.mxu0 0.0
      %468 = vmatpush1.xpose.msra.mxu0 0.0
      %469 = vmatprep.subr.mxu0 0.0
      %470 = vmatpush1.xpose.msra.mxu0 0.0
      %471 = vmatprep.subr.mxu0 0.0
      %472 = vmatpush1.xpose.msra.mxu0 0.0
      %473 = vmatprep.subr.mxu0 0.0
      %474 = vmatpush1.xpose.msra.mxu0 0.0
      %475 = vmatprep.subr.mxu0 0.0
      %476 = vmatpush1.xpose.msra.mxu0 0.0
      %477 = vmatprep.subr.mxu0 0.0
      %478 = vmatpush1.xpose.msra.mxu0 0.0
      %479 = vmatprep.subr.mxu0 0.0
      %480 = vmatpush1.xpose.msra.mxu0 0.0
      %481 = vmatprep.subr.mxu0 0.0
      %482 = vmatpush1.xpose.msra.mxu0 0.0
      %483 = vmatprep.subr.mxu0 0.0
      %484 = vmatpush1.xpose.msra.mxu0 0.0
      %485 = vmatprep.subr.mxu0 0.0
      %486 = vmatpush1.xpose.msra.mxu0 0.0
      %487 = vmatprep.subr.mxu0 0.0
      %488 = vmatpush1.xpose.msra.mxu0 0.0
      %489 = vmatprep.subr.mxu0 0.0
      %490 = vmatpush1.xpose.msra.mxu0 0.0
      %491 = vmatprep.subr.mxu0 0.0
      %492 = vmatpush1.xpose.msra.mxu0 0.0
      %493 = vmatprep.subr.mxu0 0.0
      %494 = vmatpush1.xpose.msra.mxu0 0.0
      %495 = vmatprep.mubr.f32.mxu0 0.0
      %496 = vmatmul.mubr.f32.gmra.mrb[0].mxu0 %v426
      %v497 = vpop.f32.mrb[0].mxu0
      %v498 = vadd.f32 0.0, %v497
      %v499 = vpop.f32.mrb[0].mxu0
      %500 = vdwg.mxu0
      %v501 = vsel %vm237, %v498, -inf
      %v502 = vsel %vm424, %v501, -inf
      %503 = vmax.xlane.f32.xlu0 %v502
      %v504 = vpop.xlane.xlu0 %503
      %v505 = vmax.f32 %v244, %v504
      %v506 = vsub.f32 %v244, %v505
      %v507 = vmul.f32 %v506, 1.442695
      %v508 = vpow.pop %v507
      %v509 = vsub.f32 %v501, %v505
      %v510 = vmul.f32 %v509, 1.442695
      %v511 = vpow.pop %v510
      %v512 = vmul.f32 %v508, %v245
      %v513 = vsel %vm424, %v511, 0.0
      %514 = vadd.xlane.f32.xlu0 %v513
      %v515 = vpop.xlane.xlu0 %514
      %v516 = vadd.f32 %v512, %v515
      %v517 = vmul.f32 %v508, %v246
      %v519 = vsel %vm424, %v511, 0
      %521 = vmatprep.subr.mxu0 0.0
      %522 = vmatpush1.msra.mxu0 %v423
      %523 = vmatprep.subr.mxu0 0.0
      %524 = vmatpush1.msra.mxu0 0.0
      %525 = vmatprep.subr.mxu0 0.0
      %526 = vmatpush1.msra.mxu0 0.0
      %527 = vmatprep.subr.mxu0 0.0
      %528 = vmatpush1.msra.mxu0 0.0
      %529 = vmatprep.subr.mxu0 0.0
      %530 = vmatpush1.msra.mxu0 0.0
      %531 = vmatprep.subr.mxu0 0.0
      %532 = vmatpush1.msra.mxu0 0.0
      %533 = vmatprep.subr.mxu0 0.0
      %534 = vmatpush1.msra.mxu0 0.0
      %535 = vmatprep.subr.mxu0 0.0
      %536 = vmatpush1.msra.mxu0 0.0
      %537 = vmatprep.subr.mxu0 0.0
      %538 = vmatpush1.msra.mxu0 0.0
      %539 = vmatprep.subr.mxu0 0.0
      %540 = vmatpush1.msra.mxu0 0.0
      %541 = vmatprep.subr.mxu0 0.0
      %542 = vmatpush1.msra.mxu0 0.0
      %543 = vmatprep.subr.mxu0 0.0
      %544 = vmatpush1.msra.mxu0 0.0
      %545 = vmatprep.subr.mxu0 0.0
      %546 = vmatpush1.msra.mxu0 0.0
      %547 = vmatprep.subr.mxu0 0.0
      %548 = vmatpush1.msra.mxu0 0.0
      %549 = vmatprep.subr.mxu0 0.0
      %550 = vmatpush1.msra.mxu0 0.0
      %551 = vmatprep.subr.mxu0 0.0
      %552 = vmatpush1.msra.mxu0 0.0
      %553 = vmatprep.subr.mxu0 0.0
      %554 = vmatpush1.msra.mxu0 0.0
      %555 = vmatprep.subr.mxu0 0.0
      %556 = vmatpush1.msra.mxu0 0.0
      %557 = vmatprep.subr.mxu0 0.0
      %558 = vmatpush1.msra.mxu0 0.0
      %559 = vmatprep.subr.mxu0 0.0
      %560 = vmatpush1.msra.mxu0 0.0
      %561 = vmatprep.subr.mxu0 0.0
      %562 = vmatpush1.msra.mxu0 0.0
      %563 = vmatprep.subr.mxu0 0.0
      %564 = vmatpush1.msra.mxu0 0.0
      %565 = vmatprep.subr.mxu0 0.0
      %566 = vmatpush1.msra.mxu0 0.0
      %567 = vmatprep.subr.mxu0 0.0
      %568 = vmatpush1.msra.mxu0 0.0
      %569 = vmatprep.subr.mxu0 0.0
      %570 = vmatpush1.msra.mxu0 0.0
      %571 = vmatprep.subr.mxu0 0.0
      %572 = vmatpush1.msra.mxu0 0.0
      %573 = vmatprep.subr.mxu0 0.0
      %574 = vmatpush1.msra.mxu0 0.0
      %575 = vmatprep.subr.mxu0 0.0
      %576 = vmatpush1.msra.mxu0 0.0
      %577 = vmatprep.subr.mxu0 0.0
      %578 = vmatpush1.msra.mxu0 0.0
      %579 = vmatprep.subr.mxu0 0.0
      %580 = vmatpush1.msra.mxu0 0.0
      %581 = vmatprep.subr.mxu0 0.0
      %582 = vmatpush1.msra.mxu0 0.0
      %583 = vmatprep.subr.mxu0 0.0
      %584 = vmatpush1.msra.mxu0 0.0
      %585 = vmatprep.mubr.f32.mxu0 0.0
      %586 = vmatmul.mubr.f32.gmra.mrb[0].mxu0 %v519
      %v587 = vpop.f32.mrb[0].mxu0
      %v588 = vadd.f32 0.0, %v587
      %v589 = vpop.f32.mrb[0].mxu0
      %590 = vdwg.mxu0
      %v591 = vadd.f32 %v517, %v588
      %v592 = vrcp.pop %v516
      %v593 = vmul.f32 %v591, %v592
      %594 = vst.msk [vmem:[%s230] sm:$0xff] %vm424, %v593
      // While loop
      $region40: #{gpt_forward.76} parent=31 // loop_pre_header
        _
      $region41: #{gpt_forward.76} parent=31 // loop_header
        %s596 = sphi 0, %s598
        %p597 = scmp.ge.s32.totalorder %s596, %s19
        %v601 = vphi -inf, %v691
        %v602 = vphi 0.0, %v702
        %v603 = vphi 0.0, %v781
      $region42: #{gpt_forward.76} parent=31 // loop_header_branch
        %600 = sbr.rel (%p597) target = $region46
      $region43: #{gpt_forward.76} parent=31 // loop_body
        %s604 = smul.u32 %s596, 8
        %s605 = scalar_lea.vmem %s219, %s604
        %v606 = vld [vmem:[%s605] sm:$0xff]
        %s607 = scalar_lea.vmem %s223, %s604
        %v608 = vld [vmem:[%s607] sm:$0xff]
        %609 = vrot.lane.b32.xlu0 %v232, 120
        %v610 = vpop.permute.xlu0 %609
        %612 = vrot.lane.b32.xlu0 %v606, 120
        %v613 = vpop.permute.xlu0 %612
        %v614 = vsel %vm424, %v610, 0
        %v616 = vsel %vm424, %v613, 0
        %618 = vmatprep.subr.mxu0 0.0
        %619 = vmatpush1.xpose.msra.mxu0 %v616
        %620 = vmatprep.subr.mxu0 0.0
        %621 = vmatpush1.xpose.msra.mxu0 0.0
        %622 = vmatprep.subr.mxu0 0.0
        %623 = vmatpush1.xpose.msra.mxu0 0.0
        %624 = vmatprep.subr.mxu0 0.0
        %625 = vmatpush1.xpose.msra.mxu0 0.0
        %626 = vmatprep.subr.mxu0 0.0
        %627 = vmatpush1.xpose.msra.mxu0 0.0
        %628 = vmatprep.subr.mxu0 0.0
        %629 = vmatpush1.xpose.msra.mxu0 0.0
        %630 = vmatprep.subr.mxu0 0.0
        %631 = vmatpush1.xpose.msra.mxu0 0.0
        %632 = vmatprep.subr.mxu0 0.0
        %633 = vmatpush1.xpose.msra.mxu0 0.0
        %634 = vmatprep.subr.mxu0 0.0
        %635 = vmatpush1.xpose.msra.mxu0 0.0
        %636 = vmatprep.subr.mxu0 0.0
        %637 = vmatpush1.xpose.msra.mxu0 0.0
        %638 = vmatprep.subr.mxu0 0.0
        %639 = vmatpush1.xpose.msra.mxu0 0.0
        %640 = vmatprep.subr.mxu0 0.0
        %641 = vmatpush1.xpose.msra.mxu0 0.0
        %642 = vmatprep.subr.mxu0 0.0
        %643 = vmatpush1.xpose.msra.mxu0 0.0
        %644 = vmatprep.subr.mxu0 0.0
        %645 = vmatpush1.xpose.msra.mxu0 0.0
        %646 = vmatprep.subr.mxu0 0.0
        %647 = vmatpush1.xpose.msra.mxu0 0.0
        %648 = vmatprep.subr.mxu0 0.0
        %649 = vmatpush1.xpose.msra.mxu0 0.0
        %650 = vmatprep.subr.mxu0 0.0
        %651 = vmatpush1.xpose.msra.mxu0 0.0
        %652 = vmatprep.subr.mxu0 0.0
        %653 = vmatpush1.xpose.msra.mxu0 0.0
        %654 = vmatprep.subr.mxu0 0.0
        %655 = vmatpush1.xpose.msra.mxu0 0.0
        %656 = vmatprep.subr.mxu0 0.0
        %657 = vmatpush1.xpose.msra.mxu0 0.0
        %658 = vmatprep.subr.mxu0 0.0
        %659 = vmatpush1.xpose.msra.mxu0 0.0
        %660 = vmatprep.subr.mxu0 0.0
        %661 = vmatpush1.xpose.msra.mxu0 0.0
        %662 = vmatprep.subr.mxu0 0.0
        %663 = vmatpush1.xpose.msra.mxu0 0.0
        %664 = vmatprep.subr.mxu0 0.0
        %665 = vmatpush1.xpose.msra.mxu0 0.0
        %666 = vmatprep.subr.mxu0 0.0
        %667 = vmatpush1.xpose.msra.mxu0 0.0
        %668 = vmatprep.subr.mxu0 0.0
        %669 = vmatpush1.xpose.msra.mxu0 0.0
        %670 = vmatprep.subr.mxu0 0.0
        %671 = vmatpush1.xpose.msra.mxu0 0.0
        %672 = vmatprep.subr.mxu0 0.0
        %673 = vmatpush1.xpose.msra.mxu0 0.0
        %674 = vmatprep.subr.mxu0 0.0
        %675 = vmatpush1.xpose.msra.mxu0 0.0
        %676 = vmatprep.subr.mxu0 0.0
        %677 = vmatpush1.xpose.msra.mxu0 0.0
        %678 = vmatprep.subr.mxu0 0.0
        %679 = vmatpush1.xpose.msra.mxu0 0.0
        %680 = vmatprep.subr.mxu0 0.0
        %681 = vmatpush1.xpose.msra.mxu0 0.0
        %682 = vmatprep.mubr.f32.mxu0 0.0
        %683 = vmatmul.mubr.f32.gmra.mrb[0].mxu0 %v614
        %v684 = vpop.f32.mrb[0].mxu0
        %v685 = vadd.f32 0.0, %v684
        %v686 = vpop.f32.mrb[0].mxu0
        %687 = vdwg.mxu0
        %v688 = vsel %vm424, %v685, -inf
        %689 = vmax.xlane.f32.xlu0 %v688
        %v690 = vpop.xlane.xlu0 %689
        %v691 = vmax.f32 %v601, %v690
        %v692 = vsub.f32 %v601, %v691
        %v693 = vmul.f32 %v692, 1.442695
        %v694 = vpow.pop %v693
        %v695 = vsub.f32 %v685, %v691
        %v696 = vmul.f32 %v695, 1.442695
        %v697 = vpow.pop %v696
        %v698 = vmul.f32 %v694, %v602
        %v699 = vsel %vm424, %v697, 0.0
        %700 = vadd.xlane.f32.xlu0 %v699
        %v701 = vpop.xlane.xlu0 %700
        %v702 = vadd.f32 %v698, %v701
        %v703 = vmul.f32 %v694, %v603
        %705 = vrot.lane.b32.xlu0 %v608, 120
        %v706 = vpop.permute.xlu0 %705
        %v709 = vsel %vm424, %v697, 0
        %711 = vmatprep.subr.mxu0 0.0
        %712 = vmatpush1.msra.mxu0 %v706
        %713 = vmatprep.subr.mxu0 0.0
        %714 = vmatpush1.msra.mxu0 0.0
        %715 = vmatprep.subr.mxu0 0.0
        %716 = vmatpush1.msra.mxu0 0.0
        %717 = vmatprep.subr.mxu0 0.0
        %718 = vmatpush1.msra.mxu0 0.0
        %719 = vmatprep.subr.mxu0 0.0
        %720 = vmatpush1.msra.mxu0 0.0
        %721 = vmatprep.subr.mxu0 0.0
        %722 = vmatpush1.msra.mxu0 0.0
        %723 = vmatprep.subr.mxu0 0.0
        %724 = vmatpush1.msra.mxu0 0.0
        %725 = vmatprep.subr.mxu0 0.0
        %726 = vmatpush1.msra.mxu0 0.0
        %727 = vmatprep.subr.mxu0 0.0
        %728 = vmatpush1.msra.mxu0 0.0
        %729 = vmatprep.subr.mxu0 0.0
        %730 = vmatpush1.msra.mxu0 0.0
        %731 = vmatprep.subr.mxu0 0.0
        %732 = vmatpush1.msra.mxu0 0.0
        %733 = vmatprep.subr.mxu0 0.0
        %734 = vmatpush1.msra.mxu0 0.0
        %735 = vmatprep.subr.mxu0 0.0
        %736 = vmatpush1.msra.mxu0 0.0
        %737 = vmatprep.subr.mxu0 0.0
        %738 = vmatpush1.msra.mxu0 0.0
        %739 = vmatprep.subr.mxu0 0.0
        %740 = vmatpush1.msra.mxu0 0.0
        %741 = vmatprep.subr.mxu0 0.0
        %742 = vmatpush1.msra.mxu0 0.0
        %743 = vmatprep.subr.mxu0 0.0
        %744 = vmatpush1.msra.mxu0 0.0
        %745 = vmatprep.subr.mxu0 0.0
        %746 = vmatpush1.msra.mxu0 0.0
        %747 = vmatprep.subr.mxu0 0.0
        %748 = vmatpush1.msra.mxu0 0.0
        %749 = vmatprep.subr.mxu0 0.0
        %750 = vmatpush1.msra.mxu0 0.0
        %751 = vmatprep.subr.mxu0 0.0
        %752 = vmatpush1.msra.mxu0 0.0
        %753 = vmatprep.subr.mxu0 0.0
        %754 = vmatpush1.msra.mxu0 0.0
        %755 = vmatprep.subr.mxu0 0.0
        %756 = vmatpush1.msra.mxu0 0.0
        %757 = vmatprep.subr.mxu0 0.0
        %758 = vmatpush1.msra.mxu0 0.0
        %759 = vmatprep.subr.mxu0 0.0
        %760 = vmatpush1.msra.mxu0 0.0
        %761 = vmatprep.subr.mxu0 0.0
        %762 = vmatpush1.msra.mxu0 0.0
        %763 = vmatprep.subr.mxu0 0.0
        %764 = vmatpush1.msra.mxu0 0.0
        %765 = vmatprep.subr.mxu0 0.0
        %766 = vmatpush1.msra.mxu0 0.0
        %767 = vmatprep.subr.mxu0 0.0
        %768 = vmatpush1.msra.mxu0 0.0
        %769 = vmatprep.subr.mxu0 0.0
        %770 = vmatpush1.msra.mxu0 0.0
        %771 = vmatprep.subr.mxu0 0.0
        %772 = vmatpush1.msra.mxu0 0.0
        %773 = vmatprep.subr.mxu0 0.0
        %774 = vmatpush1.msra.mxu0 0.0
        %775 = vmatprep.mubr.f32.mxu0 0.0
        %776 = vmatmul.mubr.f32.gmra.mrb[0].mxu0 %v709
        %v777 = vpop.f32.mrb[0].mxu0
        %v778 = vadd.f32 0.0, %v777
        %v779 = vpop.f32.mrb[0].mxu0
        %780 = vdwg.mxu0
        %v781 = vadd.f32 %v703, %v778
      $region44: #{gpt_forward.76} parent=31 // loop_footer
        %s598 = sadd.s32 %s596, 1
      $region45: #{gpt_forward.76} parent=31 // loop_footer_branch
        %595 = sbr.rel target = $region41
      $region46: #{gpt_forward.76} parent=31 // loop_exit
        _
      %v782 = vld [vmem:[%s420] sm:$0xff]
      %v783 = vld [vmem:[%s422] sm:$0xff]
      %784 = vrot.lane.b32.xlu0 %v232, 120
      %v785 = vpop.permute.xlu0 %784
      %787 = vrot.lane.b32.xlu0 %v782, 120
      %v788 = vpop.permute.xlu0 %787
      %v789 = vsel %vm424, %v785, 0
      %v791 = vsel %vm424, %v788, 0
      %793 = vmatprep.subr.mxu0 0.0
      %794 = vmatpush1.xpose.msra.mxu0 %v791
      %795 = vmatprep.subr.mxu0 0.0
      %796 = vmatpush1.xpose.msra.mxu0 0.0
      %797 = vmatprep.subr.mxu0 0.0
      %798 = vmatpush1.xpose.msra.mxu0 0.0
      %799 = vmatprep.subr.mxu0 0.0
      %800 = vmatpush1.xpose.msra.mxu0 0.0
      %801 = vmatprep.subr.mxu0 0.0
      %802 = vmatpush1.xpose.msra.mxu0 0.0
      %803 = vmatprep.subr.mxu0 0.0
      %804 = vmatpush1.xpose.msra.mxu0 0.0
      %805 = vmatprep.subr.mxu0 0.0
      %806 = vmatpush1.xpose.msra.mxu0 0.0
      %807 = vmatprep.subr.mxu0 0.0
      %808 = vmatpush1.xpose.msra.mxu0 0.0
      %809 = vmatprep.subr.mxu0 0.0
      %810 = vmatpush1.xpose.msra.mxu0 0.0
      %811 = vmatprep.subr.mxu0 0.0
      %812 = vmatpush1.xpose.msra.mxu0 0.0
      %813 = vmatprep.subr.mxu0 0.0
      %814 = vmatpush1.xpose.msra.mxu0 0.0
      %815 = vmatprep.subr.mxu0 0.0
      %816 = vmatpush1.xpose.msra.mxu0 0.0
      %817 = vmatprep.subr.mxu0 0.0
      %818 = vmatpush1.xpose.msra.mxu0 0.0
      %819 = vmatprep.subr.mxu0 0.0
      %820 = vmatpush1.xpose.msra.mxu0 0.0
      %821 = vmatprep.subr.mxu0 0.0
      %822 = vmatpush1.xpose.msra.mxu0 0.0
      %823 = vmatprep.subr.mxu0 0.0
      %824 = vmatpush1.xpose.msra.mxu0 0.0
      %825 = vmatprep.subr.mxu0 0.0
      %826 = vmatpush1.xpose.msra.mxu0 0.0
      %827 = vmatprep.subr.mxu0 0.0
      %828 = vmatpush1.xpose.msra.mxu0 0.0
      %829 = vmatprep.subr.mxu0 0.0
      %830 = vmatpush1.xpose.msra.mxu0 0.0
      %831 = vmatprep.subr.mxu0 0.0
      %832 = vmatpush1.xpose.msra.mxu0 0.0
      %833 = vmatprep.subr.mxu0 0.0
      %834 = vmatpush1.xpose.msra.mxu0 0.0
      %835 = vmatprep.subr.mxu0 0.0
      %836 = vmatpush1.xpose.msra.mxu0 0.0
      %837 = vmatprep.subr.mxu0 0.0
      %838 = vmatpush1.xpose.msra.mxu0 0.0
      %839 = vmatprep.subr.mxu0 0.0
      %840 = vmatpush1.xpose.msra.mxu0 0.0
      %841 = vmatprep.subr.mxu0 0.0
      %842 = vmatpush1.xpose.msra.mxu0 0.0
      %843 = vmatprep.subr.mxu0 0.0
      %844 = vmatpush1.xpose.msra.mxu0 0.0
      %845 = vmatprep.subr.mxu0 0.0
      %846 = vmatpush1.xpose.msra.mxu0 0.0
      %847 = vmatprep.subr.mxu0 0.0
      %848 = vmatpush1.xpose.msra.mxu0 0.0
      %849 = vmatprep.subr.mxu0 0.0
      %850 = vmatpush1.xpose.msra.mxu0 0.0
      %851 = vmatprep.subr.mxu0 0.0
      %852 = vmatpush1.xpose.msra.mxu0 0.0
      %853 = vmatprep.subr.mxu0 0.0
      %854 = vmatpush1.xpose.msra.mxu0 0.0
      %855 = vmatprep.subr.mxu0 0.0
      %856 = vmatpush1.xpose.msra.mxu0 0.0
      %857 = vmatprep.mubr.f32.mxu0 0.0
      %858 = vmatmul.mubr.f32.gmra.mrb[0].mxu0 %v789
      %v859 = vpop.f32.mrb[0].mxu0
      %v860 = vadd.f32 0.0, %v859
      %v861 = vpop.f32.mrb[0].mxu0
      %862 = vdwg.mxu0
      %v863 = vsel %vm237, %v860, -inf
      %v864 = vsel %vm424, %v863, -inf
      %865 = vmax.xlane.f32.xlu0 %v864
      %v866 = vpop.xlane.xlu0 %865
      %v867 = vmax.f32 %v601, %v866
      %v868 = vsub.f32 %v601, %v867
      %v869 = vmul.f32 %v868, 1.442695
      %v870 = vpow.pop %v869
      %v871 = vsub.f32 %v863, %v867
      %v872 = vmul.f32 %v871, 1.442695
      %v873 = vpow.pop %v872
      %v874 = vmul.f32 %v870, %v602
      %v875 = vsel %vm424, %v873, 0.0
      %876 = vadd.xlane.f32.xlu0 %v875
      %v877 = vpop.xlane.xlu0 %876
      %v878 = vadd.f32 %v874, %v877
      %v879 = vmul.f32 %v870, %v603
      %881 = vrot.lane.b32.xlu0 %v783, 120
      %v882 = vpop.permute.xlu0 %881
      %v885 = vsel %vm424, %v873, 0
      %887 = vmatprep.subr.mxu0 0.0
      %888 = vmatpush1.msra.mxu0 %v882
      %889 = vmatprep.subr.mxu0 0.0
      %890 = vmatpush1.msra.mxu0 0.0
      %891 = vmatprep.subr.mxu0 0.0
      %892 = vmatpush1.msra.mxu0 0.0
      %893 = vmatprep.subr.mxu0 0.0
      %894 = vmatpush1.msra.mxu0 0.0
      %895 = vmatprep.subr.mxu0 0.0
      %896 = vmatpush1.msra.mxu0 0.0
      %897 = vmatprep.subr.mxu0 0.0
      %898 = vmatpush1.msra.mxu0 0.0
      %899 = vmatprep.subr.mxu0 0.0
      %900 = vmatpush1.msra.mxu0 0.0
      %901 = vmatprep.subr.mxu0 0.0
      %902 = vmatpush1.msra.mxu0 0.0
      %903 = vmatprep.subr.mxu0 0.0
      %904 = vmatpush1.msra.mxu0 0.0
      %905 = vmatprep.subr.mxu0 0.0
      %906 = vmatpush1.msra.mxu0 0.0
      %907 = vmatprep.subr.mxu0 0.0
      %908 = vmatpush1.msra.mxu0 0.0
      %909 = vmatprep.subr.mxu0 0.0
      %910 = vmatpush1.msra.mxu0 0.0
      %911 = vmatprep.subr.mxu0 0.0
      %912 = vmatpush1.msra.mxu0 0.0
      %913 = vmatprep.subr.mxu0 0.0
      %914 = vmatpush1.msra.mxu0 0.0
      %915 = vmatprep.subr.mxu0 0.0
      %916 = vmatpush1.msra.mxu0 0.0
      %917 = vmatprep.subr.mxu0 0.0
      %918 = vmatpush1.msra.mxu0 0.0
      %919 = vmatprep.subr.mxu0 0.0
      %920 = vmatpush1.msra.mxu0 0.0
      %921 = vmatprep.subr.mxu0 0.0
      %922 = vmatpush1.msra.mxu0 0.0
      %923 = vmatprep.subr.mxu0 0.0
      %924 = vmatpush1.msra.mxu0 0.0
      %925 = vmatprep.subr.mxu0 0.0
      %926 = vmatpush1.msra.mxu0 0.0
      %927 = vmatprep.subr.mxu0 0.0
      %928 = vmatpush1.msra.mxu0 0.0
      %929 = vmatprep.subr.mxu0 0.0
      %930 = vmatpush1.msra.mxu0 0.0
      %931 = vmatprep.subr.mxu0 0.0
      %932 = vmatpush1.msra.mxu0 0.0
      %933 = vmatprep.subr.mxu0 0.0
      %934 = vmatpush1.msra.mxu0 0.0
      %935 = vmatprep.subr.mxu0 0.0
      %936 = vmatpush1.msra.mxu0 0.0
      %937 = vmatprep.subr.mxu0 0.0
      %938 = vmatpush1.msra.mxu0 0.0
      %939 = vmatprep.subr.mxu0 0.0
      %940 = vmatpush1.msra.mxu0 0.0
      %941 = vmatprep.subr.mxu0 0.0
      %942 = vmatpush1.msra.mxu0 0.0
      %943 = vmatprep.subr.mxu0 0.0
      %944 = vmatpush1.msra.mxu0 0.0
      %945 = vmatprep.subr.mxu0 0.0
      %946 = vmatpush1.msra.mxu0 0.0
      %947 = vmatprep.subr.mxu0 0.0
      %948 = vmatpush1.msra.mxu0 0.0
      %949 = vmatprep.subr.mxu0 0.0
      %950 = vmatpush1.msra.mxu0 0.0
      %951 = vmatprep.mubr.f32.mxu0 0.0
      %952 = vmatmul.mubr.f32.gmra.mrb[0].mxu0 %v885
      %v953 = vpop.f32.mrb[0].mxu0
      %v954 = vadd.f32 0.0, %v953
      %v955 = vpop.f32.mrb[0].mxu0
      %956 = vdwg.mxu0
      %v957 = vadd.f32 %v879, %v954
      %v958 = vrcp.pop %v878
      %v959 = vmul.f32 %v957, %v958
      %961 = vrot.lane.b32.xlu0 %v959, 8
      %v962 = vpop.permute.xlu0 %961
      %vm964 = vcmask 130112
      %965 = vst.msk [vmem:[%s230] sm:$0xff] %vm964, %v962
      // While loop
      $region47: #{gpt_forward.76} parent=31 // loop_pre_header
        _
      $region48: #{gpt_forward.76} parent=31 // loop_header
        %s967 = sphi 0, %s969
        %p968 = scmp.ge.s32.totalorder %s967, %s19
        %v972 = vphi -inf, %v1062
        %v973 = vphi 0.0, %v1073
        %v974 = vphi 0.0, %v1152
      $region49: #{gpt_forward.76} parent=31 // loop_header_branch
        %971 = sbr.rel (%p968) target = $region53
      $region50: #{gpt_forward.76} parent=31 // loop_body
        %s975 = smul.u32 %s967, 8
        %s976 = scalar_lea.vmem %s219, %s975
        %v977 = vld [vmem:[%s976] sm:$0xff]
        %s978 = scalar_lea.vmem %s223, %s975
        %v979 = vld [vmem:[%s978] sm:$0xff]
        %980 = vrot.lane.b32.xlu0 %v232, 112
        %v981 = vpop.permute.xlu0 %980
        %983 = vrot.lane.b32.xlu0 %v977, 112
        %v984 = vpop.permute.xlu0 %983
        %v985 = vsel %vm424, %v981, 0
        %v987 = vsel %vm424, %v984, 0
        %989 = vmatprep.subr.mxu0 0.0
        %990 = vmatpush1.xpose.msra.mxu0 %v987
        %991 = vmatprep.subr.mxu0 0.0
        %992 = vmatpush1.xpose.msra.mxu0 0.0
        %993 = vmatprep.subr.mxu0 0.0
        %994 = vmatpush1.xpose.msra.mxu0 0.0
        %995 = vmatprep.subr.mxu0 0.0
        %996 = vmatpush1.xpose.msra.mxu0 0.0
        %997 = vmatprep.subr.mxu0 0.0
        %998 = vmatpush1.xpose.msra.mxu0 0.0
        %999 = vmatprep.subr.mxu0 0.0
        %1000 = vmatpush1.xpose.msra.mxu0 0.0
        %1001 = vmatprep.subr.mxu0 0.0
        %1002 = vmatpush1.xpose.msra.mxu0 0.0
        %1003 = vmatprep.subr.mxu0 0.0
        %1004 = vmatpush1.xpose.msra.mxu0 0.0
        %1005 = vmatprep.subr.mxu0 0.0
        %1006 = vmatpush1.xpose.msra.mxu0 0.0
        %1007 = vmatprep.subr.mxu0 0.0
        %1008 = vmatpush1.xpose.msra.mxu0 0.0
        %1009 = vmatprep.subr.mxu0 0.0
        %1010 = vmatpush1.xpose.msra.mxu0 0.0
        %1011 = vmatprep.subr.mxu0 0.0
        %1012 = vmatpush1.xpose.msra.mxu0 0.0
        %1013 = vmatprep.subr.mxu0 0.0
        %1014 = vmatpush1.xpose.msra.mxu0 0.0
        %1015 = vmatprep.subr.mxu0 0.0
        %1016 = vmatpush1.xpose.msra.mxu0 0.0
        %1017 = vmatprep.subr.mxu0 0.0
        %1018 = vmatpush1.xpose.msra.mxu0 0.0
        %1019 = vmatprep.subr.mxu0 0.0
        %1020 = vmatpush1.xpose.msra.mxu0 0.0
        %1021 = vmatprep.subr.mxu0 0.0
        %1022 = vmatpush1.xpose.msra.mxu0 0.0
        %1023 = vmatprep.subr.mxu0 0.0
        %1024 = vmatpush1.xpose.msra.mxu0 0.0
        %1025 = vmatprep.subr.mxu0 0.0
        %1026 = vmatpush1.xpose.msra.mxu0 0.0
        %1027 = vmatprep.subr.mxu0 0.0
        %1028 = vmatpush1.xpose.msra.mxu0 0.0
        %1029 = vmatprep.subr.mxu0 0.0
        %1030 = vmatpush1.xpose.msra.mxu0 0.0
        %1031 = vmatprep.subr.mxu0 0.0
        %1032 = vmatpush1.xpose.msra.mxu0 0.0
        %1033 = vmatprep.subr.mxu0 0.0
        %1034 = vmatpush1.xpose.msra.mxu0 0.0
        %1035 = vmatprep.subr.mxu0 0.0
        %1036 = vmatpush1.xpose.msra.mxu0 0.0
        %1037 = vmatprep.subr.mxu0 0.0
        %1038 = vmatpush1.xpose.msra.mxu0 0.0
        %1039 = vmatprep.subr.mxu0 0.0
        %1040 = vmatpush1.xpose.msra.mxu0 0.0
        %1041 = vmatprep.subr.mxu0 0.0
        %1042 = vmatpush1.xpose.msra.mxu0 0.0
        %1043 = vmatprep.subr.mxu0 0.0
        %1044 = vmatpush1.xpose.msra.mxu0 0.0
        %1045 = vmatprep.subr.mxu0 0.0
        %1046 = vmatpush1.xpose.msra.mxu0 0.0
        %1047 = vmatprep.subr.mxu0 0.0
        %1048 = vmatpush1.xpose.msra.mxu0 0.0
        %1049 = vmatprep.subr.mxu0 0.0
        %1050 = vmatpush1.xpose.msra.mxu0 0.0
        %1051 = vmatprep.subr.mxu0 0.0
        %1052 = vmatpush1.xpose.msra.mxu0 0.0
        %1053 = vmatprep.mubr.f32.mxu0 0.0
        %1054 = vmatmul.mubr.f32.gmra.mrb[0].mxu0 %v985
        %v1055 = vpop.f32.mrb[0].mxu0
        %v1056 = vadd.f32 0.0, %v1055
        %v1057 = vpop.f32.mrb[0].mxu0
        %1058 = vdwg.mxu0
        %v1059 = vsel %vm424, %v1056, -inf
        %1060 = vmax.xlane.f32.xlu0 %v1059
        %v1061 = vpop.xlane.xlu0 %1060
        %v1062 = vmax.f32 %v972, %v1061
        %v1063 = vsub.f32 %v972, %v1062
        %v1064 = vmul.f32 %v1063, 1.442695
        %v1065 = vpow.pop %v1064
        %v1066 = vsub.f32 %v1056, %v1062
        %v1067 = vmul.f32 %v1066, 1.442695
        %v1068 = vpow.pop %v1067
        %v1069 = vmul.f32 %v1065, %v973
        %v1070 = vsel %vm424, %v1068, 0.0
        %1071 = vadd.xlane.f32.xlu0 %v1070
        %v1072 = vpop.xlane.xlu0 %1071
        %v1073 = vadd.f32 %v1069, %v1072
        %v1074 = vmul.f32 %v1065, %v974
        %1076 = vrot.lane.b32.xlu0 %v979, 112
        %v1077 = vpop.permute.xlu0 %1076
        %v1080 = vsel %vm424, %v1068, 0
        %1082 = vmatprep.subr.mxu0 0.0
        %1083 = vmatpush1.msra.mxu0 %v1077
        %1084 = vmatprep.subr.mxu0 0.0
        %1085 = vmatpush1.msra.mxu0 0.0
        %1086 = vmatprep.subr.mxu0 0.0
        %1087 = vmatpush1.msra.mxu0 0.0
        %1088 = vmatprep.subr.mxu0 0.0
        %1089 = vmatpush1.msra.mxu0 0.0
        %1090 = vmatprep.subr.mxu0 0.0
        %1091 = vmatpush1.msra.mxu0 0.0
        %1092 = vmatprep.subr.mxu0 0.0
        %1093 = vmatpush1.msra.mxu0 0.0
        %1094 = vmatprep.subr.mxu0 0.0
        %1095 = vmatpush1.msra.mxu0 0.0
        %1096 = vmatprep.subr.mxu0 0.0
        %1097 = vmatpush1.msra.mxu0 0.0
        %1098 = vmatprep.subr.mxu0 0.0
        %1099 = vmatpush1.msra.mxu0 0.0
        %1100 = vmatprep.subr.mxu0 0.0
        %1101 = vmatpush1.msra.mxu0 0.0
        %1102 = vmatprep.subr.mxu0 0.0
        %1103 = vmatpush1.msra.mxu0 0.0
        %1104 = vmatprep.subr.mxu0 0.0
        %1105 = vmatpush1.msra.mxu0 0.0
        %1106 = vmatprep.subr.mxu0 0.0
        %1107 = vmatpush1.msra.mxu0 0.0
        %1108 = vmatprep.subr.mxu0 0.0
        %1109 = vmatpush1.msra.mxu0 0.0
        %1110 = vmatprep.subr.mxu0 0.0
        %1111 = vmatpush1.msra.mxu0 0.0
        %1112 = vmatprep.subr.mxu0 0.0
        %1113 = vmatpush1.msra.mxu0 0.0
        %1114 = vmatprep.subr.mxu0 0.0
        %1115 = vmatpush1.msra.mxu0 0.0
        %1116 = vmatprep.subr.mxu0 0.0
        %1117 = vmatpush1.msra.mxu0 0.0
        %1118 = vmatprep.subr.mxu0 0.0
        %1119 = vmatpush1.msra.mxu0 0.0
        %1120 = vmatprep.subr.mxu0 0.0
        %1121 = vmatpush1.msra.mxu0 0.0
        %1122 = vmatprep.subr.mxu0 0.0
        %1123 = vmatpush1.msra.mxu0 0.0
        %1124 = vmatprep.subr.mxu0 0.0
        %1125 = vmatpush1.msra.mxu0 0.0
        %1126 = vmatprep.subr.mxu0 0.0
        %1127 = vmatpush1.msra.mxu0 0.0
        %1128 = vmatprep.subr.mxu0 0.0
        %1129 = vmatpush1.msra.mxu0 0.0
        %1130 = vmatprep.subr.mxu0 0.0
        %1131 = vmatpush1.msra.mxu0 0.0
        %1132 = vmatprep.subr.mxu0 0.0
        %1133 = vmatpush1.msra.mxu0 0.0
        %1134 = vmatprep.subr.mxu0 0.0
        %1135 = vmatpush1.msra.mxu0 0.0
        %1136 = vmatprep.subr.mxu0 0.0
        %1137 = vmatpush1.msra.mxu0 0.0
        %1138 = vmatprep.subr.mxu0 0.0
        %1139 = vmatpush1.msra.mxu0 0.0
        %1140 = vmatprep.subr.mxu0 0.0
        %1141 = vmatpush1.msra.mxu0 0.0
        %1142 = vmatprep.subr.mxu0 0.0
        %1143 = vmatpush1.msra.mxu0 0.0
        %1144 = vmatprep.subr.mxu0 0.0
        %1145 = vmatpush1.msra.mxu0 0.0
        %1146 = vmatprep.mubr.f32.mxu0 0.0
        %1147 = vmatmul.mubr.f32.gmra.mrb[0].mxu0 %v1080
        %v1148 = vpop.f32.mrb[0].mxu0
        %v1149 = vadd.f32 0.0, %v1148
        %v1150 = vpop.f32.mrb[0].mxu0
        %1151 = vdwg.mxu0
        %v1152 = vadd.f32 %v1074, %v1149
      $region51: #{gpt_forward.76} parent=31 // loop_footer
        %s969 = sadd.s32 %s967, 1
      $region52: #{gpt_forward.76} parent=31 // loop_footer_branch
        %966 = sbr.rel target = $region48
      $region53: #{gpt_forward.76} parent=31 // loop_exit
        _
      %v1153 = vld [vmem:[%s420] sm:$0xff]
      %v1154 = vld [vmem:[%s422] sm:$0xff]
      %1155 = vrot.lane.b32.xlu0 %v232, 112
      %v1156 = vpop.permute.xlu0 %1155
      %1158 = vrot.lane.b32.xlu0 %v1153, 112
      %v1159 = vpop.permute.xlu0 %1158
      %v1160 = vsel %vm424, %v1156, 0
      %v1162 = vsel %vm424, %v1159, 0
      %1164 = vmatprep.subr.mxu0 0.0
      %1165 = vmatpush1.xpose.msra.mxu0 %v1162
      %1166 = vmatprep.subr.mxu0 0.0
      %1167 = vmatpush1.xpose.msra.mxu0 0.0
      %1168 = vmatprep.subr.mxu0 0.0
      %1169 = vmatpush1.xpose.msra.mxu0 0.0
      %1170 = vmatprep.subr.mxu0 0.0
      %1171 = vmatpush1.xpose.msra.mxu0 0.0
      %1172 = vmatprep.subr.mxu0 0.0
      %1173 = vmatpush1.xpose.msra.mxu0 0.0
      %1174 = vmatprep.subr.mxu0 0.0
      %1175 = vmatpush1.xpose.msra.mxu0 0.0
      %1176 = vmatprep.subr.mxu0 0.0
      %1177 = vmatpush1.xpose.msra.mxu0 0.0
      %1178 = vmatprep.subr.mxu0 0.0
      %1179 = vmatpush1.xpose.msra.mxu0 0.0
      %1180 = vmatprep.subr.mxu0 0.0
      %1181 = vmatpush1.xpose.msra.mxu0 0.0
      %1182 = vmatprep.subr.mxu0 0.0
      %1183 = vmatpush1.xpose.msra.mxu0 0.0
      %1184 = vmatprep.subr.mxu0 0.0
      %1185 = vmatpush1.xpose.msra.mxu0 0.0
      %1186 = vmatprep.subr.mxu0 0.0
      %1187 = vmatpush1.xpose.msra.mxu0 0.0
      %1188 = vmatprep.subr.mxu0 0.0
      %1189 = vmatpush1.xpose.msra.mxu0 0.0
      %1190 = vmatprep.subr.mxu0 0.0
      %1191 = vmatpush1.xpose.msra.mxu0 0.0
      %1192 = vmatprep.subr.mxu0 0.0
      %1193 = vmatpush1.xpose.msra.mxu0 0.0
      %1194 = vmatprep.subr.mxu0 0.0
      %1195 = vmatpush1.xpose.msra.mxu0 0.0
      %1196 = vmatprep.subr.mxu0 0.0
      %1197 = vmatpush1.xpose.msra.mxu0 0.0
      %1198 = vmatprep.subr.mxu0 0.0
      %1199 = vmatpush1.xpose.msra.mxu0 0.0
      %1200 = vmatprep.subr.mxu0 0.0
      %1201 = vmatpush1.xpose.msra.mxu0 0.0
      %1202 = vmatprep.subr.mxu0 0.0
      %1203 = vmatpush1.xpose.msra.mxu0 0.0
      %1204 = vmatprep.subr.mxu0 0.0
      %1205 = vmatpush1.xpose.msra.mxu0 0.0
      %1206 = vmatprep.subr.mxu0 0.0
      %1207 = vmatpush1.xpose.msra.mxu0 0.0
      %1208 = vmatprep.subr.mxu0 0.0
      %1209 = vmatpush1.xpose.msra.mxu0 0.0
      %1210 = vmatprep.subr.mxu0 0.0
      %1211 = vmatpush1.xpose.msra.mxu0 0.0
      %1212 = vmatprep.subr.mxu0 0.0
      %1213 = vmatpush1.xpose.msra.mxu0 0.0
      %1214 = vmatprep.subr.mxu0 0.0
      %1215 = vmatpush1.xpose.msra.mxu0 0.0
      %1216 = vmatprep.subr.mxu0 0.0
      %1217 = vmatpush1.xpose.msra.mxu0 0.0
      %1218 = vmatprep.subr.mxu0 0.0
      %1219 = vmatpush1.xpose.msra.mxu0 0.0
      %1220 = vmatprep.subr.mxu0 0.0
      %1221 = vmatpush1.xpose.msra.mxu0 0.0
      %1222 = vmatprep.subr.mxu0 0.0
      %1223 = vmatpush1.xpose.msra.mxu0 0.0
      %1224 = vmatprep.subr.mxu0 0.0
      %1225 = vmatpush1.xpose.msra.mxu0 0.0
      %1226 = vmatprep.subr.mxu0 0.0
      %1227 = vmatpush1.xpose.msra.mxu0 0.0
      %1228 = vmatprep.mubr.f32.mxu0 0.0
      %1229 = vmatmul.mubr.f32.gmra.mrb[0].mxu0 %v1160
      %v1230 = vpop.f32.mrb[0].mxu0
      %v1231 = vadd.f32 0.0, %v1230
      %v1232 = vpop.f32.mrb[0].mxu0
      %1233 = vdwg.mxu0
      %v1234 = vsel %vm237, %v1231, -inf
      %v1235 = vsel %vm424, %v1234, -inf
      %1236 = vmax.xlane.f32.xlu0 %v1235
      %v1237 = vpop.xlane.xlu0 %1236
      %v1238 = vmax.f32 %v972, %v1237
      %v1239 = vsub.f32 %v972, %v1238
      %v1240 = vmul.f32 %v1239, 1.442695
      %v1241 = vpow.pop %v1240
      %v1242 = vsub.f32 %v1234, %v1238
      %v1243 = vmul.f32 %v1242, 1.442695
      %v1244 = vpow.pop %v1243
      %v1245 = vmul.f32 %v1241, %v973
      %v1246 = vsel %vm424, %v1244, 0.0
      %1247 = vadd.xlane.f32.xlu0 %v1246
      %v1248 = vpop.xlane.xlu0 %1247
      %v1249 = vadd.f32 %v1245, %v1248
      %v1250 = vmul.f32 %v1241, %v974
      %1252 = vrot.lane.b32.xlu0 %v1154, 112
      %v1253 = vpop.permute.xlu0 %1252
      %v1256 = vsel %vm424, %v1244, 0
      %1258 = vmatprep.subr.mxu0 0.0
      %1259 = vmatpush1.msra.mxu0 %v1253
      %1260 = vmatprep.subr.mxu0 0.0
      %1261 = vmatpush1.msra.mxu0 0.0
      %1262 = vmatprep.subr.mxu0 0.0
      %1263 = vmatpush1.msra.mxu0 0.0
      %1264 = vmatprep.subr.mxu0 0.0
      %1265 = vmatpush1.msra.mxu0 0.0
      %1266 = vmatprep.subr.mxu0 0.0
      %1267 = vmatpush1.msra.mxu0 0.0
      %1268 = vmatprep.subr.mxu0 0.0
      %1269 = vmatpush1.msra.mxu0 0.0
      %1270 = vmatprep.subr.mxu0 0.0
      %1271 = vmatpush1.msra.mxu0 0.0
      %1272 = vmatprep.subr.mxu0 0.0
      %1273 = vmatpush1.msra.mxu0 0.0
      %1274 = vmatprep.subr.mxu0 0.0
      %1275 = vmatpush1.msra.mxu0 0.0
      %1276 = vmatprep.subr.mxu0 0.0
      %1277 = vmatpush1.msra.mxu0 0.0
      %1278 = vmatprep.subr.mxu0 0.0
      %1279 = vmatpush1.msra.mxu0 0.0
      %1280 = vmatprep.subr.mxu0 0.0
      %1281 = vmatpush1.msra.mxu0 0.0
      %1282 = vmatprep.subr.mxu0 0.0
      %1283 = vmatpush1.msra.mxu0 0.0
      %1284 = vmatprep.subr.mxu0 0.0
      %1285 = vmatpush1.msra.mxu0 0.0
      %1286 = vmatprep.subr.mxu0 0.0
      %1287 = vmatpush1.msra.mxu0 0.0
      %1288 = vmatprep.subr.mxu0 0.0
      %1289 = vmatpush1.msra.mxu0 0.0
      %1290 = vmatprep.subr.mxu0 0.0
      %1291 = vmatpush1.msra.mxu0 0.0
      %1292 = vmatprep.subr.mxu0 0.0
      %1293 = vmatpush1.msra.mxu0 0.0
      %1294 = vmatprep.subr.mxu0 0.0
      %1295 = vmatpush1.msra.mxu0 0.0
      %1296 = vmatprep.subr.mxu0 0.0
      %1297 = vmatpush1.msra.mxu0 0.0
      %1298 = vmatprep.subr.mxu0 0.0
      %1299 = vmatpush1.msra.mxu0 0.0
      %1300 = vmatprep.subr.mxu0 0.0
      %1301 = vmatpush1.msra.mxu0 0.0
      %1302 = vmatprep.subr.mxu0 0.0
      %1303 = vmatpush1.msra.mxu0 0.0
      %1304 = vmatprep.subr.mxu0 0.0
      %1305 = vmatpush1.msra.mxu0 0.0
      %1306 = vmatprep.subr.mxu0 0.0
      %1307 = vmatpush1.msra.mxu0 0.0
      %1308 = vmatprep.subr.mxu0 0.0
      %1309 = vmatpush1.msra.mxu0 0.0
      %1310 = vmatprep.subr.mxu0 0.0
      %1311 = vmatpush1.msra.mxu0 0.0
      %1312 = vmatprep.subr.mxu0 0.0
      %1313 = vmatpush1.msra.mxu0 0.0
      %1314 = vmatprep.subr.mxu0 0.0
      %1315 = vmatpush1.msra.mxu0 0.0
      %1316 = vmatprep.subr.mxu0 0.0
      %1317 = vmatpush1.msra.mxu0 0.0
      %1318 = vmatprep.subr.mxu0 0.0
      %1319 = vmatpush1.msra.mxu0 0.0
      %1320 = vmatprep.subr.mxu0 0.0
      %1321 = vmatpush1.msra.mxu0 0.0
      %1322 = vmatprep.mubr.f32.mxu0 0.0
      %1323 = vmatmul.mubr.f32.gmra.mrb[0].mxu0 %v1256
      %v1324 = vpop.f32.mrb[0].mxu0
      %v1325 = vadd.f32 0.0, %v1324
      %v1326 = vpop.f32.mrb[0].mxu0
      %1327 = vdwg.mxu0
      %v1328 = vadd.f32 %v1250, %v1325
      %v1329 = vrcp.pop %v1249
      %v1330 = vmul.f32 %v1328, %v1329
      %1332 = vrot.lane.b32.xlu0 %v1330, 16
      %v1333 = vpop.permute.xlu0 %1332
      %vm1335 = vcmask 195712
      %1336 = vst.msk [vmem:[%s230] sm:$0xff] %vm1335, %v1333
      // While loop
      $region54: #{gpt_forward.76} parent=31 // loop_pre_header
        _
      $region55: #{gpt_forward.76} parent=31 // loop_header
        %s1338 = sphi 0, %s1340
        %p1339 = scmp.ge.s32.totalorder %s1338, %s19
        %v1343 = vphi -inf, %v1433
        %v1344 = vphi 0.0, %v1444
        %v1345 = vphi 0.0, %v1523
      $region56: #{gpt_forward.76} parent=31 // loop_header_branch
        %1342 = sbr.rel (%p1339) target = $region60
      $region57: #{gpt_forward.76} parent=31 // loop_body
        %s1346 = smul.u32 %s1338, 8
        %s1347 = scalar_lea.vmem %s219, %s1346
        %v1348 = vld [vmem:[%s1347] sm:$0xff]
        %s1349 = scalar_lea.vmem %s223, %s1346
        %v1350 = vld [vmem:[%s1349] sm:$0xff]
        %1351 = vrot.lane.b32.xlu0 %v232, 104
        %v1352 = vpop.permute.xlu0 %1351
        %1354 = vrot.lane.b32.xlu0 %v1348, 104
        %v1355 = vpop.permute.xlu0 %1354
        %v1356 = vsel %vm424, %v1352, 0
        %v1358 = vsel %vm424, %v1355, 0
        %1360 = vmatprep.subr.mxu0 0.0
        %1361 = vmatpush1.xpose.msra.mxu0 %v1358
        %1362 = vmatprep.subr.mxu0 0.0
        %1363 = vmatpush1.xpose.msra.mxu0 0.0
        %1364 = vmatprep.subr.mxu0 0.0
        %1365 = vmatpush1.xpose.msra.mxu0 0.0
        %1366 = vmatprep.subr.mxu0 0.0
        %1367 = vmatpush1.xpose.msra.mxu0 0.0
        %1368 = vmatprep.subr.mxu0 0.0
        %1369 = vmatpush1.xpose.msra.mxu0 0.0
        %1370 = vmatprep.subr.mxu0 0.0
        %1371 = vmatpush1.xpose.msra.mxu0 0.0
        %1372 = vmatprep.subr.mxu0 0.0
        %1373 = vmatpush1.xpose.msra.mxu0 0.0
        %1374 = vmatprep.subr.mxu0 0.0
        %1375 = vmatpush1.xpose.msra.mxu0 0.0
        %1376 = vmatprep.subr.mxu0 0.0
        %1377 = vmatpush1.xpose.msra.mxu0 0.0
        %1378 = vmatprep.subr.mxu0 0.0
        %1379 = vmatpush1.xpose.msra.mxu0 0.0
        %1380 = vmatprep.subr.mxu0 0.0
        %1381 = vmatpush1.xpose.msra.mxu0 0.0
        %1382 = vmatprep.subr.mxu0 0.0
        %1383 = vmatpush1.xpose.msra.mxu0 0.0
        %1384 = vmatprep.subr.mxu0 0.0
        %1385 = vmatpush1.xpose.msra.mxu0 0.0
        %1386 = vmatprep.subr.mxu0 0.0
        %1387 = vmatpush1.xpose.msra.mxu0 0.0
        %1388 = vmatprep.subr.mxu0 0.0
        %1389 = vmatpush1.xpose.msra.mxu0 0.0
        %1390 = vmatprep.subr.mxu0 0.0
        %1391 = vmatpush1.xpose.msra.mxu0 0.0
        %1392 = vmatprep.subr.mxu0 0.0
        %1393 = vmatpush1.xpose.msra.mxu0 0.0
        %1394 = vmatprep.subr.mxu0 0.0
        %1395 = vmatpush1.xpose.msra.mxu0 0.0
        %1396 = vmatprep.subr.mxu0 0.0
        %1397 = vmatpush1.xpose.msra.mxu0 0.0
        %1398 = vmatprep.subr.mxu0 0.0
        %1399 = vmatpush1.xpose.msra.mxu0 0.0
        %1400 = vmatprep.subr.mxu0 0.0
        %1401 = vmatpush1.xpose.msra.mxu0 0.0
        %1402 = vmatprep.subr.mxu0 0.0
        %1403 = vmatpush1.xpose.msra.mxu0 0.0
        %1404 = vmatprep.subr.mxu0 0.0
        %1405 = vmatpush1.xpose.msra.mxu0 0.0
        %1406 = vmatprep.subr.mxu0 0.0
        %1407 = vmatpush1.xpose.msra.mxu0 0.0
        %1408 = vmatprep.subr.mxu0 0.0
        %1409 = vmatpush1.xpose.msra.mxu0 0.0
        %1410 = vmatprep.subr.mxu0 0.0
        %1411 = vmatpush1.xpose.msra.mxu0 0.0
        %1412 = vmatprep.subr.mxu0 0.0
        %1413 = vmatpush1.xpose.msra.mxu0 0.0
        %1414 = vmatprep.subr.mxu0 0.0
        %1415 = vmatpush1.xpose.msra.mxu0 0.0
        %1416 = vmatprep.subr.mxu0 0.0
        %1417 = vmatpush1.xpose.msra.mxu0 0.0
        %1418 = vmatprep.subr.mxu0 0.0
        %1419 = vmatpush1.xpose.msra.mxu0 0.0
        %1420 = vmatprep.subr.mxu0 0.0
        %1421 = vmatpush1.xpose.msra.mxu0 0.0
        %1422 = vmatprep.subr.mxu0 0.0
        %1423 = vmatpush1.xpose.msra.mxu0 0.0
        %1424 = vmatprep.mubr.f32.mxu0 0.0
        %1425 = vmatmul.mubr.f32.gmra.mrb[0].mxu0 %v1356
        %v1426 = vpop.f32.mrb[0].mxu0
        %v1427 = vadd.f32 0.0, %v1426
        %v1428 = vpop.f32.mrb[0].mxu0
        %1429 = vdwg.mxu0
        %v1430 = vsel %vm424, %v1427, -inf
        %1431 = vmax.xlane.f32.xlu0 %v1430
        %v1432 = vpop.xlane.xlu0 %1431
        %v1433 = vmax.f32 %v1343, %v1432
        %v1434 = vsub.f32 %v1343, %v1433
        %v1435 = vmul.f32 %v1434, 1.442695
        %v1436 = vpow.pop %v1435
        %v1437 = vsub.f32 %v1427, %v1433
        %v1438 = vmul.f32 %v1437, 1.442695
        %v1439 = vpow.pop %v1438
        %v1440 = vmul.f32 %v1436, %v1344
        %v1441 = vsel %vm424, %v1439, 0.0
        %1442 = vadd.xlane.f32.xlu0 %v1441
        %v1443 = vpop.xlane.xlu0 %1442
        %v1444 = vadd.f32 %v1440, %v1443
        %v1445 = vmul.f32 %v1436, %v1345
        %1447 = vrot.lane.b32.xlu0 %v1350, 104
        %v1448 = vpop.permute.xlu0 %1447
        %v1451 = vsel %vm424, %v1439, 0
        %1453 = vmatprep.subr.mxu0 0.0
        %1454 = vmatpush1.msra.mxu0 %v1448
        %1455 = vmatprep.subr.mxu0 0.0
        %1456 = vmatpush1.msra.mxu0 0.0
        %1457 = vmatprep.subr.mxu0 0.0
        %1458 = vmatpush1.msra.mxu0 0.0
        %1459 = vmatprep.subr.mxu0 0.0
        %1460 = vmatpush1.msra.mxu0 0.0
        %1461 = vmatprep.subr.mxu0 0.0
        %1462 = vmatpush1.msra.mxu0 0.0
        %1463 = vmatprep.subr.mxu0 0.0
        %1464 = vmatpush1.msra.mxu0 0.0
        %1465 = vmatprep.subr.mxu0 0.0
        %1466 = vmatpush1.msra.mxu0 0.0
        %1467 = vmatprep.subr.mxu0 0.0
        %1468 = vmatpush1.msra.mxu0 0.0
        %1469 = vmatprep.subr.mxu0 0.0
        %1470 = vmatpush1.msra.mxu0 0.0
        %1471 = vmatprep.subr.mxu0 0.0
        %1472 = vmatpush1.msra.mxu0 0.0
        %1473 = vmatprep.subr.mxu0 0.0
        %1474 = vmatpush1.msra.mxu0 0.0
        %1475 = vmatprep.subr.mxu0 0.0
        %1476 = vmatpush1.msra.mxu0 0.0
        %1477 = vmatprep.subr.mxu0 0.0
        %1478 = vmatpush1.msra.mxu0 0.0
        %1479 = vmatprep.subr.mxu0 0.0
        %1480 = vmatpush1.msra.mxu0 0.0
        %1481 = vmatprep.subr.mxu0 0.0
        %1482 = vmatpush1.msra.mxu0 0.0
        %1483 = vmatprep.subr.mxu0 0.0
        %1484 = vmatpush1.msra.mxu0 0.0
        %1485 = vmatprep.subr.mxu0 0.0
        %1486 = vmatpush1.msra.mxu0 0.0
        %1487 = vmatprep.subr.mxu0 0.0
        %1488 = vmatpush1.msra.mxu0 0.0
        %1489 = vmatprep.subr.mxu0 0.0
        %1490 = vmatpush1.msra.mxu0 0.0
        %1491 = vmatprep.subr.mxu0 0.0
        %1492 = vmatpush1.msra.mxu0 0.0
        %1493 = vmatprep.subr.mxu0 0.0
        %1494 = vmatpush1.msra.mxu0 0.0
        %1495 = vmatprep.subr.mxu0 0.0
        %1496 = vmatpush1.msra.mxu0 0.0
        %1497 = vmatprep.subr.mxu0 0.0
        %1498 = vmatpush1.msra.mxu0 0.0
        %1499 = vmatprep.subr.mxu0 0.0
        %1500 = vmatpush1.msra.mxu0 0.0
        %1501 = vmatprep.subr.mxu0 0.0
        %1502 = vmatpush1.msra.mxu0 0.0
        %1503 = vmatprep.subr.mxu0 0.0
        %1504 = vmatpush1.msra.mxu0 0.0
        %1505 = vmatprep.subr.mxu0 0.0
        %1506 = vmatpush1.msra.mxu0 0.0
        %1507 = vmatprep.subr.mxu0 0.0
        %1508 = vmatpush1.msra.mxu0 0.0
        %1509 = vmatprep.subr.mxu0 0.0
        %1510 = vmatpush1.msra.mxu0 0.0
        %1511 = vmatprep.subr.mxu0 0.0
        %1512 = vmatpush1.msra.mxu0 0.0
        %1513 = vmatprep.subr.mxu0 0.0
        %1514 = vmatpush1.msra.mxu0 0.0
        %1515 = vmatprep.subr.mxu0 0.0
        %1516 = vmatpush1.msra.mxu0 0.0
        %1517 = vmatprep.mubr.f32.mxu0 0.0
        %1518 = vmatmul.mubr.f32.gmra.mrb[0].mxu0 %v1451
        %v1519 = vpop.f32.mrb[0].mxu0
        %v1520 = vadd.f32 0.0, %v1519
        %v1521 = vpop.f32.mrb[0].mxu0
        %1522 = vdwg.mxu0
        %v1523 = vadd.f32 %v1445, %v1520
      $region58: #{gpt_forward.76} parent=31 // loop_footer
        %s1340 = sadd.s32 %s1338, 1
      $region59: #{gpt_forward.76} parent=31 // loop_footer_branch
        %1337 = sbr.rel target = $region55
      $region60: #{gpt_forward.76} parent=31 // loop_exit
        _
      %v1524 = vld [vmem:[%s420] sm:$0xff]
      %v1525 = vld [vmem:[%s422] sm:$0xff]
      %1526 = vrot.lane.b32.xlu0 %v232, 104
      %v1527 = vpop.permute.xlu0 %1526
      %1529 = vrot.lane.b32.xlu0 %v1524, 104
      %v1530 = vpop.permute.xlu0 %1529
      %v1531 = vsel %vm424, %v1527, 0
      %v1533 = vsel %vm424, %v1530, 0
      %1535 = vmatprep.subr.mxu0 0.0
      %1536 = vmatpush1.xpose.msra.mxu0 %v1533
      %1537 = vmatprep.subr.mxu0 0.0
      %1538 = vmatpush1.xpose.msra.mxu0 0.0
      %1539 = vmatprep.subr.mxu0 0.0
      %1540 = vmatpush1.xpose.msra.mxu0 0.0
      %1541 = vmatprep.subr.mxu0 0.0
      %1542 = vmatpush1.xpose.msra.mxu0 0.0
      %1543 = vmatprep.subr.mxu0 0.0
      %1544 = vmatpush1.xpose.msra.mxu0 0.0
      %1545 = vmatprep.subr.mxu0 0.0
      %1546 = vmatpush1.xpose.msra.mxu0 0.0
      %1547 = vmatprep.subr.mxu0 0.0
      %1548 = vmatpush1.xpose.msra.mxu0 0.0
      %1549 = vmatprep.subr.mxu0 0.0
      %1550 = vmatpush1.xpose.msra.mxu0 0.0
      %1551 = vmatprep.subr.mxu0 0.0
      %1552 = vmatpush1.xpose.msra.mxu0 0.0
      %1553 = vmatprep.subr.mxu0 0.0
      %1554 = vmatpush1.xpose.msra.mxu0 0.0
      %1555 = vmatprep.subr.mxu0 0.0
      %1556 = vmatpush1.xpose.msra.mxu0 0.0
      %1557 = vmatprep.subr.mxu0 0.0
      %1558 = vmatpush1.xpose.msra.mxu0 0.0
      %1559 = vmatprep.subr.mxu0 0.0
      %1560 = vmatpush1.xpose.msra.mxu0 0.0
      %1561 = vmatprep.subr.mxu0 0.0
      %1562 = vmatpush1.xpose.msra.mxu0 0.0
      %1563 = vmatprep.subr.mxu0 0.0
      %1564 = vmatpush1.xpose.msra.mxu0 0.0
      %1565 = vmatprep.subr.mxu0 0.0
      %1566 = vmatpush1.xpose.msra.mxu0 0.0
      %1567 = vmatprep.subr.mxu0 0.0
      %1568 = vmatpush1.xpose.msra.mxu0 0.0
      %1569 = vmatprep.subr.mxu0 0.0
      %1570 = vmatpush1.xpose.msra.mxu0 0.0
      %1571 = vmatprep.subr.mxu0 0.0
      %1572 = vmatpush1.xpose.msra.mxu0 0.0
      %1573 = vmatprep.subr.mxu0 0.0
      %1574 = vmatpush1.xpose.msra.mxu0 0.0
      %1575 = vmatprep.subr.mxu0 0.0
      %1576 = vmatpush1.xpose.msra.mxu0 0.0
      %1577 = vmatprep.subr.mxu0 0.0
      %1578 = vmatpush1.xpose.msra.mxu0 0.0
      %1579 = vmatprep.subr.mxu0 0.0
      %1580 = vmatpush1.xpose.msra.mxu0 0.0
      %1581 = vmatprep.subr.mxu0 0.0
      %1582 = vmatpush1.xpose.msra.mxu0 0.0
      %1583 = vmatprep.subr.mxu0 0.0
      %1584 = vmatpush1.xpose.msra.mxu0 0.0
      %1585 = vmatprep.subr.mxu0 0.0
      %1586 = vmatpush1.xpose.msra.mxu0 0.0
      %1587 = vmatprep.subr.mxu0 0.0
      %1588 = vmatpush1.xpose.msra.mxu0 0.0
      %1589 = vmatprep.subr.mxu0 0.0
      %1590 = vmatpush1.xpose.msra.mxu0 0.0
      %1591 = vmatprep.subr.mxu0 0.0
      %1592 = vmatpush1.xpose.msra.mxu0 0.0
      %1593 = vmatprep.subr.mxu0 0.0
      %1594 = vmatpush1.xpose.msra.mxu0 0.0
      %1595 = vmatprep.subr.mxu0 0.0
      %1596 = vmatpush1.xpose.msra.mxu0 0.0
      %1597 = vmatprep.subr.mxu0 0.0
      %1598 = vmatpush1.xpose.msra.mxu0 0.0
      %1599 = vmatprep.mubr.f32.mxu0 0.0
      %1600 = vmatmul.mubr.f32.gmra.mrb[0].mxu0 %v1531
      %v1601 = vpop.f32.mrb[0].mxu0
      %v1602 = vadd.f32 0.0, %v1601
      %v1603 = vpop.f32.mrb[0].mxu0
      %1604 = vdwg.mxu0
      %v1605 = vsel %vm237, %v1602, -inf
      %v1606 = vsel %vm424, %v1605, -inf
      %1607 = vmax.xlane.f32.xlu0 %v1606
      %v1608 = vpop.xlane.xlu0 %1607
      %v1609 = vmax.f32 %v1343, %v1608
      %v1610 = vsub.f32 %v1343, %v1609
      %v1611 = vmul.f32 %v1610, 1.442695
      %v1612 = vpow.pop %v1611
      %v1613 = vsub.f32 %v1605, %v1609
      %v1614 = vmul.f32 %v1613, 1.442695
      %v1615 = vpow.pop %v1614
      %v1616 = vmul.f32 %v1612, %v1344
      %v1617 = vsel %vm424, %v1615, 0.0
      %1618 = vadd.xlane.f32.xlu0 %v1617
      %v1619 = vpop.xlane.xlu0 %1618
      %v1620 = vadd.f32 %v1616, %v1619
      %v1621 = vmul.f32 %v1612, %v1345
      %1623 = vrot.lane.b32.xlu0 %v1525, 104
      %v1624 = vpop.permute.xlu0 %1623
      %v1627 = vsel %vm424, %v1615, 0
      %1629 = vmatprep.subr.mxu0 0.0
      %1630 = vmatpush1.msra.mxu0 %v1624
      %1631 = vmatprep.subr.mxu0 0.0
      %1632 = vmatpush1.msra.mxu0 0.0
      %1633 = vmatprep.subr.mxu0 0.0
      %1634 = vmatpush1.msra.mxu0 0.0
      %1635 = vmatprep.subr.mxu0 0.0
      %1636 = vmatpush1.msra.mxu0 0.0
      %1637 = vmatprep.subr.mxu0 0.0
      %1638 = vmatpush1.msra.mxu0 0.0
      %1639 = vmatprep.subr.mxu0 0.0
      %1640 = vmatpush1.msra.mxu0 0.0
      %1641 = vmatprep.subr.mxu0 0.0
      %1642 = vmatpush1.msra.mxu0 0.0
      %1643 = vmatprep.subr.mxu0 0.0
      %1644 = vmatpush1.msra.mxu0 0.0
      %1645 = vmatprep.subr.mxu0 0.0
      %1646 = vmatpush1.msra.mxu0 0.0
      %1647 = vmatprep.subr.mxu0 0.0
      %1648 = vmatpush1.msra.mxu0 0.0
      %1649 = vmatprep.subr.mxu0 0.0
      %1650 = vmatpush1.msra.mxu0 0.0
      %1651 = vmatprep.subr.mxu0 0.0
      %1652 = vmatpush1.msra.mxu0 0.0
      %1653 = vmatprep.subr.mxu0 0.0
      %1654 = vmatpush1.msra.mxu0 0.0
      %1655 = vmatprep.subr.mxu0 0.0
      %1656 = vmatpush1.msra.mxu0 0.0
      %1657 = vmatprep.subr.mxu0 0.0
      %1658 = vmatpush1.msra.mxu0 0.0
      %1659 = vmatprep.subr.mxu0 0.0
      %1660 = vmatpush1.msra.mxu0 0.0
      %1661 = vmatprep.subr.mxu0 0.0
      %1662 = vmatpush1.msra.mxu0 0.0
      %1663 = vmatprep.subr.mxu0 0.0
      %1664 = vmatpush1.msra.mxu0 0.0
      %1665 = vmatprep.subr.mxu0 0.0
      %1666 = vmatpush1.msra.mxu0 0.0
      %1667 = vmatprep.subr.mxu0 0.0
      %1668 = vmatpush1.msra.mxu0 0.0
      %1669 = vmatprep.subr.mxu0 0.0
      %1670 = vmatpush1.msra.mxu0 0.0
      %1671 = vmatprep.subr.mxu0 0.0
      %1672 = vmatpush1.msra.mxu0 0.0
      %1673 = vmatprep.subr.mxu0 0.0
      %1674 = vmatpush1.msra.mxu0 0.0
      %1675 = vmatprep.subr.mxu0 0.0
      %1676 = vmatpush1.msra.mxu0 0.0
      %1677 = vmatprep.subr.mxu0 0.0
      %1678 = vmatpush1.msra.mxu0 0.0
      %1679 = vmatprep.subr.mxu0 0.0
      %1680 = vmatpush1.msra.mxu0 0.0
      %1681 = vmatprep.subr.mxu0 0.0
      %1682 = vmatpush1.msra.mxu0 0.0
      %1683 = vmatprep.subr.mxu0 0.0
      %1684 = vmatpush1.msra.mxu0 0.0
      %1685 = vmatprep.subr.mxu0 0.0
      %1686 = vmatpush1.msra.mxu0 0.0
      %1687 = vmatprep.subr.mxu0 0.0
      %1688 = vmatpush1.msra.mxu0 0.0
      %1689 = vmatprep.subr.mxu0 0.0
      %1690 = vmatpush1.msra.mxu0 0.0
      %1691 = vmatprep.subr.mxu0 0.0
      %1692 = vmatpush1.msra.mxu0 0.0
      %1693 = vmatprep.mubr.f32.mxu0 0.0
      %1694 = vmatmul.mubr.f32.gmra.mrb[0].mxu0 %v1627
      %v1695 = vpop.f32.mrb[0].mxu0
      %v1696 = vadd.f32 0.0, %v1695
      %v1697 = vpop.f32.mrb[0].mxu0
      %1698 = vdwg.mxu0
      %v1699 = vadd.f32 %v1621, %v1696
      %v1700 = vrcp.pop %v1620
      %v1701 = vmul.f32 %v1699, %v1700
      %1703 = vrot.lane.b32.xlu0 %v1701, 24
      %v1704 = vpop.permute.xlu0 %1703
      %vm1706 = vcmask 261312
      %1707 = vst.msk [vmem:[%s230] sm:$0xff] %vm1706, %v1704
      %p1708 = scmp.lt.s32.totalorder %s18, 1
      %s1709 = scalar_select %p1708, %s18, 1
      %p1710 = scmp.lt.s32.totalorder %s19, 0
      %s1711 = scalar_select %p1710, %s19, 0
      %s1712 = sadd.s32 %s1711, %s1709
      %s1713 = smul.addr %s1712, 8
      %s1714 = scalar_lea.vmem %s3, %s1713
      // Predicated region
      $region61: #{gpt_forward.76} parent=31 // pred_check
        %p1715 = pneg %p126
      $region62: #{gpt_forward.76} parent=31 // pred_check_branch
        %1717 = sbr.rel (%p1715) target = $region64
      $region63: #{gpt_forward.76} parent=31 // pred_region
        _
      $region64: #{gpt_forward.76} parent=31 // pred_fallthru
        _
    $region32: #{gpt_forward.76} parent=5 // pred_fallthru
      _
    %p1718 = scmp.le.s32.totalorder 2, %s9
    // Predicated region
    $region65: #{gpt_forward.76} parent=5 // pred_check
      %p1719 = pneg %p1718
    $region66: #{gpt_forward.76} parent=5 // pred_check_branch
      %1721 = sbr.rel (%p1719) target = $region68
    $region67: #{gpt_forward.76} parent=5 // pred_region
      %s1722 = ssub.s32 %s9, 2
      // Predicated region
      $region69: #{gpt_forward.76} parent=67 // pred_check
        %p1723 = pneg %p132
      $region70: #{gpt_forward.76} parent=67 // pred_check_branch
        %1725 = sbr.rel (%p1723) target = $region72
      $region71: #{gpt_forward.76} parent=67 // pred_region
        %p1726 = scmp.lt.s32.totalorder %s20, 1
        %s1727 = scalar_select %p1726, %s20, 1
        %p1728 = scmp.lt.s32.totalorder %s21, 0
        %s1729 = scalar_select %p1728, %s21, 0
        %s1730 = sadd.s32 %s1729, %s1727
        %s1731 = smul.addr %s1730, 8
        %s1732 = scalar_lea.vmem %s3, %s1731
      $region72: #{gpt_forward.76} parent=67 // pred_fallthru
        _
    $region68: #{gpt_forward.76} parent=5 // pred_fallthru
      _
  $region6: #{gpt_forward.76} parent=0 // loop_footer
    %s13 = sadd.s32 1, %s9
  $region7: #{gpt_forward.76} parent=0 // loop_footer_branch
    %8 = sbr.rel target = $region3
  $region8: #{gpt_forward.76} parent=0 // loop_exit
    _

// kernel: gpt_forward.146
$region0: #{gpt_forward.146}
  #allocation0 [shape = 'u32[]', space=smem, size = 0x4, offset = 0x4, fixed_abs, tag = 'smem constant byte address 0x4 - core index']
  #allocation1 [shape = 'u32[144,128]{1,0:T(1,128)}', space=vmem, size = 0x12000, scoped, tag = 'internal scratch']
  %s0 = inlined_call_operand.vmem [shape: f32[16,32], index: 0, kind: input, shape index: {}]
  %s1 = inlined_call_operand.vmem [shape: f32[16,32], index: 1, kind: input, shape index: {}]
  %s2 = inlined_call_operand.vmem [shape: f32[1,32], index: 2, kind: input, shape index: {}]
  %s3 = inlined_call_operand.vmem [shape: f32[1,32], index: 3, kind: input, shape index: {}]
  %s4 = inlined_call_operand.hbm [shape: f32[16,32], index: 4, kind: output, shape index: {0}]
  %s5 = inlined_call_operand.vmem [shape: f32[16,32], index: 5, kind: output, shape index: {1}]
  %6 = xla_tuple %s4, %s5
  %s7 = sld [smem:[#allocation0]]
  $region57: #{gpt_forward.146} parent=0
    _
  %s9 = ssub.s32 1, %s7
  %s10 = scalar_select 0, %s9, %s7
  $region1: #{gpt_forward.146} parent=0
    #allocation2 [shape = 'u8[8192]{0}', space=vmem, size = 0x2000, scoped, tag = 'output window, operand 0']
    #allocation3 [shape = 's32[2]{0}', space=sflag, size = 0x8, scoped, tag = 'scoped memory for gpt_forward.146']
    %11 = vsyncpa [#allocation3], 0
    %s12 = scalar_lea.sflag [#allocation3], 1
    %13 = vsyncpa %s12, 0
    loop: start=0, step=1, limit=4
    $region2: #{gpt_forward.146} parent=1 // loop_pre_header
      _
    $region3: #{gpt_forward.146} parent=1 // loop_header
      %s15 = sphi 0, %s19
      %p16 = scmp.ge.s32.totalorder %s15, 4
      %s25 = sphi 0, %s27
      %s28 = sphi 0, %s25
      %s29 = sphi 0, %s28
      %s45 = sphi 0, %s29
      %s51 = sphi 0, %s53
      %s54 = sphi 0, %s51
      %s55 = sphi 0, %s54
      %s71 = sphi 0, %s55
      %s75 = sphi 0, %s75
      %s77 = sphi 0, %s75
      %s78 = sphi 0, %s77
      %s92 = sphi 0, %s78
      %s96 = sphi 0, %s96
      %s98 = sphi 0, %s96
      %s99 = sphi 0, %s98
      %s113 = sphi 0, %s99
      %s119 = sphi 0, %s121
      %s122 = sphi 0, %s119
      %s123 = sphi 0, %s122
      %s139 = sphi 0, %s123
      %s145 = sphi 0, %s147
      %s148 = sphi 0, %s145
      %s149 = sphi 0, %s148
      %s165 = sphi 0, %s149
    $region4: #{gpt_forward.146} parent=1 // loop_header_branch
      %18 = sbr.rel (%p16) target = $region8
    $region5: #{gpt_forward.146} parent=1 // loop_body
      %s20 = ssub.s32 %s15, 1
      %s21 = ssub.s32 %s15, 2
      %s22 = sadd.s32 %s15, 1
      %s23 = ssub.s32 %s15, %s22
      %p24 = scmp.eq.s32.totalorder %s23, 0
      %s26 = sadd.s32 %s25, 1
      %s27 = scalar_select %p24, %s25, %s26
      %p30 = pneg %p24
      %p31 = scmp.eq.s32.totalorder %s15, 1
      %p32 = por %p30, %p31
      %p33 = scmp.ne.s32.totalorder %s25, %s28
      %p34 = scmp.eq.s32.totalorder %s15, 0
      %p35 = por %p33, %p34
      %p36 = scmp.ne.s32.totalorder %s25, %s28
      %p37 = scmp.eq.s32.totalorder %s20, 1
      %p38 = por %p36, %p37
      %p39 = scmp.ne.s32.totalorder %s28, %s29
      %p40 = scmp.eq.s32.totalorder %s20, 0
      %p41 = por %p39, %p40
      %p42 = scmp.ne.s32.totalorder %s28, %s29
      %p43 = scmp.eq.s32.totalorder %s21, 1
      %p44 = por %p42, %p43
      %p46 = scmp.ne.s32.totalorder %s29, %s45
      %p47 = scmp.eq.s32.totalorder %s21, 0
      %p48 = por %p46, %p47
      %s49 = ssub.s32 %s15, %s22
      %p50 = scmp.eq.s32.totalorder %s49, 0
      %s52 = sadd.s32 %s51, 1
      %s53 = scalar_select %p50, %s51, %s52
      %p56 = pneg %p50
      %p57 = scmp.eq.s32.totalorder %s15, 1
      %p58 = por %p56, %p57
      %p59 = scmp.ne.s32.totalorder %s51, %s54
      %p60 = scmp.eq.s32.totalorder %s15, 0
      %p61 = por %p59, %p60
      %p62 = scmp.ne.s32.totalorder %s51, %s54
      %p63 = scmp.eq.s32.totalorder %s20, 1
      %p64 = por %p62, %p63
      %p65 = scmp.ne.s32.totalorder %s54, %s55
      %p66 = scmp.eq.s32.totalorder %s20, 0
      %p67 = por %p65, %p66
      %p68 = scmp.ne.s32.totalorder %s54, %s55
      %p69 = scmp.eq.s32.totalorder %s21, 1
      %p70 = por %p68, %p69
      %p72 = scmp.ne.s32.totalorder %s55, %s71
      %p73 = scmp.eq.s32.totalorder %s21, 0
      %p74 = por %p72, %p73
      %s76 = sadd.s32 %s75, 1
      %p79 = scmp.eq.s32.totalorder %s15, 1
      %p80 = scmp.ne.s32.totalorder %s75, %s77
      %p81 = scmp.eq.s32.totalorder %s15, 0
      %p82 = por %p80, %p81
      %p83 = scmp.ne.s32.totalorder %s75, %s77
      %p84 = scmp.eq.s32.totalorder %s20, 1
      %p85 = por %p83, %p84
      %p86 = scmp.ne.s32.totalorder %s77, %s78
      %p87 = scmp.eq.s32.totalorder %s20, 0
      %p88 = por %p86, %p87
      %p89 = scmp.ne.s32.totalorder %s77, %s78
      %p90 = scmp.eq.s32.totalorder %s21, 1
      %p91 = por %p89, %p90
      %p93 = scmp.ne.s32.totalorder %s78, %s92
      %p94 = scmp.eq.s32.totalorder %s21, 0
      %p95 = por %p93, %p94
      %s97 = sadd.s32 %s96, 1
      %p100 = scmp.eq.s32.totalorder %s15, 1
      %p101 = scmp.ne.s32.totalorder %s96, %s98
      %p102 = scmp.eq.s32.totalorder %s15, 0
      %p103 = por %p101, %p102
      %p104 = scmp.ne.s32.totalorder %s96, %s98
      %p105 = scmp.eq.s32.totalorder %s20, 1
      %p106 = por %p104, %p105
      %p107 = scmp.ne.s32.totalorder %s98, %s99
      %p108 = scmp.eq.s32.totalorder %s20, 0
      %p109 = por %p107, %p108
      %p110 = scmp.ne.s32.totalorder %s98, %s99
      %p111 = scmp.eq.s32.totalorder %s21, 1
      %p112 = por %p110, %p111
      %p114 = scmp.ne.s32.totalorder %s99, %s113
      %p115 = scmp.eq.s32.totalorder %s21, 0
      %p116 = por %p114, %p115
      %s117 = ssub.s32 %s15, %s22
      %p118 = scmp.eq.s32.totalorder %s117, 0
      %s120 = sadd.s32 %s119, 1
      %s121 = scalar_select %p118, %s119, %s120
      %p124 = pneg %p118
      %p125 = scmp.eq.s32.totalorder %s15, 1
      %p126 = por %p124, %p125
      %p127 = scmp.ne.s32.totalorder %s119, %s122
      %p128 = scmp.eq.s32.totalorder %s15, 0
      %p129 = por %p127, %p128
      %p130 = scmp.ne.s32.totalorder %s119, %s122
      %p131 = scmp.eq.s32.totalorder %s20, 1
      %p132 = por %p130, %p131
      %p133 = scmp.ne.s32.totalorder %s122, %s123
      %p134 = scmp.eq.s32.totalorder %s20, 0
      %p135 = por %p133, %p134
      %p136 = scmp.ne.s32.totalorder %s122, %s123
      %p137 = scmp.eq.s32.totalorder %s21, 1
      %p138 = por %p136, %p137
      %p140 = scmp.ne.s32.totalorder %s123, %s139
      %p141 = scmp.eq.s32.totalorder %s21, 0
      %p142 = por %p140, %p141
      %s143 = ssub.s32 %s15, %s22
      %p144 = scmp.eq.s32.totalorder %s143, 0
      %s146 = sadd.s32 %s145, 1
      %s147 = scalar_select %p144, %s145, %s146
      %p150 = pneg %p144
      %p151 = scmp.eq.s32.totalorder %s15, 1
      %p152 = por %p150, %p151
      %p153 = scmp.ne.s32.totalorder %s145, %s148
      %p154 = scmp.eq.s32.totalorder %s15, 0
      %p155 = por %p153, %p154
      %p156 = scmp.ne.s32.totalorder %s145, %s148
      %p157 = scmp.eq.s32.totalorder %s20, 1
      %p158 = por %p156, %p157
      %p159 = scmp.ne.s32.totalorder %s148, %s149
      %p160 = scmp.eq.s32.totalorder %s20, 0
      %p161 = por %p159, %p160
      %p162 = scmp.ne.s32.totalorder %s148, %s149
      %p163 = scmp.eq.s32.totalorder %s21, 1
      %p164 = por %p162, %p163
      %p166 = scmp.ne.s32.totalorder %s149, %s165
      %p167 = scmp.eq.s32.totalorder %s21, 0
      %p168 = por %p166, %p167
      %p169 = scmp.le.s32.totalorder 1, %s15
      %p170 = scmp.lt.s32.totalorder %s15, 3
      %p171 = pnand %p169, %p170
      %p172 = pneg %p171
      // Predicated region
      $region9: #{gpt_forward.146} parent=5 // pred_check
        _
      $region10: #{gpt_forward.146} parent=5 // pred_check_branch
        %174 = sbr.rel (%p171) target = $region12
      $region11: #{gpt_forward.146} parent=5 // pred_region
        %s175 = ssub.s32 %s15, 1
        // Predicated region
        $region13: #{gpt_forward.146} parent=11 // pred_check
          %p176 = pneg %p88
        $region14: #{gpt_forward.146} parent=11 // pred_check_branch
          %178 = sbr.rel (%p176) target = $region16
        $region15: #{gpt_forward.146} parent=11 // pred_region
          _
        $region16: #{gpt_forward.146} parent=11 // pred_fallthru
          _
        // Predicated region
        $region17: #{gpt_forward.146} parent=11 // pred_check
          %p179 = pneg %p109
        $region18: #{gpt_forward.146} parent=11 // pred_check_branch
          %181 = sbr.rel (%p179) target = $region20
        $region19: #{gpt_forward.146} parent=11 // pred_region
          _
        $region20: #{gpt_forward.146} parent=11 // pred_fallthru
          _
      $region12: #{gpt_forward.146} parent=5 // pred_fallthru
        _
      %p182 = scmp.lt.s32.totalorder %s15, 2
      // Predicated region
      $region21: #{gpt_forward.146} parent=5 // pred_check
        %p183 = pneg %p182
      $region22: #{gpt_forward.146} parent=5 // pred_check_branch
        %185 = sbr.rel (%p183) target = $region24
      $region23: #{gpt_forward.146} parent=5 // pred_region
        // Predicated region
        $region25: #{gpt_forward.146} parent=23 // pred_check
          %p186 = pneg %p35
        $region26: #{gpt_forward.146} parent=23 // pred_check_branch
          %188 = sbr.rel (%p186) target = $region28
        $region27: #{gpt_forward.146} parent=23 // pred_region
          %p189 = scmp.lt.s32.totalorder %s15, 1
          %s190 = scalar_select %p189, %s15, 1
          %s191 = smul.addr %s190, 8
          %s192 = scalar_lea.vmem %s0, %s191
        $region28: #{gpt_forward.146} parent=23 // pred_fallthru
          _
        // Predicated region
        $region29: #{gpt_forward.146} parent=23 // pred_check
          %p193 = pneg %p61
        $region30: #{gpt_forward.146} parent=23 // pred_check_branch
          %195 = sbr.rel (%p193) target = $region32
        $region31: #{gpt_forward.146} parent=23 // pred_region
          %p196 = scmp.lt.s32.totalorder %s15, 1
          %s197 = scalar_select %p196, %s15, 1
          %s198 = smul.addr %s197, 8
          %s199 = scalar_lea.vmem %s1, %s198
        $region32: #{gpt_forward.146} parent=23 // pred_fallthru
          _
      $region24: #{gpt_forward.146} parent=5 // pred_fallthru
        _
      %p200 = scmp.le.s32.totalorder 1, %s15
      %p201 = scmp.lt.s32.totalorder %s15, 3
      %p202 = pnand %p200, %p201
      %p203 = pneg %p202
      // Predicated region
      $region33: #{gpt_forward.146} parent=5 // pred_check
        _
      $region34: #{gpt_forward.146} parent=5 // pred_check_branch
        %205 = sbr.rel (%p202) target = $region36
      $region35: #{gpt_forward.146} parent=5 // pred_region
        %s206 = ssub.s32 %s15, 1
        %p207 = scmp.lt.s32.totalorder %s20, 1
        %s208 = scalar_select %p207, %s20, 1
        %s209 = smul.addr %s208, 8
        %s210 = scalar_lea.vmem %s0, %s209
        %p211 = pneg %p41
        %p212 = pneg %p38
        %p213 = scmp.lt.s32.totalorder %s20, 1
        %s214 = scalar_select %p213, %s20, 1
        %s215 = smul.addr %s214, 8
        %s216 = scalar_lea.vmem %s1, %s215
        %p217 = pneg %p67
        %p218 = pneg %p64
        %p219 = pneg %p88
        %p220 = pneg %p85
        %p221 = pneg %p109
        %p222 = pneg %p106
        %p223 = pneg %p135
        %p224 = pneg %p132
        %s225 = sand.u32 %s122, 1
        %s226 = scalar_lea.sflag [#allocation3], %s225
        %s227 = sand.u32 %s122, 1
        %s228 = smul.addr %s227, 8
        %s229 = scalar_lea.vmem [#allocation2], %s228
        %p230 = pneg %p161
        %p231 = pneg %p158
        %p232 = scmp.lt.s32.totalorder %s20, 1
        %s233 = scalar_select %p232, %s20, 1
        %s234 = smul.addr %s233, 8
        %s235 = scalar_lea.vmem %s5, %s234
        %p236 = scmp.lt.s32.totalorder %s20, 1
        %s237 = scalar_select %p236, %s20, 1
        %s238 = smul.addr %s237, 8
        %s239 = scalar_lea.vmem %s0, %s238
        %p240 = scmp.lt.s32.totalorder %s20, 1
        %s241 = scalar_select %p240, %s20, 1
        %s242 = smul.addr %s241, 8
        %s243 = scalar_lea.vmem %s1, %s242
        %p244 = scmp.lt.s32.totalorder %s20, 1
        %s245 = scalar_select %p244, %s20, 1
        %s246 = smul.addr %s245, 8
        %s247 = scalar_lea.vmem %s5, %s246
        %v248 = vld [vmem:[%s239] sm:$0xff]
        %v249 = vld [vmem:[%s243] sm:$0xff]
        %v250 = vadd.f32 %v248, %v249
        %vm251 = vcmask 261120
        %252 = vst.msk [vmem:[%s229] sm:$0xff] %vm251, %v250
        %v253 = vsel %vm251, %v250, 0.0
        %254 = vadd.xlane.f32.xlu0 %v253
        %v255 = vpop.xlane.xlu0 %254
        %v256 = vrcp.pop 32.0
        %v257 = vmul.f32 %v255, %v256
        %v258 = vsub.f32 %v250, %v257
        %v259 = vmul.f32 %v258, %v258
        %v260 = vsel %vm251, %v259, 0.0
        %261 = vadd.xlane.f32.xlu0 %v260
        %v262 = vpop.xlane.xlu0 %261
        %v263 = vmul.f32 %v262, 0.032258064
        %v264 = vadd.f32 %v263, 1e-05
        %v265 = vrsqrt.pop %v264
        %v266 = vmul.f32 %v258, %v265
        %v267 = vld [vmem:[%s2] sm:$0x1]
        %v269 = vlaneseq
        %v270 = vshrl.u32 %v269, 7
        %v271 = vsub.s32 0, %v270
        %v272 = vrot.slane %v267, %v271
        %v274 = vmul.f32 %v272, %v266
        %v275 = vld [vmem:[%s3] sm:$0x1]
        %v277 = vlaneseq
        %v278 = vshrl.u32 %v277, 7
        %v279 = vsub.s32 0, %v278
        %v280 = vrot.slane %v275, %v279
        %v282 = vadd.f32 %v274, %v280
        %283 = vst.msk [vmem:[%s247] sm:$0xff] %vm251, %v282
        %s284 = sand.u32 %s122, 1
        %s285 = scalar_lea.sflag [#allocation3], %s284
        %s286 = sand.u32 %s122, 1
        %s287 = smul.addr %s286, 8
        %s288 = scalar_lea.vmem [#allocation2], %s287
        %p289 = scmp.lt.s32.totalorder %s20, 1
        %s290 = scalar_select %p289, %s20, 1
        %s291 = smul.addr %s290, 8
        %s292 = scalar_lea.vmem %s5, %s291
        // Predicated region
        $region37: #{gpt_forward.146} parent=35 // pred_check
          %p293 = pneg %p132
        $region38: #{gpt_forward.146} parent=35 // pred_check_branch
          %295 = sbr.rel (%p293) target = $region40
        $region39: #{gpt_forward.146} parent=35 // pred_region
          %s297 = ssub.s32 128, 128
          %298 = vsyncadd %s285, %s297
          %s299 = smul.addr %s20, 128
          %s300 = scalar_lea.hbm %s4, %s299
          %s302 = sshll.u32 %s288, 4
          %s303 = int_to_ptr.vmem [resolvable:$true] %s302
          %305 = dma.vmem_to_hbm [thread:$0]  %s303, 128, %s300, %s285
        $region40: #{gpt_forward.146} parent=35 // pred_fallthru
          _
        // Predicated region
        $region41: #{gpt_forward.146} parent=35 // pred_check
          %p306 = pneg %p158
        $region42: #{gpt_forward.146} parent=35 // pred_check_branch
          %308 = sbr.rel (%p306) target = $region44
        $region43: #{gpt_forward.146} parent=35 // pred_region
          _
        $region44: #{gpt_forward.146} parent=35 // pred_fallthru
          _
      $region36: #{gpt_forward.146} parent=5 // pred_fallthru
        _
      %p309 = scmp.le.s32.totalorder 2, %s15
      // Predicated region
      $region45: #{gpt_forward.146} parent=5 // pred_check
        %p310 = pneg %p309
      $region46: #{gpt_forward.146} parent=5 // pred_check_branch
        %312 = sbr.rel (%p310) target = $region48
      $region47: #{gpt_forward.146} parent=5 // pred_region
        %s313 = ssub.s32 %s15, 2
        // Predicated region
        $region49: #{gpt_forward.146} parent=47 // pred_check
          %p314 = pneg %p138
        $region50: #{gpt_forward.146} parent=47 // pred_check_branch
          %316 = sbr.rel (%p314) target = $region52
        $region51: #{gpt_forward.146} parent=47 // pred_region
          %s317 = sand.u32 %s123, 1
          %s318 = scalar_lea.sflag [#allocation3], %s317
          %s319 = sand.u32 %s123, 1
          %s320 = smul.addr %s319, 8
          %s321 = scalar_lea.vmem [#allocation2], %s320
          %322 = dma.done %s318, 128
        $region52: #{gpt_forward.146} parent=47 // pred_fallthru
          _
        // Predicated region
        $region53: #{gpt_forward.146} parent=47 // pred_check
          %p323 = pneg %p164
        $region54: #{gpt_forward.146} parent=47 // pred_check_branch
          %325 = sbr.rel (%p323) target = $region56
        $region55: #{gpt_forward.146} parent=47 // pred_region
          %p326 = scmp.lt.s32.totalorder %s21, 1
          %s327 = scalar_select %p326, %s21, 1
          %s328 = smul.addr %s327, 8
          %s329 = scalar_lea.vmem %s5, %s328
        $region56: #{gpt_forward.146} parent=47 // pred_fallthru
          _
      $region48: #{gpt_forward.146} parent=5 // pred_fallthru
        _
    $region6: #{gpt_forward.146} parent=1 // loop_footer
      %s19 = sadd.s32 1, %s15
    $region7: #{gpt_forward.146} parent=1 // loop_footer_branch
      %14 = sbr.rel target = $region3
    $region8: #{gpt_forward.146} parent=1 // loop_exit
      _
    %330 = vsyncpa [#allocation3], 1
    %s331 = scalar_lea.sflag [#allocation3], 1
    %332 = vsyncpa %s331, 1

// kernel: gpt_forward.147
$region0: #{gpt_forward.147}
  #allocation0 [shape = 'u32[]', space=smem, size = 0x4, offset = 0x4, fixed_abs, tag = 'smem constant byte address 0x4 - core index']
  #allocation1 [shape = 'u32[144,128]{1,0:T(1,128)}', space=vmem, size = 0x12000, scoped, tag = 'internal scratch']
  %s0 = inlined_call_operand.vmem [shape: f32[16,32], index: 0, kind: input, shape index: {}]
  %s1 = inlined_call_operand.vmem [shape: f32[32,128], index: 1, kind: input, shape index: {}]
  %s2 = inlined_call_operand.vmem [shape: f32[1,128], index: 2, kind: input, shape index: {}]
  %s3 = inlined_call_operand.hbm [shape: f32[16,128], index: 3, kind: output, shape index: {}]
  %s4 = sld [smem:[#allocation0]]
  $region45: #{gpt_forward.147} parent=0
    _
  %s6 = ssub.s32 1, %s4
  %s7 = scalar_select 0, %s6, %s4
  $region1: #{gpt_forward.147} parent=0
    #allocation2 [shape = 'u8[8192]{0}', space=vmem, size = 0x2000, scoped, tag = 'output window, operand 0']
    #allocation3 [shape = 's32[2]{0}', space=sflag, size = 0x8, scoped, tag = 'scoped memory for gpt_forward.147']
    %8 = vsyncpa [#allocation3], 0
    %s9 = scalar_lea.sflag [#allocation3], 1
    %10 = vsyncpa %s9, 0
    loop: start=0, step=1, limit=4
    $region2: #{gpt_forward.147} parent=1 // loop_pre_header
      _
    $region3: #{gpt_forward.147} parent=1 // loop_header
      %s12 = sphi 0, %s16
      %p13 = scmp.ge.s32.totalorder %s12, 4
      %s19 = sphi 0, %s31
      %s20 = sphi 0, %s27
      %s21 = sphi 0, %s19
      %s22 = sphi 0, %s20
      %s23 = sphi 0, %s21
      %s24 = sphi 0, %s22
      %s34 = sphi 0, %s36
      %s37 = sphi 0, %s34
      %s38 = sphi 0, %s37
      %s54 = sphi 0, %s38
      %s60 = sphi 0, %s62
      %s63 = sphi 0, %s60
      %s64 = sphi 0, %s63
      %s80 = sphi 0, %s64
      %s86 = sphi 0, %s88
      %s89 = sphi 0, %s86
      %s90 = sphi 0, %s89
      %s106 = sphi 0, %s90
      %s114 = sphi 0, %s116
      %s117 = sphi 0, %s114
      %s118 = sphi 0, %s117
      %s134 = sphi 0, %s118
    $region4: #{gpt_forward.147} parent=1 // loop_header_branch
      %15 = sbr.rel (%p13) target = $region8
    $region5: #{gpt_forward.147} parent=1 // loop_body
      %s17 = ssub.s32 %s12, 1
      %s18 = ssub.s32 %s12, 2
      %s25 = sadd.s32 1, %s20
      %p26 = scmp.ge.s32.totalorder %s25, 1
      %s27 = scalar_select %p26, 0, %s25
      %s28 = sadd.s32 1, %s19
      %s29 = scalar_select %p26, %s28, %s19
      %p30 = scmp.ge.s32.totalorder %s29, 2
      %s31 = scalar_select %p30, 0, %s29
      %s32 = ssub.s32 %s19, %s31
      %p33 = scmp.eq.s32.totalorder %s32, 0
      %s35 = sadd.s32 %s34, 1
      %s36 = scalar_select %p33, %s34, %s35
      %p39 = pneg %p33
      %p40 = scmp.eq.s32.totalorder %s12, 1
      %p41 = por %p39, %p40
      %p42 = scmp.ne.s32.totalorder %s34, %s37
      %p43 = scmp.eq.s32.totalorder %s12, 0
      %p44 = por %p42, %p43
      %p45 = scmp.ne.s32.totalorder %s34, %s37
      %p46 = scmp.eq.s32.totalorder %s17, 1
      %p47 = por %p45, %p46
      %p48 = scmp.ne.s32.totalorder %s37, %s38
      %p49 = scmp.eq.s32.totalorder %s17, 0
      %p50 = por %p48, %p49
      %p51 = scmp.ne.s32.totalorder %s37, %s38
      %p52 = scmp.eq.s32.totalorder %s18, 1
      %p53 = por %p51, %p52
      %p55 = scmp.ne.s32.totalorder %s38, %s54
      %p56 = scmp.eq.s32.totalorder %s18, 0
      %p57 = por %p55, %p56
      %s58 = ssub.s32 %s20, %s27
      %p59 = scmp.eq.s32.totalorder %s58, 0
      %s61 = sadd.s32 %s60, 1
      %s62 = scalar_select %p59, %s60, %s61
      %p65 = pneg %p59
      %p66 = scmp.eq.s32.totalorder %s12, 1
      %p67 = por %p65, %p66
      %p68 = scmp.ne.s32.totalorder %s60, %s63
      %p69 = scmp.eq.s32.totalorder %s12, 0
      %p70 = por %p68, %p69
      %p71 = scmp.ne.s32.totalorder %s60, %s63
      %p72 = scmp.eq.s32.totalorder %s17, 1
      %p73 = por %p71, %p72
      %p74 = scmp.ne.s32.totalorder %s63, %s64
      %p75 = scmp.eq.s32.totalorder %s17, 0
      %p76 = por %p74, %p75
      %p77 = scmp.ne.s32.totalorder %s63, %s64
      %p78 = scmp.eq.s32.totalorder %s18, 1
      %p79 = por %p77, %p78
      %p81 = scmp.ne.s32.totalorder %s64, %s80
      %p82 = scmp.eq.s32.totalorder %s18, 0
      %p83 = por %p81, %p82
      %s84 = ssub.s32 %s20, %s27
      %p85 = scmp.eq.s32.totalorder %s84, 0
      %s87 = sadd.s32 %s86, 1
      %s88 = scalar_select %p85, %s86, %s87
      %p91 = pneg %p85
      %p92 = scmp.eq.s32.totalorder %s12, 1
      %p93 = por %p91, %p92
      %p94 = scmp.ne.s32.totalorder %s86, %s89
      %p95 = scmp.eq.s32.totalorder %s12, 0
      %p96 = por %p94, %p95
      %p97 = scmp.ne.s32.totalorder %s86, %s89
      %p98 = scmp.eq.s32.totalorder %s17, 1
      %p99 = por %p97, %p98
      %p100 = scmp.ne.s32.totalorder %s89, %s90
      %p101 = scmp.eq.s32.totalorder %s17, 0
      %p102 = por %p100, %p101
      %p103 = scmp.ne.s32.totalorder %s89, %s90
      %p104 = scmp.eq.s32.totalorder %s18, 1
      %p105 = por %p103, %p104
      %p107 = scmp.ne.s32.totalorder %s90, %s106
      %p108 = scmp.eq.s32.totalorder %s18, 0
      %p109 = por %p107, %p108
      %s110 = ssub.s32 %s19, %s31
      %s111 = ssub.s32 %s20, %s27
      %s112 = sor.u32 %s110, %s111
      %p113 = scmp.eq.s32.totalorder %s112, 0
      %s115 = sadd.s32 %s114, 1
      %s116 = scalar_select %p113, %s114, %s115
      %p119 = pneg %p113
      %p120 = scmp.eq.s32.totalorder %s12, 1
      %p121 = por %p119, %p120
      %p122 = scmp.ne.s32.totalorder %s114, %s117
      %p123 = scmp.eq.s32.totalorder %s12, 0
      %p124 = por %p122, %p123
      %p125 = scmp.ne.s32.totalorder %s114, %s117
      %p126 = scmp.eq.s32.totalorder %s17, 1
      %p127 = por %p125, %p126
      %p128 = scmp.ne.s32.totalorder %s117, %s118
      %p129 = scmp.eq.s32.totalorder %s17, 0
      %p130 = por %p128, %p129
      %p131 = scmp.ne.s32.totalorder %s117, %s118
      %p132 = scmp.eq.s32.totalorder %s18, 1
      %p133 = por %p131, %p132
      %p135 = scmp.ne.s32.totalorder %s118, %s134
      %p136 = scmp.eq.s32.totalorder %s18, 0
      %p137 = por %p135, %p136
      %p138 = scmp.le.s32.totalorder 1, %s12
      %p139 = scmp.lt.s32.totalorder %s12, 3
      %p140 = pnand %p138, %p139
      %p141 = pneg %p140
      // Predicated region
      $region9: #{gpt_forward.147} parent=5 // pred_check
        _
      $region10: #{gpt_forward.147} parent=5 // pred_check_branch
        %143 = sbr.rel (%p140) target = $region12
      $region11: #{gpt_forward.147} parent=5 // pred_region
        %s144 = ssub.s32 %s12, 1
        // Predicated region
        $region13: #{gpt_forward.147} parent=11 // pred_check
          %p145 = pneg %p76
        $region14: #{gpt_forward.147} parent=11 // pred_check_branch
          %147 = sbr.rel (%p145) target = $region16
        $region15: #{gpt_forward.147} parent=11 // pred_region
          %p148 = scmp.lt.s32.totalorder %s22, 0
          %s149 = scalar_select %p148, %s22, 0
          %s150 = smul.addr %s149, 8
          %s151 = scalar_lea.vmem %s1, %s150
        $region16: #{gpt_forward.147} parent=11 // pred_fallthru
          _
        // Predicated region
        $region17: #{gpt_forward.147} parent=11 // pred_check
          %p152 = pneg %p102
        $region18: #{gpt_forward.147} parent=11 // pred_check_branch
          %154 = sbr.rel (%p152) target = $region20
        $region19: #{gpt_forward.147} parent=11 // pred_region
          %p155 = scmp.lt.s32.totalorder %s22, 0
          %s156 = scalar_select %p155, %s22, 0
          %s157 = scalar_lea.vmem %s2, %s156
        $region20: #{gpt_forward.147} parent=11 // pred_fallthru
          _
      $region12: #{gpt_forward.147} parent=5 // pred_fallthru
        _
      %p158 = scmp.lt.s32.totalorder %s12, 2
      // Predicated region
      $region21: #{gpt_forward.147} parent=5 // pred_check
        %p159 = pneg %p158
      $region22: #{gpt_forward.147} parent=5 // pred_check_branch
        %161 = sbr.rel (%p159) target = $region24
      $region23: #{gpt_forward.147} parent=5 // pred_region
        // Predicated region
        $region25: #{gpt_forward.147} parent=23 // pred_check
          %p162 = pneg %p44
        $region26: #{gpt_forward.147} parent=23 // pred_check_branch
          %164 = sbr.rel (%p162) target = $region28
        $region27: #{gpt_forward.147} parent=23 // pred_region
          %p165 = scmp.lt.s32.totalorder %s19, 1
          %s166 = scalar_select %p165, %s19, 1
          %s167 = smul.addr %s166, 8
          %s168 = scalar_lea.vmem %s0, %s167
        $region28: #{gpt_forward.147} parent=23 // pred_fallthru
          _
      $region24: #{gpt_forward.147} parent=5 // pred_fallthru
        _
      %p169 = scmp.le.s32.totalorder 1, %s12
      %p170 = scmp.lt.s32.totalorder %s12, 3
      %p171 = pnand %p169, %p170
      %p172 = pneg %p171
      // Predicated region
      $region29: #{gpt_forward.147} parent=5 // pred_check
        _
      $region30: #{gpt_forward.147} parent=5 // pred_check_branch
        %174 = sbr.rel (%p171) target = $region32
      $region31: #{gpt_forward.147} parent=5 // pred_region
        %s175 = ssub.s32 %s12, 1
        %p176 = scmp.lt.s32.totalorder %s21, 1
        %s177 = scalar_select %p176, %s21, 1
        %s178 = smul.addr %s177, 8
        %s179 = scalar_lea.vmem %s0, %s178
        %p180 = pneg %p50
        %p181 = pneg %p47
        %p182 = scmp.lt.s32.totalorder %s22, 0
        %s183 = scalar_select %p182, %s22, 0
        %s184 = smul.addr %s183, 8
        %s185 = scalar_lea.vmem %s1, %s184
        %p186 = pneg %p76
        %p187 = pneg %p73
        %p188 = scmp.lt.s32.totalorder %s22, 0
        %s189 = scalar_select %p188, %s22, 0
        %s190 = scalar_lea.vmem %s2, %s189
        %p191 = pneg %p102
        %p192 = pneg %p99
        %p193 = pneg %p130
        %p194 = pneg %p127
        %s195 = sand.u32 %s117, 1
        %s196 = scalar_lea.sflag [#allocation3], %s195
        %s197 = sand.u32 %s117, 1
        %s198 = smul.addr %s197, 8
        %s199 = scalar_lea.vmem [#allocation2], %s198
        %p200 = scmp.lt.s32.totalorder %s21, 1
        %s201 = scalar_select %p200, %s21, 1
        %s202 = smul.addr %s201, 8
        %s203 = scalar_lea.vmem %s0, %s202
        %p204 = scmp.lt.s32.totalorder %s22, 0
        %s205 = scalar_select %p204, %s22, 0
        %s206 = smul.addr %s205, 8
        %s207 = scalar_lea.vmem %s1, %s206
        %p208 = scmp.lt.s32.totalorder %s22, 0
        %s209 = scalar_select %p208, %s22, 0
        %s210 = scalar_lea.vmem %s2, %s209
        %v211 = vld [vmem:[%s203] sm:$0xff]
        %v212 = vld [vmem:[%s207] sm:$0xff]
        %v213 = vld [vmem:[%s207 + $0x8] sm:$0xff]
        %v214 = vld [vmem:[%s207 + $0x10] sm:$0xff]
        %v215 = vld [vmem:[%s207 + $0x18] sm:$0xff]
        %v216 = vld [vmem:[%s210] sm:$0x1]
        %v218 = vlaneseq
        %v219 = vshrl.u32 %v218, 7
        %v220 = vsub.s32 0, %v219
        %v221 = vrot.slane %v216, %v220
        %vm223 = vcmask 261120
        %v225 = vsel %vm223, %v211, 0
        %227 = vmatprep.subr.mxu0 0.0
        %228 = vmatpush1.msra.mxu0 %v212
        %229 = vmatprep.subr.mxu0 0.0
        %230 = vmatpush1.msra.mxu0 %v213
        %231 = vmatprep.subr.mxu0 0.0
        %232 = vmatpush1.msra.mxu0 %v214
        %233 = vmatprep.subr.mxu0 0.0
        %234 = vmatpush1.msra.mxu0 %v215
        %235 = vmatprep.subr.mxu0 0.0
        %236 = vmatpush1.msra.mxu0 0.0
        %237 = vmatprep.subr.mxu0 0.0
        %238 = vmatpush1.msra.mxu0 0.0
        %239 = vmatprep.subr.mxu0 0.0
        %240 = vmatpush1.msra.mxu0 0.0
        %241 = vmatprep.subr.mxu0 0.0
        %242 = vmatpush1.msra.mxu0 0.0
        %243 = vmatprep.subr.mxu0 0.0
        %244 = vmatpush1.msra.mxu0 0.0
        %245 = vmatprep.subr.mxu0 0.0
        %246 = vmatpush1.msra.mxu0 0.0
        %247 = vmatprep.subr.mxu0 0.0
        %248 = vmatpush1.msra.mxu0 0.0
        %249 = vmatprep.subr.mxu0 0.0
        %250 = vmatpush1.msra.mxu0 0.0
        %251 = vmatprep.subr.mxu0 0.0
        %252 = vmatpush1.msra.mxu0 0.0
        %253 = vmatprep.subr.mxu0 0.0
        %254 = vmatpush1.msra.mxu0 0.0
        %255 = vmatprep.subr.mxu0 0.0
        %256 = vmatpush1.msra.mxu0 0.0
        %257 = vmatprep.subr.mxu0 0.0
        %258 = vmatpush1.msra.mxu0 0.0
        %259 = vmatprep.subr.mxu0 0.0
        %260 = vmatpush1.msra.mxu0 0.0
        %261 = vmatprep.subr.mxu0 0.0
        %262 = vmatpush1.msra.mxu0 0.0
        %263 = vmatprep.subr.mxu0 0.0
        %264 = vmatpush1.msra.mxu0 0.0
        %265 = vmatprep.subr.mxu0 0.0
        %266 = vmatpush1.msra.mxu0 0.0
        %267 = vmatprep.subr.mxu0 0.0
        %268 = vmatpush1.msra.mxu0 0.0
        %269 = vmatprep.subr.mxu0 0.0
        %270 = vmatpush1.msra.mxu0 0.0
        %271 = vmatprep.subr.mxu0 0.0
        %272 = vmatpush1.msra.mxu0 0.0
        %273 = vmatprep.subr.mxu0 0.0
        %274 = vmatpush1.msra.mxu0 0.0
        %275 = vmatprep.subr.mxu0 0.0
        %276 = vmatpush1.msra.mxu0 0.0
        %277 = vmatprep.subr.mxu0 0.0
        %278 = vmatpush1.msra.mxu0 0.0
        %279 = vmatprep.subr.mxu0 0.0
        %280 = vmatpush1.msra.mxu0 0.0
        %281 = vmatprep.subr.mxu0 0.0
        %282 = vmatpush1.msra.mxu0 0.0
        %283 = vmatprep.subr.mxu0 0.0
        %284 = vmatpush1.msra.mxu0 0.0
        %285 = vmatprep.subr.mxu0 0.0
        %286 = vmatpush1.msra.mxu0 0.0
        %287 = vmatprep.subr.mxu0 0.0
        %288 = vmatpush1.msra.mxu0 0.0
        %289 = vmatprep.subr.mxu0 0.0
        %290 = vmatpush1.msra.mxu0 0.0
        %291 = vmatprep.mubr.f32.mxu0 0.0
        %292 = vmatmul.mubr.f32.gmra.mrb[0].mxu0 %v225
        %v293 = vpop.f32.mrb[0].mxu0
        %v294 = vadd.f32 %v221, %v293
        %v295 = vpop.f32.mrb[0].mxu0
        %296 = vdwg.mxu0
        %297 = vst [vmem:[%s199] sm:$0xff] %v294
        %s298 = sand.u32 %s117, 1
        %s299 = scalar_lea.sflag [#allocation3], %s298
        %s300 = sand.u32 %s117, 1
        %s301 = smul.addr %s300, 8
        %s302 = scalar_lea.vmem [#allocation2], %s301
        // Predicated region
        $region33: #{gpt_forward.147} parent=31 // pred_check
          %p303 = pneg %p127
        $region34: #{gpt_forward.147} parent=31 // pred_check_branch
          %305 = sbr.rel (%p303) target = $region36
        $region35: #{gpt_forward.147} parent=31 // pred_region
          %s307 = ssub.s32 128, 128
          %308 = vsyncadd %s299, %s307
          %s309 = sadd.s32 %s22, %s21
          %s310 = smul.addr %s309, 128
          %s311 = scalar_lea.hbm %s3, %s310
          %s313 = sshll.u32 %s302, 4
          %s314 = int_to_ptr.vmem [resolvable:$true] %s313
          %316 = dma.vmem_to_hbm [thread:$0]  %s314, 128, %s311, %s299
        $region36: #{gpt_forward.147} parent=31 // pred_fallthru
          _
      $region32: #{gpt_forward.147} parent=5 // pred_fallthru
        _
      %p317 = scmp.le.s32.totalorder 2, %s12
      // Predicated region
      $region37: #{gpt_forward.147} parent=5 // pred_check
        %p318 = pneg %p317
      $region38: #{gpt_forward.147} parent=5 // pred_check_branch
        %320 = sbr.rel (%p318) target = $region40
      $region39: #{gpt_forward.147} parent=5 // pred_region
        %s321 = ssub.s32 %s12, 2
        // Predicated region
        $region41: #{gpt_forward.147} parent=39 // pred_check
          %p322 = pneg %p133
        $region42: #{gpt_forward.147} parent=39 // pred_check_branch
          %324 = sbr.rel (%p322) target = $region44
        $region43: #{gpt_forward.147} parent=39 // pred_region
          %s325 = sand.u32 %s118, 1
          %s326 = scalar_lea.sflag [#allocation3], %s325
          %s327 = sand.u32 %s118, 1
          %s328 = smul.addr %s327, 8
          %s329 = scalar_lea.vmem [#allocation2], %s328
          %330 = dma.done %s326, 128
        $region44: #{gpt_forward.147} parent=39 // pred_fallthru
          _
      $region40: #{gpt_forward.147} parent=5 // pred_fallthru
        _
    $region6: #{gpt_forward.147} parent=1 // loop_footer
      %s16 = sadd.s32 1, %s12
    $region7: #{gpt_forward.147} parent=1 // loop_footer_branch
      %11 = sbr.rel target = $region3
    $region8: #{gpt_forward.147} parent=1 // loop_exit
      _
    %331 = vsyncpa [#allocation3], 1
    %s332 = scalar_lea.sflag [#allocation3], 1
    %333 = vsyncpa %s332, 1

// kernel: gpt_forward.79
$region0: #{gpt_forward.79}
  #allocation0 [shape = 'u32[]', space=smem, size = 0x4, offset = 0x4, fixed_abs, tag = 'smem constant byte address 0x4 - core index']
  #allocation1 [shape = 'u32[144,128]{1,0:T(1,128)}', space=vmem, size = 0x12000, scoped, tag = 'internal scratch']
  %s0 = inlined_call_operand.vmem [shape: f32[16,128], index: 0, kind: input, shape index: {}]
  %s1 = inlined_call_operand.vmem [shape: f32[128,32], index: 1, kind: input, shape index: {}]
  %s2 = inlined_call_operand.vmem [shape: f32[1,32], index: 2, kind: input, shape index: {}]
  %s3 = inlined_call_operand.vmem [shape: f32[16,32], index: 3, kind: output, shape index: {}]
  %s4 = sld [smem:[#allocation0]]
  $region45: #{gpt_forward.79} parent=0
    _
  %s6 = ssub.s32 1, %s4
  %s7 = scalar_select 0, %s6, %s4
  loop: start=0, step=1, limit=4
  $region2: #{gpt_forward.79} parent=0 // loop_pre_header
    _
  $region3: #{gpt_forward.79} parent=0 // loop_header
    %s9 = sphi 0, %s13
    %p10 = scmp.ge.s32.totalorder %s9, 4
    %s16 = sphi 0, %s28
    %s17 = sphi 0, %s24
    %s18 = sphi 0, %s16
    %s19 = sphi 0, %s17
    %s20 = sphi 0, %s18
    %s21 = sphi 0, %s19
    %s31 = sphi 0, %s33
    %s34 = sphi 0, %s31
    %s35 = sphi 0, %s34
    %s51 = sphi 0, %s35
    %s57 = sphi 0, %s59
    %s60 = sphi 0, %s57
    %s61 = sphi 0, %s60
    %s77 = sphi 0, %s61
    %s83 = sphi 0, %s85
    %s86 = sphi 0, %s83
    %s87 = sphi 0, %s86
    %s103 = sphi 0, %s87
    %s111 = sphi 0, %s113
    %s114 = sphi 0, %s111
    %s115 = sphi 0, %s114
    %s131 = sphi 0, %s115
  $region4: #{gpt_forward.79} parent=0 // loop_header_branch
    %12 = sbr.rel (%p10) target = $region8
  $region5: #{gpt_forward.79} parent=0 // loop_body
    %s14 = ssub.s32 %s9, 1
    %s15 = ssub.s32 %s9, 2
    %s22 = sadd.s32 1, %s17
    %p23 = scmp.ge.s32.totalorder %s22, 1
    %s24 = scalar_select %p23, 0, %s22
    %s25 = sadd.s32 1, %s16
    %s26 = scalar_select %p23, %s25, %s16
    %p27 = scmp.ge.s32.totalorder %s26, 2
    %s28 = scalar_select %p27, 0, %s26
    %s29 = ssub.s32 %s16, %s28
    %p30 = scmp.eq.s32.totalorder %s29, 0
    %s32 = sadd.s32 %s31, 1
    %s33 = scalar_select %p30, %s31, %s32
    %p36 = pneg %p30
    %p37 = scmp.eq.s32.totalorder %s9, 1
    %p38 = por %p36, %p37
    %p39 = scmp.ne.s32.totalorder %s31, %s34
    %p40 = scmp.eq.s32.totalorder %s9, 0
    %p41 = por %p39, %p40
    %p42 = scmp.ne.s32.totalorder %s31, %s34
    %p43 = scmp.eq.s32.totalorder %s14, 1
    %p44 = por %p42, %p43
    %p45 = scmp.ne.s32.totalorder %s34, %s35
    %p46 = scmp.eq.s32.totalorder %s14, 0
    %p47 = por %p45, %p46
    %p48 = scmp.ne.s32.totalorder %s34, %s35
    %p49 = scmp.eq.s32.totalorder %s15, 1
    %p50 = por %p48, %p49
    %p52 = scmp.ne.s32.totalorder %s35, %s51
    %p53 = scmp.eq.s32.totalorder %s15, 0
    %p54 = por %p52, %p53
    %s55 = ssub.s32 %s17, %s24
    %p56 = scmp.eq.s32.totalorder %s55, 0
    %s58 = sadd.s32 %s57, 1
    %s59 = scalar_select %p56, %s57, %s58
    %p62 = pneg %p56
    %p63 = scmp.eq.s32.totalorder %s9, 1
    %p64 = por %p62, %p63
    %p65 = scmp.ne.s32.totalorder %s57, %s60
    %p66 = scmp.eq.s32.totalorder %s9, 0
    %p67 = por %p65, %p66
    %p68 = scmp.ne.s32.totalorder %s57, %s60
    %p69 = scmp.eq.s32.totalorder %s14, 1
    %p70 = por %p68, %p69
    %p71 = scmp.ne.s32.totalorder %s60, %s61
    %p72 = scmp.eq.s32.totalorder %s14, 0
    %p73 = por %p71, %p72
    %p74 = scmp.ne.s32.totalorder %s60, %s61
    %p75 = scmp.eq.s32.totalorder %s15, 1
    %p76 = por %p74, %p75
    %p78 = scmp.ne.s32.totalorder %s61, %s77
    %p79 = scmp.eq.s32.totalorder %s15, 0
    %p80 = por %p78, %p79
    %s81 = ssub.s32 %s17, %s24
    %p82 = scmp.eq.s32.totalorder %s81, 0
    %s84 = sadd.s32 %s83, 1
    %s85 = scalar_select %p82, %s83, %s84
    %p88 = pneg %p82
    %p89 = scmp.eq.s32.totalorder %s9, 1
    %p90 = por %p88, %p89
    %p91 = scmp.ne.s32.totalorder %s83, %s86
    %p92 = scmp.eq.s32.totalorder %s9, 0
    %p93 = por %p91, %p92
    %p94 = scmp.ne.s32.totalorder %s83, %s86
    %p95 = scmp.eq.s32.totalorder %s14, 1
    %p96 = por %p94, %p95
    %p97 = scmp.ne.s32.totalorder %s86, %s87
    %p98 = scmp.eq.s32.totalorder %s14, 0
    %p99 = por %p97, %p98
    %p100 = scmp.ne.s32.totalorder %s86, %s87
    %p101 = scmp.eq.s32.totalorder %s15, 1
    %p102 = por %p100, %p101
    %p104 = scmp.ne.s32.totalorder %s87, %s103
    %p105 = scmp.eq.s32.totalorder %s15, 0
    %p106 = por %p104, %p105
    %s107 = ssub.s32 %s16, %s28
    %s108 = ssub.s32 %s17, %s24
    %s109 = sor.u32 %s107, %s108
    %p110 = scmp.eq.s32.totalorder %s109, 0
    %s112 = sadd.s32 %s111, 1
    %s113 = scalar_select %p110, %s111, %s112
    %p116 = pneg %p110
    %p117 = scmp.eq.s32.totalorder %s9, 1
    %p118 = por %p116, %p117
    %p119 = scmp.ne.s32.totalorder %s111, %s114
    %p120 = scmp.eq.s32.totalorder %s9, 0
    %p121 = por %p119, %p120
    %p122 = scmp.ne.s32.totalorder %s111, %s114
    %p123 = scmp.eq.s32.totalorder %s14, 1
    %p124 = por %p122, %p123
    %p125 = scmp.ne.s32.totalorder %s114, %s115
    %p126 = scmp.eq.s32.totalorder %s14, 0
    %p127 = por %p125, %p126
    %p128 = scmp.ne.s32.totalorder %s114, %s115
    %p129 = scmp.eq.s32.totalorder %s15, 1
    %p130 = por %p128, %p129
    %p132 = scmp.ne.s32.totalorder %s115, %s131
    %p133 = scmp.eq.s32.totalorder %s15, 0
    %p134 = por %p132, %p133
    %p135 = scmp.le.s32.totalorder 1, %s9
    %p136 = scmp.lt.s32.totalorder %s9, 3
    %p137 = pnand %p135, %p136
    %p138 = pneg %p137
    // Predicated region
    $region9: #{gpt_forward.79} parent=5 // pred_check
      _
    $region10: #{gpt_forward.79} parent=5 // pred_check_branch
      %140 = sbr.rel (%p137) target = $region12
    $region11: #{gpt_forward.79} parent=5 // pred_region
      %s141 = ssub.s32 %s9, 1
      // Predicated region
      $region13: #{gpt_forward.79} parent=11 // pred_check
        %p142 = pneg %p73
      $region14: #{gpt_forward.79} parent=11 // pred_check_branch
        %144 = sbr.rel (%p142) target = $region16
      $region15: #{gpt_forward.79} parent=11 // pred_region
        %p145 = scmp.lt.s32.totalorder %s19, 0
        %s146 = scalar_select %p145, %s19, 0
        %s147 = smul.addr %s146, 8
        %s148 = scalar_lea.vmem %s1, %s147
      $region16: #{gpt_forward.79} parent=11 // pred_fallthru
        _
      // Predicated region
      $region17: #{gpt_forward.79} parent=11 // pred_check
        %p149 = pneg %p99
      $region18: #{gpt_forward.79} parent=11 // pred_check_branch
        %151 = sbr.rel (%p149) target = $region20
      $region19: #{gpt_forward.79} parent=11 // pred_region
        %p152 = scmp.lt.s32.totalorder %s19, 0
        %s153 = scalar_select %p152, %s19, 0
        %s154 = scalar_lea.vmem %s2, %s153
      $region20: #{gpt_forward.79} parent=11 // pred_fallthru
        _
    $region12: #{gpt_forward.79} parent=5 // pred_fallthru
      _
    %p155 = scmp.lt.s32.totalorder %s9, 2
    // Predicated region
    $region21: #{gpt_forward.79} parent=5 // pred_check
      %p156 = pneg %p155
    $region22: #{gpt_forward.79} parent=5 // pred_check_branch
      %158 = sbr.rel (%p156) target = $region24
    $region23: #{gpt_forward.79} parent=5 // pred_region
      // Predicated region
      $region25: #{gpt_forward.79} parent=23 // pred_check
        %p159 = pneg %p41
      $region26: #{gpt_forward.79} parent=23 // pred_check_branch
        %161 = sbr.rel (%p159) target = $region28
      $region27: #{gpt_forward.79} parent=23 // pred_region
        %p162 = scmp.lt.s32.totalorder %s16, 1
        %s163 = scalar_select %p162, %s16, 1
        %s164 = smul.addr %s163, 8
        %s165 = scalar_lea.vmem %s0, %s164
      $region28: #{gpt_forward.79} parent=23 // pred_fallthru
        _
    $region24: #{gpt_forward.79} parent=5 // pred_fallthru
      _
    %p166 = scmp.le.s32.totalorder 1, %s9
    %p167 = scmp.lt.s32.totalorder %s9, 3
    %p168 = pnand %p166, %p167
    %p169 = pneg %p168
    // Predicated region
    $region29: #{gpt_forward.79} parent=5 // pred_check
      _
    $region30: #{gpt_forward.79} parent=5 // pred_check_branch
      %171 = sbr.rel (%p168) target = $region32
    $region31: #{gpt_forward.79} parent=5 // pred_region
      %s172 = ssub.s32 %s9, 1
      %p173 = scmp.lt.s32.totalorder %s18, 1
      %s174 = scalar_select %p173, %s18, 1
      %s175 = smul.addr %s174, 8
      %s176 = scalar_lea.vmem %s0, %s175
      %p177 = pneg %p47
      %p178 = pneg %p44
      %p179 = scmp.lt.s32.totalorder %s19, 0
      %s180 = scalar_select %p179, %s19, 0
      %s181 = smul.addr %s180, 8
      %s182 = scalar_lea.vmem %s1, %s181
      %p183 = pneg %p73
      %p184 = pneg %p70
      %p185 = scmp.lt.s32.totalorder %s19, 0
      %s186 = scalar_select %p185, %s19, 0
      %s187 = scalar_lea.vmem %s2, %s186
      %p188 = pneg %p99
      %p189 = pneg %p96
      %p190 = pneg %p127
      %p191 = pneg %p124
      %p192 = scmp.lt.s32.totalorder %s18, 1
      %s193 = scalar_select %p192, %s18, 1
      %p194 = scmp.lt.s32.totalorder %s19, 0
      %s195 = scalar_select %p194, %s19, 0
      %s196 = sadd.s32 %s195, %s193
      %s197 = smul.addr %s196, 8
      %s198 = scalar_lea.vmem %s3, %s197
      %p199 = scmp.lt.s32.totalorder %s18, 1
      %s200 = scalar_select %p199, %s18, 1
      %s201 = smul.addr %s200, 8
      %s202 = scalar_lea.vmem %s0, %s201
      %p203 = scmp.lt.s32.totalorder %s19, 0
      %s204 = scalar_select %p203, %s19, 0
      %s205 = smul.addr %s204, 8
      %s206 = scalar_lea.vmem %s1, %s205
      %p207 = scmp.lt.s32.totalorder %s19, 0
      %s208 = scalar_select %p207, %s19, 0
      %s209 = scalar_lea.vmem %s2, %s208
      %p210 = scmp.lt.s32.totalorder %s18, 1
      %s211 = scalar_select %p210, %s18, 1
      %p212 = scmp.lt.s32.totalorder %s19, 0
      %s213 = scalar_select %p212, %s19, 0
      %s214 = sadd.s32 %s213, %s211
      %s215 = smul.addr %s214, 8
      %s216 = scalar_lea.vmem %s3, %s215
      %v217 = vld [vmem:[%s202] sm:$0xff]
      %v218 = vld [vmem:[%s206] sm:$0xff]
      %v219 = vld [vmem:[%s206 + $0x8] sm:$0xff]
      %v220 = vld [vmem:[%s206 + $0x10] sm:$0xff]
      %v221 = vld [vmem:[%s206 + $0x18] sm:$0xff]
      %v222 = vld [vmem:[%s206 + $0x20] sm:$0xff]
      %v223 = vld [vmem:[%s206 + $0x28] sm:$0xff]
      %v224 = vld [vmem:[%s206 + $0x30] sm:$0xff]
      %v225 = vld [vmem:[%s206 + $0x38] sm:$0xff]
      %v226 = vld [vmem:[%s206 + $0x40] sm:$0xff]
      %v227 = vld [vmem:[%s206 + $0x48] sm:$0xff]
      %v228 = vld [vmem:[%s206 + $0x50] sm:$0xff]
      %v229 = vld [vmem:[%s206 + $0x58] sm:$0xff]
      %v230 = vld [vmem:[%s206 + $0x60] sm:$0xff]
      %v231 = vld [vmem:[%s206 + $0x68] sm:$0xff]
      %v232 = vld [vmem:[%s206 + $0x70] sm:$0xff]
      %v233 = vld [vmem:[%s206 + $0x78] sm:$0xff]
      %v234 = vld [vmem:[%s209] sm:$0x1]
      %v236 = vlaneseq
      %v237 = vshrl.u32 %v236, 7
      %v238 = vsub.s32 0, %v237
      %v239 = vrot.slane %v234, %v238
      %241 = vmatprep.subr.mxu0 0.0
      %242 = vmatpush1.msra.mxu0 %v218
      %243 = vmatprep.subr.mxu0 0.0
      %244 = vmatpush1.msra.mxu0 %v219
      %245 = vmatprep.subr.mxu0 0.0
      %246 = vmatpush1.msra.mxu0 %v220
      %247 = vmatprep.subr.mxu0 0.0
      %248 = vmatpush1.msra.mxu0 %v221
      %249 = vmatprep.subr.mxu0 0.0
      %250 = vmatpush1.msra.mxu0 %v222
      %251 = vmatprep.subr.mxu0 0.0
      %252 = vmatpush1.msra.mxu0 %v223
      %253 = vmatprep.subr.mxu0 0.0
      %254 = vmatpush1.msra.mxu0 %v224
      %255 = vmatprep.subr.mxu0 0.0
      %256 = vmatpush1.msra.mxu0 %v225
      %257 = vmatprep.subr.mxu0 0.0
      %258 = vmatpush1.msra.mxu0 %v226
      %259 = vmatprep.subr.mxu0 0.0
      %260 = vmatpush1.msra.mxu0 %v227
      %261 = vmatprep.subr.mxu0 0.0
      %262 = vmatpush1.msra.mxu0 %v228
      %263 = vmatprep.subr.mxu0 0.0
      %264 = vmatpush1.msra.mxu0 %v229
      %265 = vmatprep.subr.mxu0 0.0
      %266 = vmatpush1.msra.mxu0 %v230
      %267 = vmatprep.subr.mxu0 0.0
      %268 = vmatpush1.msra.mxu0 %v231
      %269 = vmatprep.subr.mxu0 0.0
      %270 = vmatpush1.msra.mxu0 %v232
      %271 = vmatprep.subr.mxu0 0.0
      %272 = vmatpush1.msra.mxu0 %v233
      %273 = vmatprep.subr.mxu0 0.0
      %274 = vmatpush1.msra.mxu0 0.0
      %275 = vmatprep.subr.mxu0 0.0
      %276 = vmatpush1.msra.mxu0 0.0
      %277 = vmatprep.subr.mxu0 0.0
      %278 = vmatpush1.msra.mxu0 0.0
      %279 = vmatprep.subr.mxu0 0.0
      %280 = vmatpush1.msra.mxu0 0.0
      %281 = vmatprep.subr.mxu0 0.0
      %282 = vmatpush1.msra.mxu0 0.0
      %283 = vmatprep.subr.mxu0 0.0
      %284 = vmatpush1.msra.mxu0 0.0
      %285 = vmatprep.subr.mxu0 0.0
      %286 = vmatpush1.msra.mxu0 0.0
      %287 = vmatprep.subr.mxu0 0.0
      %288 = vmatpush1.msra.mxu0 0.0
      %289 = vmatprep.subr.mxu0 0.0
      %290 = vmatpush1.msra.mxu0 0.0
      %291 = vmatprep.subr.mxu0 0.0
      %292 = vmatpush1.msra.mxu0 0.0
      %293 = vmatprep.subr.mxu0 0.0
      %294 = vmatpush1.msra.mxu0 0.0
      %295 = vmatprep.subr.mxu0 0.0
      %296 = vmatpush1.msra.mxu0 0.0
      %297 = vmatprep.subr.mxu0 0.0
      %298 = vmatpush1.msra.mxu0 0.0
      %299 = vmatprep.subr.mxu0 0.0
      %300 = vmatpush1.msra.mxu0 0.0
      %301 = vmatprep.subr.mxu0 0.0
      %302 = vmatpush1.msra.mxu0 0.0
      %303 = vmatprep.subr.mxu0 0.0
      %304 = vmatpush1.msra.mxu0 0.0
      %305 = vmatprep.mubr.f32.mxu0 0.0
      %306 = vmatmul.mubr.f32.gmra.mrb[0].mxu0 %v217
      %v307 = vpop.f32.mrb[0].mxu0
      %v308 = vadd.f32 %v239, %v307
      %v309 = vpop.f32.mrb[0].mxu0
      %310 = vdwg.mxu0
      %vm311 = vcmask 261120
      %312 = vst.msk [vmem:[%s216] sm:$0xff] %vm311, %v308
      %p313 = scmp.lt.s32.totalorder %s18, 1
      %s314 = scalar_select %p313, %s18, 1
      %p315 = scmp.lt.s32.totalorder %s19, 0
      %s316 = scalar_select %p315, %s19, 0
      %s317 = sadd.s32 %s316, %s314
      %s318 = smul.addr %s317, 8
      %s319 = scalar_lea.vmem %s3, %s318
      // Predicated region
      $region33: #{gpt_forward.79} parent=31 // pred_check
        %p320 = pneg %p124
      $region34: #{gpt_forward.79} parent=31 // pred_check_branch
        %322 = sbr.rel (%p320) target = $region36
      $region35: #{gpt_forward.79} parent=31 // pred_region
        _
      $region36: #{gpt_forward.79} parent=31 // pred_fallthru
        _
    $region32: #{gpt_forward.79} parent=5 // pred_fallthru
      _
    %p323 = scmp.le.s32.totalorder 2, %s9
    // Predicated region
    $region37: #{gpt_forward.79} parent=5 // pred_check
      %p324 = pneg %p323
    $region38: #{gpt_forward.79} parent=5 // pred_check_branch
      %326 = sbr.rel (%p324) target = $region40
    $region39: #{gpt_forward.79} parent=5 // pred_region
      %s327 = ssub.s32 %s9, 2
      // Predicated region
      $region41: #{gpt_forward.79} parent=39 // pred_check
        %p328 = pneg %p130
      $region42: #{gpt_forward.79} parent=39 // pred_check_branch
        %330 = sbr.rel (%p328) target = $region44
      $region43: #{gpt_forward.79} parent=39 // pred_region
        %p331 = scmp.lt.s32.totalorder %s20, 1
        %s332 = scalar_select %p331, %s20, 1
        %p333 = scmp.lt.s32.totalorder %s21, 0
        %s334 = scalar_select %p333, %s21, 0
        %s335 = sadd.s32 %s334, %s332
        %s336 = smul.addr %s335, 8
        %s337 = scalar_lea.vmem %s3, %s336
      $region44: #{gpt_forward.79} parent=39 // pred_fallthru
        _
    $region40: #{gpt_forward.79} parent=5 // pred_fallthru
      _
  $region6: #{gpt_forward.79} parent=0 // loop_footer
    %s13 = sadd.s32 1, %s9
  $region7: #{gpt_forward.79} parent=0 // loop_footer_branch
    %8 = sbr.rel target = $region3
  $region8: #{gpt_forward.79} parent=0 // loop_exit
    _

</llo_original>
